<compile_context>
chip_gen: v7x
topology: tpu7x:2x2x1
jax: 0.10.0
libtpu: 0.0.40
codegen_flags: <defaults>
</compile_context>

<pallas_src>
import functools

import jax
import jax.numpy as jnp
from jax.experimental import pallas as pl
from jax.experimental.pallas import tpu as pltpu


_LANE = 128
_SUBLANE = 8
# Target footprint for the double-buffered input tiles: 2 inputs x 2 buffers.
_TILE_VMEM_BUDGET = 40 * 1024 * 1024   # conservative for v7x's 64 MiB VMEM
_VMEM_LIMIT_BYTES = 64 * 1024 * 1024
_SMALL_PROBLEM_ELEMS = 16 * 1024       # below this, XLA fusion beats a kernel launch


def _round_up(x, m):
    return ((x + m - 1) // m) * m


def _choose_tile_n(n, d, itemsize):
    """Largest row tile whose double-buffered footprint fits the VMEM budget."""
    max_rows = max(_SUBLANE, _TILE_VMEM_BUDGET // (4 * d * itemsize))
    tile = min(_round_up(n, _SUBLANE), max_rows, 2048)
    if tile >= _LANE:
        tile = (tile // _LANE) * _LANE      # lane-aligned output stores
    else:
        tile = _round_up(tile, _SUBLANE)
    return int(tile)


def _contrastive_kernel(z1_ref, z2_ref, out_ref, *, scale):
    z1 = z1_ref[...]
    z2 = z2_ref[...]

    # The only O(TILE_N * D) work: three lane reductions (f32 accumulation).
    s11 = jnp.sum(z1 * z1, axis=1, dtype=jnp.float32)
    s22 = jnp.sum(z2 * z2, axis=1, dtype=jnp.float32)
    s12 = jnp.sum(z1 * z2, axis=1, dtype=jnp.float32)

    # F.normalize eps: 1/max(||z||, 1e-12) == rsqrt(max(||z||^2, 1e-24)).  EUP op.
    inv1 = jax.lax.rsqrt(jnp.maximum(s11, 1e-24))
    inv2 = jax.lax.rsqrt(jnp.maximum(s22, 1e-24))
    dot = s12 * (inv1 * inv2)          # = sum(z1n * z2n)

    # cosine_similarity eps path (only differs from 1.0 for ||z|| < 1e-12 rows).
    m1 = jnp.sqrt(s11) * inv1          # = ||z1n||
    m2 = jnp.sqrt(s22) * inv2
    cos = dot / (jnp.maximum(m1, 1e-8) * jnp.maximum(m2, 1e-8))

    # Lane-dense store: one (1, TILE_N) row per grid step.
    out_ref[0, :] = (scale * cos).astype(out_ref.dtype)


def contrastive_loss(z1, z2, temperature=0.5, flag=True, use_pallas=None):
    """Pallas implementation of ContrastiveLoss.forward for 2-D (N, D) inputs."""
    assert z1.shape == z2.shape and z1.ndim == 2
    n, d = z1.shape

    if use_pallas is None:
        use_pallas = n * d >= _SMALL_PROBLEM_ELEMS
    if not use_pallas:
        # Tiny problem: launch overhead dominates, let XLA fuse it.
        return _reference(z1, z2, temperature, flag)

    itemsize = jnp.dtype(z1.dtype).itemsize
    tile_n = _choose_tile_n(n, d, itemsize)
    num_tiles = pl.cdiv(n, tile_n)
    n_pad = num_tiles * tile_n
    if n_pad != n:
        pad = ((0, n_pad - n), (0, 0))
        z1 = jnp.pad(z1, pad)
        z2 = jnp.pad(z2, pad)

    scale = (1.0 if flag else -1.0) / float(temperature)
    kernel = functools.partial(_contrastive_kernel, scale=scale)

    cost = pl.CostEstimate(
        flops=6 * n_pad * d,
        transcendentals=4 * n_pad,
        bytes_accessed=2 * n_pad * d * itemsize + 4 * n_pad,
    )

    out = pl.pallas_call(
        kernel,
        out_shape=jax.ShapeDtypeStruct((1, n_pad), jnp.float32),
        grid=(num_tiles,),
        in_specs=[
            pl.BlockSpec((tile_n, d), lambda i: (i, 0)),
            pl.BlockSpec((tile_n, d), lambda i: (i, 0)),
        ],
        out_specs=pl.BlockSpec((1, tile_n), lambda i: (0, i)),
        compiler_params=pltpu.CompilerParams(
            dimension_semantics=("parallel",),
            vmem_limit_bytes=_VMEM_LIMIT_BYTES,
        ),
        cost_estimate=cost,
    )(z1, z2)
    return out[0, :n]


def _reference(z1, z2, temperature=0.5, flag=True):
    """Pure-JAX reference matching the PyTorch module (unfused formulation)."""
    z1 = z1.astype(jnp.float32)
    z2 = z2.astype(jnp.float32)
    z1n = z1 / jnp.maximum(jnp.linalg.norm(z1, axis=1, keepdims=True), 1e-12)
    z2n = z2 / jnp.maximum(jnp.linalg.norm(z2, axis=1, keepdims=True), 1e-12)
    dot = jnp.sum(z1n * z2n, axis=-1)
    m1 = jnp.maximum(jnp.linalg.norm(z1n, axis=-1), 1e-8)
    m2 = jnp.maximum(jnp.linalg.norm(z2n, axis=-1), 1e-8)
    cos = dot / (m1 * m2)
    sign = 1.0 if flag else -1.0
    return sign * cos / temperature


if __name__ == "__main__":
    key = jax.random.PRNGKey(0)

    # Small (batch, hidden) shapes consistent with the module's forward:
    #   (256, 128) lane-aligned primary case,
    #   (200, 96)  exercises padding of a partial last row tile,
    #   (8, 32)    the tiny toy case.
    cases = [(256, 128), (200, 96), (8, 32)]

    for (n, d) in cases:
        k1, k2 = jax.random.split(jax.random.fold_in(key, n * 1000 + d))
        z1 = jax.random.normal(k1, (n, d), dtype=jnp.float32)
        z2 = jax.random.normal(k2, (n, d), dtype=jnp.float32)
        for flag in (True, False):
            out = jax.block_until_ready(
                contrastive_loss(z1, z2, temperature=0.5, flag=flag, use_pallas=True)
            )
            ref = _reference(z1, z2, 0.5, flag)
            assert out.shape == (n,)
            assert jnp.allclose(out, ref, atol=1e-5, rtol=1e-5), (n, d, flag)

    # Degenerate zero-row check (exercises the 1e-12 / 1e-8 eps paths).
    kz = jax.random.fold_in(key, 999)
    z1z = jnp.zeros((16, 32), jnp.float32)
    z2z = jax.random.normal(kz, (16, 32), dtype=jnp.float32)
    outz = jax.block_until_ready(contrastive_loss(z1z, z2z, use_pallas=True))
    refz = _reference(z1z, z2z)
    assert jnp.allclose(outz, refz, atol=1e-5, rtol=1e-5)

    print("KERNEL_OK")
</pallas_src>

<mosaic_0001>
module attributes {stable_mosaic.version = 11 : i64} {
  func.func @_contrastive_kernel(%arg0: i32, %arg1: memref<256x128xf32, #tpu.memory_space<vmem>>, %arg2: memref<256x128xf32, #tpu.memory_space<vmem>>, %arg3: memref<1x256xf32, #tpu.memory_space<vmem>>) attributes {dimension_semantics = [#tpu.dimension_semantics<parallel>], iteration_bounds = array<i64: 1>, scalar_prefetch = 0 : i64, scratch_operands = 0 : i64, tpu.core_type = #tpu.core_type<tc>, window_params = [{transform_indices = @transform_0, window_bounds = array<i64: 256, 128>}, {transform_indices = @transform_1, window_bounds = array<i64: 256, 128>}, {transform_indices = @transform_2, window_bounds = array<i64: 1, 256>}]} {
    %c0 = arith.constant 0 : index
    %c0_0 = arith.constant 0 : index
    %0 = vector.load %arg1[%c0, %c0_0] : memref<256x128xf32, #tpu.memory_space<vmem>>, vector<256x128xf32>
    %c0_1 = arith.constant 0 : index
    %c0_2 = arith.constant 0 : index
    %1 = vector.load %arg2[%c0_1, %c0_2] : memref<256x128xf32, #tpu.memory_space<vmem>>, vector<256x128xf32>
    %2 = arith.mulf %0, %0 : vector<256x128xf32>
    %cst = arith.constant dense<0.000000e+00> : vector<256xf32>
    %3 = vector.multi_reduction <add>, %2, %cst [1] : vector<256x128xf32> to vector<256xf32>
    %4 = arith.mulf %1, %1 : vector<256x128xf32>
    %cst_3 = arith.constant dense<0.000000e+00> : vector<256xf32>
    %5 = vector.multi_reduction <add>, %4, %cst_3 [1] : vector<256x128xf32> to vector<256xf32>
    %6 = arith.mulf %0, %1 : vector<256x128xf32>
    %cst_4 = arith.constant dense<0.000000e+00> : vector<256xf32>
    %7 = vector.multi_reduction <add>, %6, %cst_4 [1] : vector<256x128xf32> to vector<256xf32>
    %cst_5 = arith.constant 1.000000e-24 : f32
    %8 = vector.broadcast %cst_5 : f32 to vector<256xf32>
    %9 = arith.maximumf %3, %8 : vector<256xf32>
    %10 = math.rsqrt %9 : vector<256xf32>
    %cst_6 = arith.constant 1.000000e-24 : f32
    %11 = vector.broadcast %cst_6 : f32 to vector<256xf32>
    %12 = arith.maximumf %5, %11 : vector<256xf32>
    %13 = math.rsqrt %12 : vector<256xf32>
    %14 = arith.mulf %10, %13 : vector<256xf32>
    %15 = arith.mulf %7, %14 : vector<256xf32>
    %16 = math.sqrt %3 : vector<256xf32>
    %17 = arith.mulf %16, %10 : vector<256xf32>
    %18 = math.sqrt %5 : vector<256xf32>
    %19 = arith.mulf %18, %13 : vector<256xf32>
    %cst_7 = arith.constant 9.99999993E-9 : f32
    %20 = vector.broadcast %cst_7 : f32 to vector<256xf32>
    %21 = arith.maximumf %17, %20 : vector<256xf32>
    %cst_8 = arith.constant 9.99999993E-9 : f32
    %22 = vector.broadcast %cst_8 : f32 to vector<256xf32>
    %23 = arith.maximumf %19, %22 : vector<256xf32>
    %24 = arith.mulf %21, %23 : vector<256xf32>
    %25 = arith.divf %15, %24 : vector<256xf32>
    %cst_9 = arith.constant 2.000000e+00 : f32
    %26 = vector.broadcast %cst_9 : f32 to vector<256xf32>
    %27 = arith.mulf %26, %25 : vector<256xf32>
    %c0_10 = arith.constant 0 : index
    %c0_11 = arith.constant 0 : index
    %28 = vector.load %arg3[%c0_10, %c0_11] : memref<1x256xf32, #tpu.memory_space<vmem>>, vector<1x256xf32>
    %29 = vector.shape_cast %28 : vector<1x256xf32> to vector<256xf32>
    %30 = vector.shape_cast %27 : vector<256xf32> to vector<1x256xf32>
    tpu.vector_store %arg3[%c0_10, %c0_11], %30 {strides = array<i32>} : memref<1x256xf32, #tpu.memory_space<vmem>>, vector<1x256xf32>,
    return
  }
  func.func @transform_0(%arg0: i32) -> (i32, i32) {
    %c0_i32 = arith.constant 0 : i32
    %c0_i32_0 = arith.constant 0 : i32
    return %arg0, %c0_i32 : i32, i32
  }
  func.func @transform_1(%arg0: i32) -> (i32, i32) {
    %c0_i32 = arith.constant 0 : i32
    %c0_i32_0 = arith.constant 0 : i32
    return %arg0, %c0_i32 : i32, i32
  }
  func.func @transform_2(%arg0: i32) -> (i32, i32) {
    %c0_i32 = arith.constant 0 : i32
    %c0_i32_0 = arith.constant 0 : i32
    return %c0_i32, %arg0 : i32, i32
  }
}

</mosaic_0001>

<llo_original>
// kernel: tpu_custom_call.1
$region0: #{tpu_custom_call.1}
  #allocation0 [shape = 'u32[]', space=smem, size = 0x4, offset = 0x4, fixed_abs, tag = 'smem constant byte address 0x4 - core index']
  #allocation1 [shape = 'u32[144,128]{1,0:T(1,128)}', space=vmem, size = 0x12000, scoped, tag = 'internal scratch']
  %s0 = inlined_call_operand.hbm [shape: f32[256,128], index: 0, kind: input, shape index: {}]
  %s1 = inlined_call_operand.hbm [shape: f32[256,128], index: 1, kind: input, shape index: {}]
  %s2 = inlined_call_operand.hbm [shape: f32[1,256], index: 2, kind: output, shape index: {}]
  %s3 = sld [smem:[#allocation0]]
  $region26: #{tpu_custom_call.1} parent=0
    _
  %s5 = ssub.s32 1, %s3
  %s6 = scalar_select 0, %s5, %s3
  $region1: #{tpu_custom_call.1} parent=0
    #allocation2 [shape = 'u8[131072]{0}', space=vmem, size = 0x20000, scoped, tag = 'input window, operand 0, single buffered']
    #allocation3 [shape = 's32[1]{0}', space=sflag, size = 0x4, scoped, tag = 'scoped memory for tpu_custom_call.1']
    #allocation4 [shape = 's32[1]{0}', space=sflag, size = 0x4, scoped, tag = 'scoped memory for tpu_custom_call.1']
    #allocation5 [shape = 'u8[131072]{0}', space=vmem, size = 0x20000, scoped, tag = 'input window, operand 1, single buffered']
    #allocation6 [shape = 's32[1]{0}', space=sflag, size = 0x4, scoped, tag = 'scoped memory for tpu_custom_call.1']
    #allocation7 [shape = 'u8[1024]{0}', space=vmem, size = 0x400, scoped, tag = 'output window, operand 0, single buffered']
    %7 = vsyncpa [#allocation3], 0
    %8 = vsyncpa [#allocation6], 0
    %9 = vsyncpa [#allocation4], 0
    // Predicated region
    $region2: #{tpu_custom_call.1} parent=1 // pred_check
      _
    $region3: #{tpu_custom_call.1} parent=1 // pred_check_branch
      %11 = sbr.rel (0) target = $region5
    $region4: #{tpu_custom_call.1} parent=1 // pred_region
      %s13 = ssub.s32 4096, 4096
      %14 = vsyncadd [#allocation3], %s13
      %s15 = sshll.u32 [#allocation2], 4
      %s16 = int_to_ptr.vmem [resolvable:$true] %s15
      %21 = dma.hbm_to_vmem [thread:$0]  %s0, 4096, %s16, [#allocation3], 128, 128, 8
    $region5: #{tpu_custom_call.1} parent=1 // pred_fallthru
      _
    // Predicated region
    $region6: #{tpu_custom_call.1} parent=1 // pred_check
      _
    $region7: #{tpu_custom_call.1} parent=1 // pred_check_branch
      %23 = sbr.rel (0) target = $region9
    $region8: #{tpu_custom_call.1} parent=1 // pred_region
      %s25 = ssub.s32 4096, 4096
      %26 = vsyncadd [#allocation6], %s25
      %s27 = sshll.u32 [#allocation5], 4
      %s28 = int_to_ptr.vmem [resolvable:$true] %s27
      %33 = dma.hbm_to_vmem [thread:$0]  %s1, 4096, %s28, [#allocation6], 128, 128, 8
    $region9: #{tpu_custom_call.1} parent=1 // pred_fallthru
      _
    // Predicated region
    $region10: #{tpu_custom_call.1} parent=1 // pred_check
      _
    $region11: #{tpu_custom_call.1} parent=1 // pred_check_branch
      %35 = sbr.rel (0) target = $region13
    $region12: #{tpu_custom_call.1} parent=1 // pred_region
      %36 = dma.done [#allocation3], 4096
    $region13: #{tpu_custom_call.1} parent=1 // pred_fallthru
      _
    // Predicated region
    $region14: #{tpu_custom_call.1} parent=1 // pred_check
      _
    $region15: #{tpu_custom_call.1} parent=1 // pred_check_branch
      %38 = sbr.rel (0) target = $region17
    $region16: #{tpu_custom_call.1} parent=1 // pred_region
      %39 = dma.done [#allocation6], 4096
    $region17: #{tpu_custom_call.1} parent=1 // pred_fallthru
      _
    %v40 = vld [vmem:[#allocation2] sm:$0xff]
    %v41 = vld [vmem:[#allocation2 + $0x8] sm:$0xff]
    %v42 = vld [vmem:[#allocation2 + $0x10] sm:$0xff]
    %v43 = vld [vmem:[#allocation2 + $0x18] sm:$0xff]
    %v44 = vld [vmem:[#allocation2 + $0x20] sm:$0xff]
    %v45 = vld [vmem:[#allocation2 + $0x28] sm:$0xff]
    %v46 = vld [vmem:[#allocation2 + $0x30] sm:$0xff]
    %v47 = vld [vmem:[#allocation2 + $0x38] sm:$0xff]
    %v48 = vld [vmem:[#allocation2 + $0x40] sm:$0xff]
    %v49 = vld [vmem:[#allocation2 + $0x48] sm:$0xff]
    %v50 = vld [vmem:[#allocation2 + $0x50] sm:$0xff]
    %v51 = vld [vmem:[#allocation2 + $0x58] sm:$0xff]
    %v52 = vld [vmem:[#allocation2 + $0x60] sm:$0xff]
    %v53 = vld [vmem:[#allocation2 + $0x68] sm:$0xff]
    %v54 = vld [vmem:[#allocation2 + $0x70] sm:$0xff]
    %v55 = vld [vmem:[#allocation2 + $0x78] sm:$0xff]
    %v56 = vld [vmem:[#allocation2 + $0x80] sm:$0xff]
    %v57 = vld [vmem:[#allocation2 + $0x88] sm:$0xff]
    %v58 = vld [vmem:[#allocation2 + $0x90] sm:$0xff]
    %v59 = vld [vmem:[#allocation2 + $0x98] sm:$0xff]
    %v60 = vld [vmem:[#allocation2 + $0xa0] sm:$0xff]
    %v61 = vld [vmem:[#allocation2 + $0xa8] sm:$0xff]
    %v62 = vld [vmem:[#allocation2 + $0xb0] sm:$0xff]
    %v63 = vld [vmem:[#allocation2 + $0xb8] sm:$0xff]
    %v64 = vld [vmem:[#allocation2 + $0xc0] sm:$0xff]
    %v65 = vld [vmem:[#allocation2 + $0xc8] sm:$0xff]
    %v66 = vld [vmem:[#allocation2 + $0xd0] sm:$0xff]
    %v67 = vld [vmem:[#allocation2 + $0xd8] sm:$0xff]
    %v68 = vld [vmem:[#allocation2 + $0xe0] sm:$0xff]
    %v69 = vld [vmem:[#allocation2 + $0xe8] sm:$0xff]
    %v70 = vld [vmem:[#allocation2 + $0xf0] sm:$0xff]
    %v71 = vld [vmem:[#allocation2 + $0xf8] sm:$0xff]
    %v72 = vld [vmem:[#allocation5] sm:$0xff]
    %v73 = vld [vmem:[#allocation5 + $0x8] sm:$0xff]
    %v74 = vld [vmem:[#allocation5 + $0x10] sm:$0xff]
    %v75 = vld [vmem:[#allocation5 + $0x18] sm:$0xff]
    %v76 = vld [vmem:[#allocation5 + $0x20] sm:$0xff]
    %v77 = vld [vmem:[#allocation5 + $0x28] sm:$0xff]
    %v78 = vld [vmem:[#allocation5 + $0x30] sm:$0xff]
    %v79 = vld [vmem:[#allocation5 + $0x38] sm:$0xff]
    %v80 = vld [vmem:[#allocation5 + $0x40] sm:$0xff]
    %v81 = vld [vmem:[#allocation5 + $0x48] sm:$0xff]
    %v82 = vld [vmem:[#allocation5 + $0x50] sm:$0xff]
    %v83 = vld [vmem:[#allocation5 + $0x58] sm:$0xff]
    %v84 = vld [vmem:[#allocation5 + $0x60] sm:$0xff]
    %v85 = vld [vmem:[#allocation5 + $0x68] sm:$0xff]
    %v86 = vld [vmem:[#allocation5 + $0x70] sm:$0xff]
    %v87 = vld [vmem:[#allocation5 + $0x78] sm:$0xff]
    %v88 = vld [vmem:[#allocation5 + $0x80] sm:$0xff]
    %v89 = vld [vmem:[#allocation5 + $0x88] sm:$0xff]
    %v90 = vld [vmem:[#allocation5 + $0x90] sm:$0xff]
    %v91 = vld [vmem:[#allocation5 + $0x98] sm:$0xff]
    %v92 = vld [vmem:[#allocation5 + $0xa0] sm:$0xff]
    %v93 = vld [vmem:[#allocation5 + $0xa8] sm:$0xff]
    %v94 = vld [vmem:[#allocation5 + $0xb0] sm:$0xff]
    %v95 = vld [vmem:[#allocation5 + $0xb8] sm:$0xff]
    %v96 = vld [vmem:[#allocation5 + $0xc0] sm:$0xff]
    %v97 = vld [vmem:[#allocation5 + $0xc8] sm:$0xff]
    %v98 = vld [vmem:[#allocation5 + $0xd0] sm:$0xff]
    %v99 = vld [vmem:[#allocation5 + $0xd8] sm:$0xff]
    %v100 = vld [vmem:[#allocation5 + $0xe0] sm:$0xff]
    %v101 = vld [vmem:[#allocation5 + $0xe8] sm:$0xff]
    %v102 = vld [vmem:[#allocation5 + $0xf0] sm:$0xff]
    %v103 = vld [vmem:[#allocation5 + $0xf8] sm:$0xff]
    %v104 = vmul.f32 %v40, %v40
    %v105 = vmul.f32 %v41, %v41
    %v106 = vmul.f32 %v42, %v42
    %v107 = vmul.f32 %v43, %v43
    %v108 = vmul.f32 %v44, %v44
    %v109 = vmul.f32 %v45, %v45
    %v110 = vmul.f32 %v46, %v46
    %v111 = vmul.f32 %v47, %v47
    %v112 = vmul.f32 %v48, %v48
    %v113 = vmul.f32 %v49, %v49
    %v114 = vmul.f32 %v50, %v50
    %v115 = vmul.f32 %v51, %v51
    %v116 = vmul.f32 %v52, %v52
    %v117 = vmul.f32 %v53, %v53
    %v118 = vmul.f32 %v54, %v54
    %v119 = vmul.f32 %v55, %v55
    %v120 = vmul.f32 %v56, %v56
    %v121 = vmul.f32 %v57, %v57
    %v122 = vmul.f32 %v58, %v58
    %v123 = vmul.f32 %v59, %v59
    %v124 = vmul.f32 %v60, %v60
    %v125 = vmul.f32 %v61, %v61
    %v126 = vmul.f32 %v62, %v62
    %v127 = vmul.f32 %v63, %v63
    %v128 = vmul.f32 %v64, %v64
    %v129 = vmul.f32 %v65, %v65
    %v130 = vmul.f32 %v66, %v66
    %v131 = vmul.f32 %v67, %v67
    %v132 = vmul.f32 %v68, %v68
    %v133 = vmul.f32 %v69, %v69
    %v134 = vmul.f32 %v70, %v70
    %v135 = vmul.f32 %v71, %v71
    %136 = vadd.xlane.f32.xlu0 %v104
    %v137 = vpop.xlane.xlu0 %136
    %138 = vadd.xlane.f32.xlu0 %v105
    %v139 = vpop.xlane.xlu0 %138
    %140 = vadd.xlane.f32.xlu0 %v106
    %v141 = vpop.xlane.xlu0 %140
    %142 = vadd.xlane.f32.xlu0 %v107
    %v143 = vpop.xlane.xlu0 %142
    %144 = vadd.xlane.f32.xlu0 %v108
    %v145 = vpop.xlane.xlu0 %144
    %146 = vadd.xlane.f32.xlu0 %v109
    %v147 = vpop.xlane.xlu0 %146
    %148 = vadd.xlane.f32.xlu0 %v110
    %v149 = vpop.xlane.xlu0 %148
    %150 = vadd.xlane.f32.xlu0 %v111
    %v151 = vpop.xlane.xlu0 %150
    %152 = vadd.xlane.f32.xlu0 %v112
    %v153 = vpop.xlane.xlu0 %152
    %154 = vadd.xlane.f32.xlu0 %v113
    %v155 = vpop.xlane.xlu0 %154
    %156 = vadd.xlane.f32.xlu0 %v114
    %v157 = vpop.xlane.xlu0 %156
    %158 = vadd.xlane.f32.xlu0 %v115
    %v159 = vpop.xlane.xlu0 %158
    %160 = vadd.xlane.f32.xlu0 %v116
    %v161 = vpop.xlane.xlu0 %160
    %162 = vadd.xlane.f32.xlu0 %v117
    %v163 = vpop.xlane.xlu0 %162
    %164 = vadd.xlane.f32.xlu0 %v118
    %v165 = vpop.xlane.xlu0 %164
    %166 = vadd.xlane.f32.xlu0 %v119
    %v167 = vpop.xlane.xlu0 %166
    %168 = vadd.xlane.f32.xlu0 %v120
    %v169 = vpop.xlane.xlu0 %168
    %170 = vadd.xlane.f32.xlu0 %v121
    %v171 = vpop.xlane.xlu0 %170
    %172 = vadd.xlane.f32.xlu0 %v122
    %v173 = vpop.xlane.xlu0 %172
    %174 = vadd.xlane.f32.xlu0 %v123
    %v175 = vpop.xlane.xlu0 %174
    %176 = vadd.xlane.f32.xlu0 %v124
    %v177 = vpop.xlane.xlu0 %176
    %178 = vadd.xlane.f32.xlu0 %v125
    %v179 = vpop.xlane.xlu0 %178
    %180 = vadd.xlane.f32.xlu0 %v126
    %v181 = vpop.xlane.xlu0 %180
    %182 = vadd.xlane.f32.xlu0 %v127
    %v183 = vpop.xlane.xlu0 %182
    %184 = vadd.xlane.f32.xlu0 %v128
    %v185 = vpop.xlane.xlu0 %184
    %186 = vadd.xlane.f32.xlu0 %v129
    %v187 = vpop.xlane.xlu0 %186
    %188 = vadd.xlane.f32.xlu0 %v130
    %v189 = vpop.xlane.xlu0 %188
    %190 = vadd.xlane.f32.xlu0 %v131
    %v191 = vpop.xlane.xlu0 %190
    %192 = vadd.xlane.f32.xlu0 %v132
    %v193 = vpop.xlane.xlu0 %192
    %194 = vadd.xlane.f32.xlu0 %v133
    %v195 = vpop.xlane.xlu0 %194
    %196 = vadd.xlane.f32.xlu0 %v134
    %v197 = vpop.xlane.xlu0 %196
    %198 = vadd.xlane.f32.xlu0 %v135
    %v199 = vpop.xlane.xlu0 %198
    %v200 = vmul.f32 %v72, %v72
    %v201 = vmul.f32 %v73, %v73
    %v202 = vmul.f32 %v74, %v74
    %v203 = vmul.f32 %v75, %v75
    %v204 = vmul.f32 %v76, %v76
    %v205 = vmul.f32 %v77, %v77
    %v206 = vmul.f32 %v78, %v78
    %v207 = vmul.f32 %v79, %v79
    %v208 = vmul.f32 %v80, %v80
    %v209 = vmul.f32 %v81, %v81
    %v210 = vmul.f32 %v82, %v82
    %v211 = vmul.f32 %v83, %v83
    %v212 = vmul.f32 %v84, %v84
    %v213 = vmul.f32 %v85, %v85
    %v214 = vmul.f32 %v86, %v86
    %v215 = vmul.f32 %v87, %v87
    %v216 = vmul.f32 %v88, %v88
    %v217 = vmul.f32 %v89, %v89
    %v218 = vmul.f32 %v90, %v90
    %v219 = vmul.f32 %v91, %v91
    %v220 = vmul.f32 %v92, %v92
    %v221 = vmul.f32 %v93, %v93
    %v222 = vmul.f32 %v94, %v94
    %v223 = vmul.f32 %v95, %v95
    %v224 = vmul.f32 %v96, %v96
    %v225 = vmul.f32 %v97, %v97
    %v226 = vmul.f32 %v98, %v98
    %v227 = vmul.f32 %v99, %v99
    %v228 = vmul.f32 %v100, %v100
    %v229 = vmul.f32 %v101, %v101
    %v230 = vmul.f32 %v102, %v102
    %v231 = vmul.f32 %v103, %v103
    %232 = vadd.xlane.f32.xlu0 %v200
    %v233 = vpop.xlane.xlu0 %232
    %234 = vadd.xlane.f32.xlu0 %v201
    %v235 = vpop.xlane.xlu0 %234
    %236 = vadd.xlane.f32.xlu0 %v202
    %v237 = vpop.xlane.xlu0 %236
    %238 = vadd.xlane.f32.xlu0 %v203
    %v239 = vpop.xlane.xlu0 %238
    %240 = vadd.xlane.f32.xlu0 %v204
    %v241 = vpop.xlane.xlu0 %240
    %242 = vadd.xlane.f32.xlu0 %v205
    %v243 = vpop.xlane.xlu0 %242
    %244 = vadd.xlane.f32.xlu0 %v206
    %v245 = vpop.xlane.xlu0 %244
    %246 = vadd.xlane.f32.xlu0 %v207
    %v247 = vpop.xlane.xlu0 %246
    %248 = vadd.xlane.f32.xlu0 %v208
    %v249 = vpop.xlane.xlu0 %248
    %250 = vadd.xlane.f32.xlu0 %v209
    %v251 = vpop.xlane.xlu0 %250
    %252 = vadd.xlane.f32.xlu0 %v210
    %v253 = vpop.xlane.xlu0 %252
    %254 = vadd.xlane.f32.xlu0 %v211
    %v255 = vpop.xlane.xlu0 %254
    %256 = vadd.xlane.f32.xlu0 %v212
    %v257 = vpop.xlane.xlu0 %256
    %258 = vadd.xlane.f32.xlu0 %v213
    %v259 = vpop.xlane.xlu0 %258
    %260 = vadd.xlane.f32.xlu0 %v214
    %v261 = vpop.xlane.xlu0 %260
    %262 = vadd.xlane.f32.xlu0 %v215
    %v263 = vpop.xlane.xlu0 %262
    %264 = vadd.xlane.f32.xlu0 %v216
    %v265 = vpop.xlane.xlu0 %264
    %266 = vadd.xlane.f32.xlu0 %v217
    %v267 = vpop.xlane.xlu0 %266
    %268 = vadd.xlane.f32.xlu0 %v218
    %v269 = vpop.xlane.xlu0 %268
    %270 = vadd.xlane.f32.xlu0 %v219
    %v271 = vpop.xlane.xlu0 %270
    %272 = vadd.xlane.f32.xlu0 %v220
    %v273 = vpop.xlane.xlu0 %272
    %274 = vadd.xlane.f32.xlu0 %v221
    %v275 = vpop.xlane.xlu0 %274
    %276 = vadd.xlane.f32.xlu0 %v222
    %v277 = vpop.xlane.xlu0 %276
    %278 = vadd.xlane.f32.xlu0 %v223
    %v279 = vpop.xlane.xlu0 %278
    %280 = vadd.xlane.f32.xlu0 %v224
    %v281 = vpop.xlane.xlu0 %280
    %282 = vadd.xlane.f32.xlu0 %v225
    %v283 = vpop.xlane.xlu0 %282
    %284 = vadd.xlane.f32.xlu0 %v226
    %v285 = vpop.xlane.xlu0 %284
    %286 = vadd.xlane.f32.xlu0 %v227
    %v287 = vpop.xlane.xlu0 %286
    %288 = vadd.xlane.f32.xlu0 %v228
    %v289 = vpop.xlane.xlu0 %288
    %290 = vadd.xlane.f32.xlu0 %v229
    %v291 = vpop.xlane.xlu0 %290
    %292 = vadd.xlane.f32.xlu0 %v230
    %v293 = vpop.xlane.xlu0 %292
    %294 = vadd.xlane.f32.xlu0 %v231
    %v295 = vpop.xlane.xlu0 %294
    %v296 = vmul.f32 %v40, %v72
    %v297 = vmul.f32 %v41, %v73
    %v298 = vmul.f32 %v42, %v74
    %v299 = vmul.f32 %v43, %v75
    %v300 = vmul.f32 %v44, %v76
    %v301 = vmul.f32 %v45, %v77
    %v302 = vmul.f32 %v46, %v78
    %v303 = vmul.f32 %v47, %v79
    %v304 = vmul.f32 %v48, %v80
    %v305 = vmul.f32 %v49, %v81
    %v306 = vmul.f32 %v50, %v82
    %v307 = vmul.f32 %v51, %v83
    %v308 = vmul.f32 %v52, %v84
    %v309 = vmul.f32 %v53, %v85
    %v310 = vmul.f32 %v54, %v86
    %v311 = vmul.f32 %v55, %v87
    %v312 = vmul.f32 %v56, %v88
    %v313 = vmul.f32 %v57, %v89
    %v314 = vmul.f32 %v58, %v90
    %v315 = vmul.f32 %v59, %v91
    %v316 = vmul.f32 %v60, %v92
    %v317 = vmul.f32 %v61, %v93
    %v318 = vmul.f32 %v62, %v94
    %v319 = vmul.f32 %v63, %v95
    %v320 = vmul.f32 %v64, %v96
    %v321 = vmul.f32 %v65, %v97
    %v322 = vmul.f32 %v66, %v98
    %v323 = vmul.f32 %v67, %v99
    %v324 = vmul.f32 %v68, %v100
    %v325 = vmul.f32 %v69, %v101
    %v326 = vmul.f32 %v70, %v102
    %v327 = vmul.f32 %v71, %v103
    %328 = vadd.xlane.f32.xlu0 %v296
    %v329 = vpop.xlane.xlu0 %328
    %330 = vadd.xlane.f32.xlu0 %v297
    %v331 = vpop.xlane.xlu0 %330
    %332 = vadd.xlane.f32.xlu0 %v298
    %v333 = vpop.xlane.xlu0 %332
    %334 = vadd.xlane.f32.xlu0 %v299
    %v335 = vpop.xlane.xlu0 %334
    %336 = vadd.xlane.f32.xlu0 %v300
    %v337 = vpop.xlane.xlu0 %336
    %338 = vadd.xlane.f32.xlu0 %v301
    %v339 = vpop.xlane.xlu0 %338
    %340 = vadd.xlane.f32.xlu0 %v302
    %v341 = vpop.xlane.xlu0 %340
    %342 = vadd.xlane.f32.xlu0 %v303
    %v343 = vpop.xlane.xlu0 %342
    %344 = vadd.xlane.f32.xlu0 %v304
    %v345 = vpop.xlane.xlu0 %344
    %346 = vadd.xlane.f32.xlu0 %v305
    %v347 = vpop.xlane.xlu0 %346
    %348 = vadd.xlane.f32.xlu0 %v306
    %v349 = vpop.xlane.xlu0 %348
    %350 = vadd.xlane.f32.xlu0 %v307
    %v351 = vpop.xlane.xlu0 %350
    %352 = vadd.xlane.f32.xlu0 %v308
    %v353 = vpop.xlane.xlu0 %352
    %354 = vadd.xlane.f32.xlu0 %v309
    %v355 = vpop.xlane.xlu0 %354
    %356 = vadd.xlane.f32.xlu0 %v310
    %v357 = vpop.xlane.xlu0 %356
    %358 = vadd.xlane.f32.xlu0 %v311
    %v359 = vpop.xlane.xlu0 %358
    %360 = vadd.xlane.f32.xlu0 %v312
    %v361 = vpop.xlane.xlu0 %360
    %362 = vadd.xlane.f32.xlu0 %v313
    %v363 = vpop.xlane.xlu0 %362
    %364 = vadd.xlane.f32.xlu0 %v314
    %v365 = vpop.xlane.xlu0 %364
    %366 = vadd.xlane.f32.xlu0 %v315
    %v367 = vpop.xlane.xlu0 %366
    %368 = vadd.xlane.f32.xlu0 %v316
    %v369 = vpop.xlane.xlu0 %368
    %370 = vadd.xlane.f32.xlu0 %v317
    %v371 = vpop.xlane.xlu0 %370
    %372 = vadd.xlane.f32.xlu0 %v318
    %v373 = vpop.xlane.xlu0 %372
    %374 = vadd.xlane.f32.xlu0 %v319
    %v375 = vpop.xlane.xlu0 %374
    %376 = vadd.xlane.f32.xlu0 %v320
    %v377 = vpop.xlane.xlu0 %376
    %378 = vadd.xlane.f32.xlu0 %v321
    %v379 = vpop.xlane.xlu0 %378
    %380 = vadd.xlane.f32.xlu0 %v322
    %v381 = vpop.xlane.xlu0 %380
    %382 = vadd.xlane.f32.xlu0 %v323
    %v383 = vpop.xlane.xlu0 %382
    %384 = vadd.xlane.f32.xlu0 %v324
    %v385 = vpop.xlane.xlu0 %384
    %386 = vadd.xlane.f32.xlu0 %v325
    %v387 = vpop.xlane.xlu0 %386
    %388 = vadd.xlane.f32.xlu0 %v326
    %v389 = vpop.xlane.xlu0 %388
    %390 = vadd.xlane.f32.xlu0 %v327
    %v391 = vpop.xlane.xlu0 %390
    %v392 = vmax.f32 %v137, 1e-24
    %v393 = vmax.f32 %v139, 1e-24
    %v394 = vmax.f32 %v141, 1e-24
    %v395 = vmax.f32 %v143, 1e-24
    %v396 = vmax.f32 %v145, 1e-24
    %v397 = vmax.f32 %v147, 1e-24
    %v398 = vmax.f32 %v149, 1e-24
    %v399 = vmax.f32 %v151, 1e-24
    %v400 = vmax.f32 %v153, 1e-24
    %v401 = vmax.f32 %v155, 1e-24
    %v402 = vmax.f32 %v157, 1e-24
    %v403 = vmax.f32 %v159, 1e-24
    %v404 = vmax.f32 %v161, 1e-24
    %v405 = vmax.f32 %v163, 1e-24
    %v406 = vmax.f32 %v165, 1e-24
    %v407 = vmax.f32 %v167, 1e-24
    %v408 = vmax.f32 %v169, 1e-24
    %v409 = vmax.f32 %v171, 1e-24
    %v410 = vmax.f32 %v173, 1e-24
    %v411 = vmax.f32 %v175, 1e-24
    %v412 = vmax.f32 %v177, 1e-24
    %v413 = vmax.f32 %v179, 1e-24
    %v414 = vmax.f32 %v181, 1e-24
    %v415 = vmax.f32 %v183, 1e-24
    %v416 = vmax.f32 %v185, 1e-24
    %v417 = vmax.f32 %v187, 1e-24
    %v418 = vmax.f32 %v189, 1e-24
    %v419 = vmax.f32 %v191, 1e-24
    %v420 = vmax.f32 %v193, 1e-24
    %v421 = vmax.f32 %v195, 1e-24
    %v422 = vmax.f32 %v197, 1e-24
    %v423 = vmax.f32 %v199, 1e-24
    %v424 = vrsqrt.pop %v392
    %v425 = vrsqrt.pop %v393
    %v426 = vrsqrt.pop %v394
    %v427 = vrsqrt.pop %v395
    %v428 = vrsqrt.pop %v396
    %v429 = vrsqrt.pop %v397
    %v430 = vrsqrt.pop %v398
    %v431 = vrsqrt.pop %v399
    %v432 = vrsqrt.pop %v400
    %v433 = vrsqrt.pop %v401
    %v434 = vrsqrt.pop %v402
    %v435 = vrsqrt.pop %v403
    %v436 = vrsqrt.pop %v404
    %v437 = vrsqrt.pop %v405
    %v438 = vrsqrt.pop %v406
    %v439 = vrsqrt.pop %v407
    %v440 = vrsqrt.pop %v408
    %v441 = vrsqrt.pop %v409
    %v442 = vrsqrt.pop %v410
    %v443 = vrsqrt.pop %v411
    %v444 = vrsqrt.pop %v412
    %v445 = vrsqrt.pop %v413
    %v446 = vrsqrt.pop %v414
    %v447 = vrsqrt.pop %v415
    %v448 = vrsqrt.pop %v416
    %v449 = vrsqrt.pop %v417
    %v450 = vrsqrt.pop %v418
    %v451 = vrsqrt.pop %v419
    %v452 = vrsqrt.pop %v420
    %v453 = vrsqrt.pop %v421
    %v454 = vrsqrt.pop %v422
    %v455 = vrsqrt.pop %v423
    %v456 = vmax.f32 %v233, 1e-24
    %v457 = vmax.f32 %v235, 1e-24
    %v458 = vmax.f32 %v237, 1e-24
    %v459 = vmax.f32 %v239, 1e-24
    %v460 = vmax.f32 %v241, 1e-24
    %v461 = vmax.f32 %v243, 1e-24
    %v462 = vmax.f32 %v245, 1e-24
    %v463 = vmax.f32 %v247, 1e-24
    %v464 = vmax.f32 %v249, 1e-24
    %v465 = vmax.f32 %v251, 1e-24
    %v466 = vmax.f32 %v253, 1e-24
    %v467 = vmax.f32 %v255, 1e-24
    %v468 = vmax.f32 %v257, 1e-24
    %v469 = vmax.f32 %v259, 1e-24
    %v470 = vmax.f32 %v261, 1e-24
    %v471 = vmax.f32 %v263, 1e-24
    %v472 = vmax.f32 %v265, 1e-24
    %v473 = vmax.f32 %v267, 1e-24
    %v474 = vmax.f32 %v269, 1e-24
    %v475 = vmax.f32 %v271, 1e-24
    %v476 = vmax.f32 %v273, 1e-24
    %v477 = vmax.f32 %v275, 1e-24
    %v478 = vmax.f32 %v277, 1e-24
    %v479 = vmax.f32 %v279, 1e-24
    %v480 = vmax.f32 %v281, 1e-24
    %v481 = vmax.f32 %v283, 1e-24
    %v482 = vmax.f32 %v285, 1e-24
    %v483 = vmax.f32 %v287, 1e-24
    %v484 = vmax.f32 %v289, 1e-24
    %v485 = vmax.f32 %v291, 1e-24
    %v486 = vmax.f32 %v293, 1e-24
    %v487 = vmax.f32 %v295, 1e-24
    %v488 = vrsqrt.pop %v456
    %v489 = vrsqrt.pop %v457
    %v490 = vrsqrt.pop %v458
    %v491 = vrsqrt.pop %v459
    %v492 = vrsqrt.pop %v460
    %v493 = vrsqrt.pop %v461
    %v494 = vrsqrt.pop %v462
    %v495 = vrsqrt.pop %v463
    %v496 = vrsqrt.pop %v464
    %v497 = vrsqrt.pop %v465
    %v498 = vrsqrt.pop %v466
    %v499 = vrsqrt.pop %v467
    %v500 = vrsqrt.pop %v468
    %v501 = vrsqrt.pop %v469
    %v502 = vrsqrt.pop %v470
    %v503 = vrsqrt.pop %v471
    %v504 = vrsqrt.pop %v472
    %v505 = vrsqrt.pop %v473
    %v506 = vrsqrt.pop %v474
    %v507 = vrsqrt.pop %v475
    %v508 = vrsqrt.pop %v476
    %v509 = vrsqrt.pop %v477
    %v510 = vrsqrt.pop %v478
    %v511 = vrsqrt.pop %v479
    %v512 = vrsqrt.pop %v480
    %v513 = vrsqrt.pop %v481
    %v514 = vrsqrt.pop %v482
    %v515 = vrsqrt.pop %v483
    %v516 = vrsqrt.pop %v484
    %v517 = vrsqrt.pop %v485
    %v518 = vrsqrt.pop %v486
    %v519 = vrsqrt.pop %v487
    %v520 = vmul.f32 %v424, %v488
    %v521 = vmul.f32 %v425, %v489
    %v522 = vmul.f32 %v426, %v490
    %v523 = vmul.f32 %v427, %v491
    %v524 = vmul.f32 %v428, %v492
    %v525 = vmul.f32 %v429, %v493
    %v526 = vmul.f32 %v430, %v494
    %v527 = vmul.f32 %v431, %v495
    %v528 = vmul.f32 %v432, %v496
    %v529 = vmul.f32 %v433, %v497
    %v530 = vmul.f32 %v434, %v498
    %v531 = vmul.f32 %v435, %v499
    %v532 = vmul.f32 %v436, %v500
    %v533 = vmul.f32 %v437, %v501
    %v534 = vmul.f32 %v438, %v502
    %v535 = vmul.f32 %v439, %v503
    %v536 = vmul.f32 %v440, %v504
    %v537 = vmul.f32 %v441, %v505
    %v538 = vmul.f32 %v442, %v506
    %v539 = vmul.f32 %v443, %v507
    %v540 = vmul.f32 %v444, %v508
    %v541 = vmul.f32 %v445, %v509
    %v542 = vmul.f32 %v446, %v510
    %v543 = vmul.f32 %v447, %v511
    %v544 = vmul.f32 %v448, %v512
    %v545 = vmul.f32 %v449, %v513
    %v546 = vmul.f32 %v450, %v514
    %v547 = vmul.f32 %v451, %v515
    %v548 = vmul.f32 %v452, %v516
    %v549 = vmul.f32 %v453, %v517
    %v550 = vmul.f32 %v454, %v518
    %v551 = vmul.f32 %v455, %v519
    %v552 = vmul.f32 %v329, %v520
    %v553 = vmul.f32 %v331, %v521
    %v554 = vmul.f32 %v333, %v522
    %v555 = vmul.f32 %v335, %v523
    %v556 = vmul.f32 %v337, %v524
    %v557 = vmul.f32 %v339, %v525
    %v558 = vmul.f32 %v341, %v526
    %v559 = vmul.f32 %v343, %v527
    %v560 = vmul.f32 %v345, %v528
    %v561 = vmul.f32 %v347, %v529
    %v562 = vmul.f32 %v349, %v530
    %v563 = vmul.f32 %v351, %v531
    %v564 = vmul.f32 %v353, %v532
    %v565 = vmul.f32 %v355, %v533
    %v566 = vmul.f32 %v357, %v534
    %v567 = vmul.f32 %v359, %v535
    %v568 = vmul.f32 %v361, %v536
    %v569 = vmul.f32 %v363, %v537
    %v570 = vmul.f32 %v365, %v538
    %v571 = vmul.f32 %v367, %v539
    %v572 = vmul.f32 %v369, %v540
    %v573 = vmul.f32 %v371, %v541
    %v574 = vmul.f32 %v373, %v542
    %v575 = vmul.f32 %v375, %v543
    %v576 = vmul.f32 %v377, %v544
    %v577 = vmul.f32 %v379, %v545
    %v578 = vmul.f32 %v381, %v546
    %v579 = vmul.f32 %v383, %v547
    %v580 = vmul.f32 %v385, %v548
    %v581 = vmul.f32 %v387, %v549
    %v582 = vmul.f32 %v389, %v550
    %v583 = vmul.f32 %v391, %v551
    %v584 = vrsqrt.pop %v137
    %v585 = vmul.f32 %v137, %v584
    %vm586 = vcmp.eq.f32.partialorder %v137, inf
    %v587 = vsel %vm586, %v137, %v585
    %vm588 = vcmp.eq.f32.partialorder %v137, 0.0
    %v589 = vand.u32 %v137, 2147483648
    %v590 = vsel %vm588, %v589, %v587
    %v591 = vrsqrt.pop %v139
    %v592 = vmul.f32 %v139, %v591
    %vm593 = vcmp.eq.f32.partialorder %v139, inf
    %v594 = vsel %vm593, %v139, %v592
    %vm595 = vcmp.eq.f32.partialorder %v139, 0.0
    %v596 = vand.u32 %v139, 2147483648
    %v597 = vsel %vm595, %v596, %v594
    %v598 = vrsqrt.pop %v141
    %v599 = vmul.f32 %v141, %v598
    %vm600 = vcmp.eq.f32.partialorder %v141, inf
    %v601 = vsel %vm600, %v141, %v599
    %vm602 = vcmp.eq.f32.partialorder %v141, 0.0
    %v603 = vand.u32 %v141, 2147483648
    %v604 = vsel %vm602, %v603, %v601
    %v605 = vrsqrt.pop %v143
    %v606 = vmul.f32 %v143, %v605
    %vm607 = vcmp.eq.f32.partialorder %v143, inf
    %v608 = vsel %vm607, %v143, %v606
    %vm609 = vcmp.eq.f32.partialorder %v143, 0.0
    %v610 = vand.u32 %v143, 2147483648
    %v611 = vsel %vm609, %v610, %v608
    %v612 = vrsqrt.pop %v145
    %v613 = vmul.f32 %v145, %v612
    %vm614 = vcmp.eq.f32.partialorder %v145, inf
    %v615 = vsel %vm614, %v145, %v613
    %vm616 = vcmp.eq.f32.partialorder %v145, 0.0
    %v617 = vand.u32 %v145, 2147483648
    %v618 = vsel %vm616, %v617, %v615
    %v619 = vrsqrt.pop %v147
    %v620 = vmul.f32 %v147, %v619
    %vm621 = vcmp.eq.f32.partialorder %v147, inf
    %v622 = vsel %vm621, %v147, %v620
    %vm623 = vcmp.eq.f32.partialorder %v147, 0.0
    %v624 = vand.u32 %v147, 2147483648
    %v625 = vsel %vm623, %v624, %v622
    %v626 = vrsqrt.pop %v149
    %v627 = vmul.f32 %v149, %v626
    %vm628 = vcmp.eq.f32.partialorder %v149, inf
    %v629 = vsel %vm628, %v149, %v627
    %vm630 = vcmp.eq.f32.partialorder %v149, 0.0
    %v631 = vand.u32 %v149, 2147483648
    %v632 = vsel %vm630, %v631, %v629
    %v633 = vrsqrt.pop %v151
    %v634 = vmul.f32 %v151, %v633
    %vm635 = vcmp.eq.f32.partialorder %v151, inf
    %v636 = vsel %vm635, %v151, %v634
    %vm637 = vcmp.eq.f32.partialorder %v151, 0.0
    %v638 = vand.u32 %v151, 2147483648
    %v639 = vsel %vm637, %v638, %v636
    %v640 = vrsqrt.pop %v153
    %v641 = vmul.f32 %v153, %v640
    %vm642 = vcmp.eq.f32.partialorder %v153, inf
    %v643 = vsel %vm642, %v153, %v641
    %vm644 = vcmp.eq.f32.partialorder %v153, 0.0
    %v645 = vand.u32 %v153, 2147483648
    %v646 = vsel %vm644, %v645, %v643
    %v647 = vrsqrt.pop %v155
    %v648 = vmul.f32 %v155, %v647
    %vm649 = vcmp.eq.f32.partialorder %v155, inf
    %v650 = vsel %vm649, %v155, %v648
    %vm651 = vcmp.eq.f32.partialorder %v155, 0.0
    %v652 = vand.u32 %v155, 2147483648
    %v653 = vsel %vm651, %v652, %v650
    %v654 = vrsqrt.pop %v157
    %v655 = vmul.f32 %v157, %v654
    %vm656 = vcmp.eq.f32.partialorder %v157, inf
    %v657 = vsel %vm656, %v157, %v655
    %vm658 = vcmp.eq.f32.partialorder %v157, 0.0
    %v659 = vand.u32 %v157, 2147483648
    %v660 = vsel %vm658, %v659, %v657
    %v661 = vrsqrt.pop %v159
    %v662 = vmul.f32 %v159, %v661
    %vm663 = vcmp.eq.f32.partialorder %v159, inf
    %v664 = vsel %vm663, %v159, %v662
    %vm665 = vcmp.eq.f32.partialorder %v159, 0.0
    %v666 = vand.u32 %v159, 2147483648
    %v667 = vsel %vm665, %v666, %v664
    %v668 = vrsqrt.pop %v161
    %v669 = vmul.f32 %v161, %v668
    %vm670 = vcmp.eq.f32.partialorder %v161, inf
    %v671 = vsel %vm670, %v161, %v669
    %vm672 = vcmp.eq.f32.partialorder %v161, 0.0
    %v673 = vand.u32 %v161, 2147483648
    %v674 = vsel %vm672, %v673, %v671
    %v675 = vrsqrt.pop %v163
    %v676 = vmul.f32 %v163, %v675
    %vm677 = vcmp.eq.f32.partialorder %v163, inf
    %v678 = vsel %vm677, %v163, %v676
    %vm679 = vcmp.eq.f32.partialorder %v163, 0.0
    %v680 = vand.u32 %v163, 2147483648
    %v681 = vsel %vm679, %v680, %v678
    %v682 = vrsqrt.pop %v165
    %v683 = vmul.f32 %v165, %v682
    %vm684 = vcmp.eq.f32.partialorder %v165, inf
    %v685 = vsel %vm684, %v165, %v683
    %vm686 = vcmp.eq.f32.partialorder %v165, 0.0
    %v687 = vand.u32 %v165, 2147483648
    %v688 = vsel %vm686, %v687, %v685
    %v689 = vrsqrt.pop %v167
    %v690 = vmul.f32 %v167, %v689
    %vm691 = vcmp.eq.f32.partialorder %v167, inf
    %v692 = vsel %vm691, %v167, %v690
    %vm693 = vcmp.eq.f32.partialorder %v167, 0.0
    %v694 = vand.u32 %v167, 2147483648
    %v695 = vsel %vm693, %v694, %v692
    %v696 = vrsqrt.pop %v169
    %v697 = vmul.f32 %v169, %v696
    %vm698 = vcmp.eq.f32.partialorder %v169, inf
    %v699 = vsel %vm698, %v169, %v697
    %vm700 = vcmp.eq.f32.partialorder %v169, 0.0
    %v701 = vand.u32 %v169, 2147483648
    %v702 = vsel %vm700, %v701, %v699
    %v703 = vrsqrt.pop %v171
    %v704 = vmul.f32 %v171, %v703
    %vm705 = vcmp.eq.f32.partialorder %v171, inf
    %v706 = vsel %vm705, %v171, %v704
    %vm707 = vcmp.eq.f32.partialorder %v171, 0.0
    %v708 = vand.u32 %v171, 2147483648
    %v709 = vsel %vm707, %v708, %v706
    %v710 = vrsqrt.pop %v173
    %v711 = vmul.f32 %v173, %v710
    %vm712 = vcmp.eq.f32.partialorder %v173, inf
    %v713 = vsel %vm712, %v173, %v711
    %vm714 = vcmp.eq.f32.partialorder %v173, 0.0
    %v715 = vand.u32 %v173, 2147483648
    %v716 = vsel %vm714, %v715, %v713
    %v717 = vrsqrt.pop %v175
    %v718 = vmul.f32 %v175, %v717
    %vm719 = vcmp.eq.f32.partialorder %v175, inf
    %v720 = vsel %vm719, %v175, %v718
    %vm721 = vcmp.eq.f32.partialorder %v175, 0.0
    %v722 = vand.u32 %v175, 2147483648
    %v723 = vsel %vm721, %v722, %v720
    %v724 = vrsqrt.pop %v177
    %v725 = vmul.f32 %v177, %v724
    %vm726 = vcmp.eq.f32.partialorder %v177, inf
    %v727 = vsel %vm726, %v177, %v725
    %vm728 = vcmp.eq.f32.partialorder %v177, 0.0
    %v729 = vand.u32 %v177, 2147483648
    %v730 = vsel %vm728, %v729, %v727
    %v731 = vrsqrt.pop %v179
    %v732 = vmul.f32 %v179, %v731
    %vm733 = vcmp.eq.f32.partialorder %v179, inf
    %v734 = vsel %vm733, %v179, %v732
    %vm735 = vcmp.eq.f32.partialorder %v179, 0.0
    %v736 = vand.u32 %v179, 2147483648
    %v737 = vsel %vm735, %v736, %v734
    %v738 = vrsqrt.pop %v181
    %v739 = vmul.f32 %v181, %v738
    %vm740 = vcmp.eq.f32.partialorder %v181, inf
    %v741 = vsel %vm740, %v181, %v739
    %vm742 = vcmp.eq.f32.partialorder %v181, 0.0
    %v743 = vand.u32 %v181, 2147483648
    %v744 = vsel %vm742, %v743, %v741
    %v745 = vrsqrt.pop %v183
    %v746 = vmul.f32 %v183, %v745
    %vm747 = vcmp.eq.f32.partialorder %v183, inf
    %v748 = vsel %vm747, %v183, %v746
    %vm749 = vcmp.eq.f32.partialorder %v183, 0.0
    %v750 = vand.u32 %v183, 2147483648
    %v751 = vsel %vm749, %v750, %v748
    %v752 = vrsqrt.pop %v185
    %v753 = vmul.f32 %v185, %v752
    %vm754 = vcmp.eq.f32.partialorder %v185, inf
    %v755 = vsel %vm754, %v185, %v753
    %vm756 = vcmp.eq.f32.partialorder %v185, 0.0
    %v757 = vand.u32 %v185, 2147483648
    %v758 = vsel %vm756, %v757, %v755
    %v759 = vrsqrt.pop %v187
    %v760 = vmul.f32 %v187, %v759
    %vm761 = vcmp.eq.f32.partialorder %v187, inf
    %v762 = vsel %vm761, %v187, %v760
    %vm763 = vcmp.eq.f32.partialorder %v187, 0.0
    %v764 = vand.u32 %v187, 2147483648
    %v765 = vsel %vm763, %v764, %v762
    %v766 = vrsqrt.pop %v189
    %v767 = vmul.f32 %v189, %v766
    %vm768 = vcmp.eq.f32.partialorder %v189, inf
    %v769 = vsel %vm768, %v189, %v767
    %vm770 = vcmp.eq.f32.partialorder %v189, 0.0
    %v771 = vand.u32 %v189, 2147483648
    %v772 = vsel %vm770, %v771, %v769
    %v773 = vrsqrt.pop %v191
    %v774 = vmul.f32 %v191, %v773
    %vm775 = vcmp.eq.f32.partialorder %v191, inf
    %v776 = vsel %vm775, %v191, %v774
    %vm777 = vcmp.eq.f32.partialorder %v191, 0.0
    %v778 = vand.u32 %v191, 2147483648
    %v779 = vsel %vm777, %v778, %v776
    %v780 = vrsqrt.pop %v193
    %v781 = vmul.f32 %v193, %v780
    %vm782 = vcmp.eq.f32.partialorder %v193, inf
    %v783 = vsel %vm782, %v193, %v781
    %vm784 = vcmp.eq.f32.partialorder %v193, 0.0
    %v785 = vand.u32 %v193, 2147483648
    %v786 = vsel %vm784, %v785, %v783
    %v787 = vrsqrt.pop %v195
    %v788 = vmul.f32 %v195, %v787
    %vm789 = vcmp.eq.f32.partialorder %v195, inf
    %v790 = vsel %vm789, %v195, %v788
    %vm791 = vcmp.eq.f32.partialorder %v195, 0.0
    %v792 = vand.u32 %v195, 2147483648
    %v793 = vsel %vm791, %v792, %v790
    %v794 = vrsqrt.pop %v197
    %v795 = vmul.f32 %v197, %v794
    %vm796 = vcmp.eq.f32.partialorder %v197, inf
    %v797 = vsel %vm796, %v197, %v795
    %vm798 = vcmp.eq.f32.partialorder %v197, 0.0
    %v799 = vand.u32 %v197, 2147483648
    %v800 = vsel %vm798, %v799, %v797
    %v801 = vrsqrt.pop %v199
    %v802 = vmul.f32 %v199, %v801
    %vm803 = vcmp.eq.f32.partialorder %v199, inf
    %v804 = vsel %vm803, %v199, %v802
    %vm805 = vcmp.eq.f32.partialorder %v199, 0.0
    %v806 = vand.u32 %v199, 2147483648
    %v807 = vsel %vm805, %v806, %v804
    %v808 = vmul.f32 %v590, %v424
    %v809 = vmul.f32 %v597, %v425
    %v810 = vmul.f32 %v604, %v426
    %v811 = vmul.f32 %v611, %v427
    %v812 = vmul.f32 %v618, %v428
    %v813 = vmul.f32 %v625, %v429
    %v814 = vmul.f32 %v632, %v430
    %v815 = vmul.f32 %v639, %v431
    %v816 = vmul.f32 %v646, %v432
    %v817 = vmul.f32 %v653, %v433
    %v818 = vmul.f32 %v660, %v434
    %v819 = vmul.f32 %v667, %v435
    %v820 = vmul.f32 %v674, %v436
    %v821 = vmul.f32 %v681, %v437
    %v822 = vmul.f32 %v688, %v438
    %v823 = vmul.f32 %v695, %v439
    %v824 = vmul.f32 %v702, %v440
    %v825 = vmul.f32 %v709, %v441
    %v826 = vmul.f32 %v716, %v442
    %v827 = vmul.f32 %v723, %v443
    %v828 = vmul.f32 %v730, %v444
    %v829 = vmul.f32 %v737, %v445
    %v830 = vmul.f32 %v744, %v446
    %v831 = vmul.f32 %v751, %v447
    %v832 = vmul.f32 %v758, %v448
    %v833 = vmul.f32 %v765, %v449
    %v834 = vmul.f32 %v772, %v450
    %v835 = vmul.f32 %v779, %v451
    %v836 = vmul.f32 %v786, %v452
    %v837 = vmul.f32 %v793, %v453
    %v838 = vmul.f32 %v800, %v454
    %v839 = vmul.f32 %v807, %v455
    %v840 = vrsqrt.pop %v233
    %v841 = vmul.f32 %v233, %v840
    %vm842 = vcmp.eq.f32.partialorder %v233, inf
    %v843 = vsel %vm842, %v233, %v841
    %vm844 = vcmp.eq.f32.partialorder %v233, 0.0
    %v845 = vand.u32 %v233, 2147483648
    %v846 = vsel %vm844, %v845, %v843
    %v847 = vrsqrt.pop %v235
    %v848 = vmul.f32 %v235, %v847
    %vm849 = vcmp.eq.f32.partialorder %v235, inf
    %v850 = vsel %vm849, %v235, %v848
    %vm851 = vcmp.eq.f32.partialorder %v235, 0.0
    %v852 = vand.u32 %v235, 2147483648
    %v853 = vsel %vm851, %v852, %v850
    %v854 = vrsqrt.pop %v237
    %v855 = vmul.f32 %v237, %v854
    %vm856 = vcmp.eq.f32.partialorder %v237, inf
    %v857 = vsel %vm856, %v237, %v855
    %vm858 = vcmp.eq.f32.partialorder %v237, 0.0
    %v859 = vand.u32 %v237, 2147483648
    %v860 = vsel %vm858, %v859, %v857
    %v861 = vrsqrt.pop %v239
    %v862 = vmul.f32 %v239, %v861
    %vm863 = vcmp.eq.f32.partialorder %v239, inf
    %v864 = vsel %vm863, %v239, %v862
    %vm865 = vcmp.eq.f32.partialorder %v239, 0.0
    %v866 = vand.u32 %v239, 2147483648
    %v867 = vsel %vm865, %v866, %v864
    %v868 = vrsqrt.pop %v241
    %v869 = vmul.f32 %v241, %v868
    %vm870 = vcmp.eq.f32.partialorder %v241, inf
    %v871 = vsel %vm870, %v241, %v869
    %vm872 = vcmp.eq.f32.partialorder %v241, 0.0
    %v873 = vand.u32 %v241, 2147483648
    %v874 = vsel %vm872, %v873, %v871
    %v875 = vrsqrt.pop %v243
    %v876 = vmul.f32 %v243, %v875
    %vm877 = vcmp.eq.f32.partialorder %v243, inf
    %v878 = vsel %vm877, %v243, %v876
    %vm879 = vcmp.eq.f32.partialorder %v243, 0.0
    %v880 = vand.u32 %v243, 2147483648
    %v881 = vsel %vm879, %v880, %v878
    %v882 = vrsqrt.pop %v245
    %v883 = vmul.f32 %v245, %v882
    %vm884 = vcmp.eq.f32.partialorder %v245, inf
    %v885 = vsel %vm884, %v245, %v883
    %vm886 = vcmp.eq.f32.partialorder %v245, 0.0
    %v887 = vand.u32 %v245, 2147483648
    %v888 = vsel %vm886, %v887, %v885
    %v889 = vrsqrt.pop %v247
    %v890 = vmul.f32 %v247, %v889
    %vm891 = vcmp.eq.f32.partialorder %v247, inf
    %v892 = vsel %vm891, %v247, %v890
    %vm893 = vcmp.eq.f32.partialorder %v247, 0.0
    %v894 = vand.u32 %v247, 2147483648
    %v895 = vsel %vm893, %v894, %v892
    %v896 = vrsqrt.pop %v249
    %v897 = vmul.f32 %v249, %v896
    %vm898 = vcmp.eq.f32.partialorder %v249, inf
    %v899 = vsel %vm898, %v249, %v897
    %vm900 = vcmp.eq.f32.partialorder %v249, 0.0
    %v901 = vand.u32 %v249, 2147483648
    %v902 = vsel %vm900, %v901, %v899
    %v903 = vrsqrt.pop %v251
    %v904 = vmul.f32 %v251, %v903
    %vm905 = vcmp.eq.f32.partialorder %v251, inf
    %v906 = vsel %vm905, %v251, %v904
    %vm907 = vcmp.eq.f32.partialorder %v251, 0.0
    %v908 = vand.u32 %v251, 2147483648
    %v909 = vsel %vm907, %v908, %v906
    %v910 = vrsqrt.pop %v253
    %v911 = vmul.f32 %v253, %v910
    %vm912 = vcmp.eq.f32.partialorder %v253, inf
    %v913 = vsel %vm912, %v253, %v911
    %vm914 = vcmp.eq.f32.partialorder %v253, 0.0
    %v915 = vand.u32 %v253, 2147483648
    %v916 = vsel %vm914, %v915, %v913
    %v917 = vrsqrt.pop %v255
    %v918 = vmul.f32 %v255, %v917
    %vm919 = vcmp.eq.f32.partialorder %v255, inf
    %v920 = vsel %vm919, %v255, %v918
    %vm921 = vcmp.eq.f32.partialorder %v255, 0.0
    %v922 = vand.u32 %v255, 2147483648
    %v923 = vsel %vm921, %v922, %v920
    %v924 = vrsqrt.pop %v257
    %v925 = vmul.f32 %v257, %v924
    %vm926 = vcmp.eq.f32.partialorder %v257, inf
    %v927 = vsel %vm926, %v257, %v925
    %vm928 = vcmp.eq.f32.partialorder %v257, 0.0
    %v929 = vand.u32 %v257, 2147483648
    %v930 = vsel %vm928, %v929, %v927
    %v931 = vrsqrt.pop %v259
    %v932 = vmul.f32 %v259, %v931
    %vm933 = vcmp.eq.f32.partialorder %v259, inf
    %v934 = vsel %vm933, %v259, %v932
    %vm935 = vcmp.eq.f32.partialorder %v259, 0.0
    %v936 = vand.u32 %v259, 2147483648
    %v937 = vsel %vm935, %v936, %v934
    %v938 = vrsqrt.pop %v261
    %v939 = vmul.f32 %v261, %v938
    %vm940 = vcmp.eq.f32.partialorder %v261, inf
    %v941 = vsel %vm940, %v261, %v939
    %vm942 = vcmp.eq.f32.partialorder %v261, 0.0
    %v943 = vand.u32 %v261, 2147483648
    %v944 = vsel %vm942, %v943, %v941
    %v945 = vrsqrt.pop %v263
    %v946 = vmul.f32 %v263, %v945
    %vm947 = vcmp.eq.f32.partialorder %v263, inf
    %v948 = vsel %vm947, %v263, %v946
    %vm949 = vcmp.eq.f32.partialorder %v263, 0.0
    %v950 = vand.u32 %v263, 2147483648
    %v951 = vsel %vm949, %v950, %v948
    %v952 = vrsqrt.pop %v265
    %v953 = vmul.f32 %v265, %v952
    %vm954 = vcmp.eq.f32.partialorder %v265, inf
    %v955 = vsel %vm954, %v265, %v953
    %vm956 = vcmp.eq.f32.partialorder %v265, 0.0
    %v957 = vand.u32 %v265, 2147483648
    %v958 = vsel %vm956, %v957, %v955
    %v959 = vrsqrt.pop %v267
    %v960 = vmul.f32 %v267, %v959
    %vm961 = vcmp.eq.f32.partialorder %v267, inf
    %v962 = vsel %vm961, %v267, %v960
    %vm963 = vcmp.eq.f32.partialorder %v267, 0.0
    %v964 = vand.u32 %v267, 2147483648
    %v965 = vsel %vm963, %v964, %v962
    %v966 = vrsqrt.pop %v269
    %v967 = vmul.f32 %v269, %v966
    %vm968 = vcmp.eq.f32.partialorder %v269, inf
    %v969 = vsel %vm968, %v269, %v967
    %vm970 = vcmp.eq.f32.partialorder %v269, 0.0
    %v971 = vand.u32 %v269, 2147483648
    %v972 = vsel %vm970, %v971, %v969
    %v973 = vrsqrt.pop %v271
    %v974 = vmul.f32 %v271, %v973
    %vm975 = vcmp.eq.f32.partialorder %v271, inf
    %v976 = vsel %vm975, %v271, %v974
    %vm977 = vcmp.eq.f32.partialorder %v271, 0.0
    %v978 = vand.u32 %v271, 2147483648
    %v979 = vsel %vm977, %v978, %v976
    %v980 = vrsqrt.pop %v273
    %v981 = vmul.f32 %v273, %v980
    %vm982 = vcmp.eq.f32.partialorder %v273, inf
    %v983 = vsel %vm982, %v273, %v981
    %vm984 = vcmp.eq.f32.partialorder %v273, 0.0
    %v985 = vand.u32 %v273, 2147483648
    %v986 = vsel %vm984, %v985, %v983
    %v987 = vrsqrt.pop %v275
    %v988 = vmul.f32 %v275, %v987
    %vm989 = vcmp.eq.f32.partialorder %v275, inf
    %v990 = vsel %vm989, %v275, %v988
    %vm991 = vcmp.eq.f32.partialorder %v275, 0.0
    %v992 = vand.u32 %v275, 2147483648
    %v993 = vsel %vm991, %v992, %v990
    %v994 = vrsqrt.pop %v277
    %v995 = vmul.f32 %v277, %v994
    %vm996 = vcmp.eq.f32.partialorder %v277, inf
    %v997 = vsel %vm996, %v277, %v995
    %vm998 = vcmp.eq.f32.partialorder %v277, 0.0
    %v999 = vand.u32 %v277, 2147483648
    %v1000 = vsel %vm998, %v999, %v997
    %v1001 = vrsqrt.pop %v279
    %v1002 = vmul.f32 %v279, %v1001
    %vm1003 = vcmp.eq.f32.partialorder %v279, inf
    %v1004 = vsel %vm1003, %v279, %v1002
    %vm1005 = vcmp.eq.f32.partialorder %v279, 0.0
    %v1006 = vand.u32 %v279, 2147483648
    %v1007 = vsel %vm1005, %v1006, %v1004
    %v1008 = vrsqrt.pop %v281
    %v1009 = vmul.f32 %v281, %v1008
    %vm1010 = vcmp.eq.f32.partialorder %v281, inf
    %v1011 = vsel %vm1010, %v281, %v1009
    %vm1012 = vcmp.eq.f32.partialorder %v281, 0.0
    %v1013 = vand.u32 %v281, 2147483648
    %v1014 = vsel %vm1012, %v1013, %v1011
    %v1015 = vrsqrt.pop %v283
    %v1016 = vmul.f32 %v283, %v1015
    %vm1017 = vcmp.eq.f32.partialorder %v283, inf
    %v1018 = vsel %vm1017, %v283, %v1016
    %vm1019 = vcmp.eq.f32.partialorder %v283, 0.0
    %v1020 = vand.u32 %v283, 2147483648
    %v1021 = vsel %vm1019, %v1020, %v1018
    %v1022 = vrsqrt.pop %v285
    %v1023 = vmul.f32 %v285, %v1022
    %vm1024 = vcmp.eq.f32.partialorder %v285, inf
    %v1025 = vsel %vm1024, %v285, %v1023
    %vm1026 = vcmp.eq.f32.partialorder %v285, 0.0
    %v1027 = vand.u32 %v285, 2147483648
    %v1028 = vsel %vm1026, %v1027, %v1025
    %v1029 = vrsqrt.pop %v287
    %v1030 = vmul.f32 %v287, %v1029
    %vm1031 = vcmp.eq.f32.partialorder %v287, inf
    %v1032 = vsel %vm1031, %v287, %v1030
    %vm1033 = vcmp.eq.f32.partialorder %v287, 0.0
    %v1034 = vand.u32 %v287, 2147483648
    %v1035 = vsel %vm1033, %v1034, %v1032
    %v1036 = vrsqrt.pop %v289
    %v1037 = vmul.f32 %v289, %v1036
    %vm1038 = vcmp.eq.f32.partialorder %v289, inf
    %v1039 = vsel %vm1038, %v289, %v1037
    %vm1040 = vcmp.eq.f32.partialorder %v289, 0.0
    %v1041 = vand.u32 %v289, 2147483648
    %v1042 = vsel %vm1040, %v1041, %v1039
    %v1043 = vrsqrt.pop %v291
    %v1044 = vmul.f32 %v291, %v1043
    %vm1045 = vcmp.eq.f32.partialorder %v291, inf
    %v1046 = vsel %vm1045, %v291, %v1044
    %vm1047 = vcmp.eq.f32.partialorder %v291, 0.0
    %v1048 = vand.u32 %v291, 2147483648
    %v1049 = vsel %vm1047, %v1048, %v1046
    %v1050 = vrsqrt.pop %v293
    %v1051 = vmul.f32 %v293, %v1050
    %vm1052 = vcmp.eq.f32.partialorder %v293, inf
    %v1053 = vsel %vm1052, %v293, %v1051
    %vm1054 = vcmp.eq.f32.partialorder %v293, 0.0
    %v1055 = vand.u32 %v293, 2147483648
    %v1056 = vsel %vm1054, %v1055, %v1053
    %v1057 = vrsqrt.pop %v295
    %v1058 = vmul.f32 %v295, %v1057
    %vm1059 = vcmp.eq.f32.partialorder %v295, inf
    %v1060 = vsel %vm1059, %v295, %v1058
    %vm1061 = vcmp.eq.f32.partialorder %v295, 0.0
    %v1062 = vand.u32 %v295, 2147483648
    %v1063 = vsel %vm1061, %v1062, %v1060
    %v1064 = vmul.f32 %v846, %v488
    %v1065 = vmul.f32 %v853, %v489
    %v1066 = vmul.f32 %v860, %v490
    %v1067 = vmul.f32 %v867, %v491
    %v1068 = vmul.f32 %v874, %v492
    %v1069 = vmul.f32 %v881, %v493
    %v1070 = vmul.f32 %v888, %v494
    %v1071 = vmul.f32 %v895, %v495
    %v1072 = vmul.f32 %v902, %v496
    %v1073 = vmul.f32 %v909, %v497
    %v1074 = vmul.f32 %v916, %v498
    %v1075 = vmul.f32 %v923, %v499
    %v1076 = vmul.f32 %v930, %v500
    %v1077 = vmul.f32 %v937, %v501
    %v1078 = vmul.f32 %v944, %v502
    %v1079 = vmul.f32 %v951, %v503
    %v1080 = vmul.f32 %v958, %v504
    %v1081 = vmul.f32 %v965, %v505
    %v1082 = vmul.f32 %v972, %v506
    %v1083 = vmul.f32 %v979, %v507
    %v1084 = vmul.f32 %v986, %v508
    %v1085 = vmul.f32 %v993, %v509
    %v1086 = vmul.f32 %v1000, %v510
    %v1087 = vmul.f32 %v1007, %v511
    %v1088 = vmul.f32 %v1014, %v512
    %v1089 = vmul.f32 %v1021, %v513
    %v1090 = vmul.f32 %v1028, %v514
    %v1091 = vmul.f32 %v1035, %v515
    %v1092 = vmul.f32 %v1042, %v516
    %v1093 = vmul.f32 %v1049, %v517
    %v1094 = vmul.f32 %v1056, %v518
    %v1095 = vmul.f32 %v1063, %v519
    %v1096 = vmax.f32 %v808, 1e-08
    %v1097 = vmax.f32 %v809, 1e-08
    %v1098 = vmax.f32 %v810, 1e-08
    %v1099 = vmax.f32 %v811, 1e-08
    %v1100 = vmax.f32 %v812, 1e-08
    %v1101 = vmax.f32 %v813, 1e-08
    %v1102 = vmax.f32 %v814, 1e-08
    %v1103 = vmax.f32 %v815, 1e-08
    %v1104 = vmax.f32 %v816, 1e-08
    %v1105 = vmax.f32 %v817, 1e-08
    %v1106 = vmax.f32 %v818, 1e-08
    %v1107 = vmax.f32 %v819, 1e-08
    %v1108 = vmax.f32 %v820, 1e-08
    %v1109 = vmax.f32 %v821, 1e-08
    %v1110 = vmax.f32 %v822, 1e-08
    %v1111 = vmax.f32 %v823, 1e-08
    %v1112 = vmax.f32 %v824, 1e-08
    %v1113 = vmax.f32 %v825, 1e-08
    %v1114 = vmax.f32 %v826, 1e-08
    %v1115 = vmax.f32 %v827, 1e-08
    %v1116 = vmax.f32 %v828, 1e-08
    %v1117 = vmax.f32 %v829, 1e-08
    %v1118 = vmax.f32 %v830, 1e-08
    %v1119 = vmax.f32 %v831, 1e-08
    %v1120 = vmax.f32 %v832, 1e-08
    %v1121 = vmax.f32 %v833, 1e-08
    %v1122 = vmax.f32 %v834, 1e-08
    %v1123 = vmax.f32 %v835, 1e-08
    %v1124 = vmax.f32 %v836, 1e-08
    %v1125 = vmax.f32 %v837, 1e-08
    %v1126 = vmax.f32 %v838, 1e-08
    %v1127 = vmax.f32 %v839, 1e-08
    %v1128 = vmax.f32 %v1064, 1e-08
    %v1129 = vmax.f32 %v1065, 1e-08
    %v1130 = vmax.f32 %v1066, 1e-08
    %v1131 = vmax.f32 %v1067, 1e-08
    %v1132 = vmax.f32 %v1068, 1e-08
    %v1133 = vmax.f32 %v1069, 1e-08
    %v1134 = vmax.f32 %v1070, 1e-08
    %v1135 = vmax.f32 %v1071, 1e-08
    %v1136 = vmax.f32 %v1072, 1e-08
    %v1137 = vmax.f32 %v1073, 1e-08
    %v1138 = vmax.f32 %v1074, 1e-08
    %v1139 = vmax.f32 %v1075, 1e-08
    %v1140 = vmax.f32 %v1076, 1e-08
    %v1141 = vmax.f32 %v1077, 1e-08
    %v1142 = vmax.f32 %v1078, 1e-08
    %v1143 = vmax.f32 %v1079, 1e-08
    %v1144 = vmax.f32 %v1080, 1e-08
    %v1145 = vmax.f32 %v1081, 1e-08
    %v1146 = vmax.f32 %v1082, 1e-08
    %v1147 = vmax.f32 %v1083, 1e-08
    %v1148 = vmax.f32 %v1084, 1e-08
    %v1149 = vmax.f32 %v1085, 1e-08
    %v1150 = vmax.f32 %v1086, 1e-08
    %v1151 = vmax.f32 %v1087, 1e-08
    %v1152 = vmax.f32 %v1088, 1e-08
    %v1153 = vmax.f32 %v1089, 1e-08
    %v1154 = vmax.f32 %v1090, 1e-08
    %v1155 = vmax.f32 %v1091, 1e-08
    %v1156 = vmax.f32 %v1092, 1e-08
    %v1157 = vmax.f32 %v1093, 1e-08
    %v1158 = vmax.f32 %v1094, 1e-08
    %v1159 = vmax.f32 %v1095, 1e-08
    %v1160 = vmul.f32 %v1096, %v1128
    %v1161 = vmul.f32 %v1097, %v1129
    %v1162 = vmul.f32 %v1098, %v1130
    %v1163 = vmul.f32 %v1099, %v1131
    %v1164 = vmul.f32 %v1100, %v1132
    %v1165 = vmul.f32 %v1101, %v1133
    %v1166 = vmul.f32 %v1102, %v1134
    %v1167 = vmul.f32 %v1103, %v1135
    %v1168 = vmul.f32 %v1104, %v1136
    %v1169 = vmul.f32 %v1105, %v1137
    %v1170 = vmul.f32 %v1106, %v1138
    %v1171 = vmul.f32 %v1107, %v1139
    %v1172 = vmul.f32 %v1108, %v1140
    %v1173 = vmul.f32 %v1109, %v1141
    %v1174 = vmul.f32 %v1110, %v1142
    %v1175 = vmul.f32 %v1111, %v1143
    %v1176 = vmul.f32 %v1112, %v1144
    %v1177 = vmul.f32 %v1113, %v1145
    %v1178 = vmul.f32 %v1114, %v1146
    %v1179 = vmul.f32 %v1115, %v1147
    %v1180 = vmul.f32 %v1116, %v1148
    %v1181 = vmul.f32 %v1117, %v1149
    %v1182 = vmul.f32 %v1118, %v1150
    %v1183 = vmul.f32 %v1119, %v1151
    %v1184 = vmul.f32 %v1120, %v1152
    %v1185 = vmul.f32 %v1121, %v1153
    %v1186 = vmul.f32 %v1122, %v1154
    %v1187 = vmul.f32 %v1123, %v1155
    %v1188 = vmul.f32 %v1124, %v1156
    %v1189 = vmul.f32 %v1125, %v1157
    %v1190 = vmul.f32 %v1126, %v1158
    %v1191 = vmul.f32 %v1127, %v1159
    %v1192 = vrcp.pop %v1160
    %v1193 = vmul.f32 %v552, %v1192
    %v1194 = vrcp.pop %v1161
    %v1195 = vmul.f32 %v553, %v1194
    %v1196 = vrcp.pop %v1162
    %v1197 = vmul.f32 %v554, %v1196
    %v1198 = vrcp.pop %v1163
    %v1199 = vmul.f32 %v555, %v1198
    %v1200 = vrcp.pop %v1164
    %v1201 = vmul.f32 %v556, %v1200
    %v1202 = vrcp.pop %v1165
    %v1203 = vmul.f32 %v557, %v1202
    %v1204 = vrcp.pop %v1166
    %v1205 = vmul.f32 %v558, %v1204
    %v1206 = vrcp.pop %v1167
    %v1207 = vmul.f32 %v559, %v1206
    %v1208 = vrcp.pop %v1168
    %v1209 = vmul.f32 %v560, %v1208
    %v1210 = vrcp.pop %v1169
    %v1211 = vmul.f32 %v561, %v1210
    %v1212 = vrcp.pop %v1170
    %v1213 = vmul.f32 %v562, %v1212
    %v1214 = vrcp.pop %v1171
    %v1215 = vmul.f32 %v563, %v1214
    %v1216 = vrcp.pop %v1172
    %v1217 = vmul.f32 %v564, %v1216
    %v1218 = vrcp.pop %v1173
    %v1219 = vmul.f32 %v565, %v1218
    %v1220 = vrcp.pop %v1174
    %v1221 = vmul.f32 %v566, %v1220
    %v1222 = vrcp.pop %v1175
    %v1223 = vmul.f32 %v567, %v1222
    %v1224 = vrcp.pop %v1176
    %v1225 = vmul.f32 %v568, %v1224
    %v1226 = vrcp.pop %v1177
    %v1227 = vmul.f32 %v569, %v1226
    %v1228 = vrcp.pop %v1178
    %v1229 = vmul.f32 %v570, %v1228
    %v1230 = vrcp.pop %v1179
    %v1231 = vmul.f32 %v571, %v1230
    %v1232 = vrcp.pop %v1180
    %v1233 = vmul.f32 %v572, %v1232
    %v1234 = vrcp.pop %v1181
    %v1235 = vmul.f32 %v573, %v1234
    %v1236 = vrcp.pop %v1182
    %v1237 = vmul.f32 %v574, %v1236
    %v1238 = vrcp.pop %v1183
    %v1239 = vmul.f32 %v575, %v1238
    %v1240 = vrcp.pop %v1184
    %v1241 = vmul.f32 %v576, %v1240
    %v1242 = vrcp.pop %v1185
    %v1243 = vmul.f32 %v577, %v1242
    %v1244 = vrcp.pop %v1186
    %v1245 = vmul.f32 %v578, %v1244
    %v1246 = vrcp.pop %v1187
    %v1247 = vmul.f32 %v579, %v1246
    %v1248 = vrcp.pop %v1188
    %v1249 = vmul.f32 %v580, %v1248
    %v1250 = vrcp.pop %v1189
    %v1251 = vmul.f32 %v581, %v1250
    %v1252 = vrcp.pop %v1190
    %v1253 = vmul.f32 %v582, %v1252
    %v1254 = vrcp.pop %v1191
    %v1255 = vmul.f32 %v583, %v1254
    %v1256 = vmul.f32 %v1193, 2.0
    %v1257 = vmul.f32 %v1195, 2.0
    %v1258 = vmul.f32 %v1197, 2.0
    %v1259 = vmul.f32 %v1199, 2.0
    %v1260 = vmul.f32 %v1201, 2.0
    %v1261 = vmul.f32 %v1203, 2.0
    %v1262 = vmul.f32 %v1205, 2.0
    %v1263 = vmul.f32 %v1207, 2.0
    %v1264 = vmul.f32 %v1209, 2.0
    %v1265 = vmul.f32 %v1211, 2.0
    %v1266 = vmul.f32 %v1213, 2.0
    %v1267 = vmul.f32 %v1215, 2.0
    %v1268 = vmul.f32 %v1217, 2.0
    %v1269 = vmul.f32 %v1219, 2.0
    %v1270 = vmul.f32 %v1221, 2.0
    %v1271 = vmul.f32 %v1223, 2.0
    %v1272 = vmul.f32 %v1225, 2.0
    %v1273 = vmul.f32 %v1227, 2.0
    %v1274 = vmul.f32 %v1229, 2.0
    %v1275 = vmul.f32 %v1231, 2.0
    %v1276 = vmul.f32 %v1233, 2.0
    %v1277 = vmul.f32 %v1235, 2.0
    %v1278 = vmul.f32 %v1237, 2.0
    %v1279 = vmul.f32 %v1239, 2.0
    %v1280 = vmul.f32 %v1241, 2.0
    %v1281 = vmul.f32 %v1243, 2.0
    %v1282 = vmul.f32 %v1245, 2.0
    %v1283 = vmul.f32 %v1247, 2.0
    %v1284 = vmul.f32 %v1249, 2.0
    %v1285 = vmul.f32 %v1251, 2.0
    %v1286 = vmul.f32 %v1253, 2.0
    %v1287 = vmul.f32 %v1255, 2.0
    %v1320 = vlaneseq
    %v1321 = vshrl.u32 %v1320, 7
    %v1322 = vsub.s32 0, %v1321
    %v1323 = vrot.slane %v1256, %v1322
    %v1324 = vlaneseq
    %v1325 = vshrl.u32 %v1324, 7
    %v1326 = vsub.s32 1, %v1325
    %v1327 = vrot.slane %v1256, %v1326
    %v1328 = vlaneseq
    %v1329 = vshrl.u32 %v1328, 7
    %v1330 = vsub.s32 2, %v1329
    %v1331 = vrot.slane %v1256, %v1330
    %v1332 = vlaneseq
    %v1333 = vshrl.u32 %v1332, 7
    %v1334 = vsub.s32 3, %v1333
    %v1335 = vrot.slane %v1256, %v1334
    %v1336 = vlaneseq
    %v1337 = vshrl.u32 %v1336, 7
    %v1338 = vsub.s32 4, %v1337
    %v1339 = vrot.slane %v1256, %v1338
    %v1340 = vlaneseq
    %v1341 = vshrl.u32 %v1340, 7
    %v1342 = vsub.s32 5, %v1341
    %v1343 = vrot.slane %v1256, %v1342
    %v1344 = vlaneseq
    %v1345 = vshrl.u32 %v1344, 7
    %v1346 = vsub.s32 6, %v1345
    %v1347 = vrot.slane %v1256, %v1346
    %v1348 = vlaneseq
    %v1349 = vshrl.u32 %v1348, 7
    %v1350 = vsub.s32 7, %v1349
    %v1351 = vrot.slane %v1256, %v1350
    %v1352 = vlaneseq
    %v1353 = vshrl.u32 %v1352, 7
    %v1354 = vsub.s32 0, %v1353
    %v1355 = vrot.slane %v1257, %v1354
    %v1356 = vlaneseq
    %v1357 = vshrl.u32 %v1356, 7
    %v1358 = vsub.s32 1, %v1357
    %v1359 = vrot.slane %v1257, %v1358
    %v1360 = vlaneseq
    %v1361 = vshrl.u32 %v1360, 7
    %v1362 = vsub.s32 2, %v1361
    %v1363 = vrot.slane %v1257, %v1362
    %v1364 = vlaneseq
    %v1365 = vshrl.u32 %v1364, 7
    %v1366 = vsub.s32 3, %v1365
    %v1367 = vrot.slane %v1257, %v1366
    %v1368 = vlaneseq
    %v1369 = vshrl.u32 %v1368, 7
    %v1370 = vsub.s32 4, %v1369
    %v1371 = vrot.slane %v1257, %v1370
    %v1372 = vlaneseq
    %v1373 = vshrl.u32 %v1372, 7
    %v1374 = vsub.s32 5, %v1373
    %v1375 = vrot.slane %v1257, %v1374
    %v1376 = vlaneseq
    %v1377 = vshrl.u32 %v1376, 7
    %v1378 = vsub.s32 6, %v1377
    %v1379 = vrot.slane %v1257, %v1378
    %v1380 = vlaneseq
    %v1381 = vshrl.u32 %v1380, 7
    %v1382 = vsub.s32 7, %v1381
    %v1383 = vrot.slane %v1257, %v1382
    %v1384 = vlaneseq
    %v1385 = vshrl.u32 %v1384, 7
    %v1386 = vsub.s32 0, %v1385
    %v1387 = vrot.slane %v1258, %v1386
    %v1388 = vlaneseq
    %v1389 = vshrl.u32 %v1388, 7
    %v1390 = vsub.s32 1, %v1389
    %v1391 = vrot.slane %v1258, %v1390
    %v1392 = vlaneseq
    %v1393 = vshrl.u32 %v1392, 7
    %v1394 = vsub.s32 2, %v1393
    %v1395 = vrot.slane %v1258, %v1394
    %v1396 = vlaneseq
    %v1397 = vshrl.u32 %v1396, 7
    %v1398 = vsub.s32 3, %v1397
    %v1399 = vrot.slane %v1258, %v1398
    %v1400 = vlaneseq
    %v1401 = vshrl.u32 %v1400, 7
    %v1402 = vsub.s32 4, %v1401
    %v1403 = vrot.slane %v1258, %v1402
    %v1404 = vlaneseq
    %v1405 = vshrl.u32 %v1404, 7
    %v1406 = vsub.s32 5, %v1405
    %v1407 = vrot.slane %v1258, %v1406
    %v1408 = vlaneseq
    %v1409 = vshrl.u32 %v1408, 7
    %v1410 = vsub.s32 6, %v1409
    %v1411 = vrot.slane %v1258, %v1410
    %v1412 = vlaneseq
    %v1413 = vshrl.u32 %v1412, 7
    %v1414 = vsub.s32 7, %v1413
    %v1415 = vrot.slane %v1258, %v1414
    %v1416 = vlaneseq
    %v1417 = vshrl.u32 %v1416, 7
    %v1418 = vsub.s32 0, %v1417
    %v1419 = vrot.slane %v1259, %v1418
    %v1420 = vlaneseq
    %v1421 = vshrl.u32 %v1420, 7
    %v1422 = vsub.s32 1, %v1421
    %v1423 = vrot.slane %v1259, %v1422
    %v1424 = vlaneseq
    %v1425 = vshrl.u32 %v1424, 7
    %v1426 = vsub.s32 2, %v1425
    %v1427 = vrot.slane %v1259, %v1426
    %v1428 = vlaneseq
    %v1429 = vshrl.u32 %v1428, 7
    %v1430 = vsub.s32 3, %v1429
    %v1431 = vrot.slane %v1259, %v1430
    %v1432 = vlaneseq
    %v1433 = vshrl.u32 %v1432, 7
    %v1434 = vsub.s32 4, %v1433
    %v1435 = vrot.slane %v1259, %v1434
    %v1436 = vlaneseq
    %v1437 = vshrl.u32 %v1436, 7
    %v1438 = vsub.s32 5, %v1437
    %v1439 = vrot.slane %v1259, %v1438
    %v1440 = vlaneseq
    %v1441 = vshrl.u32 %v1440, 7
    %v1442 = vsub.s32 6, %v1441
    %v1443 = vrot.slane %v1259, %v1442
    %v1444 = vlaneseq
    %v1445 = vshrl.u32 %v1444, 7
    %v1446 = vsub.s32 7, %v1445
    %v1447 = vrot.slane %v1259, %v1446
    %v1448 = vlaneseq
    %v1449 = vshrl.u32 %v1448, 7
    %v1450 = vsub.s32 0, %v1449
    %v1451 = vrot.slane %v1260, %v1450
    %v1452 = vlaneseq
    %v1453 = vshrl.u32 %v1452, 7
    %v1454 = vsub.s32 1, %v1453
    %v1455 = vrot.slane %v1260, %v1454
    %v1456 = vlaneseq
    %v1457 = vshrl.u32 %v1456, 7
    %v1458 = vsub.s32 2, %v1457
    %v1459 = vrot.slane %v1260, %v1458
    %v1460 = vlaneseq
    %v1461 = vshrl.u32 %v1460, 7
    %v1462 = vsub.s32 3, %v1461
    %v1463 = vrot.slane %v1260, %v1462
    %v1464 = vlaneseq
    %v1465 = vshrl.u32 %v1464, 7
    %v1466 = vsub.s32 4, %v1465
    %v1467 = vrot.slane %v1260, %v1466
    %v1468 = vlaneseq
    %v1469 = vshrl.u32 %v1468, 7
    %v1470 = vsub.s32 5, %v1469
    %v1471 = vrot.slane %v1260, %v1470
    %v1472 = vlaneseq
    %v1473 = vshrl.u32 %v1472, 7
    %v1474 = vsub.s32 6, %v1473
    %v1475 = vrot.slane %v1260, %v1474
    %v1476 = vlaneseq
    %v1477 = vshrl.u32 %v1476, 7
    %v1478 = vsub.s32 7, %v1477
    %v1479 = vrot.slane %v1260, %v1478
    %v1480 = vlaneseq
    %v1481 = vshrl.u32 %v1480, 7
    %v1482 = vsub.s32 0, %v1481
    %v1483 = vrot.slane %v1261, %v1482
    %v1484 = vlaneseq
    %v1485 = vshrl.u32 %v1484, 7
    %v1486 = vsub.s32 1, %v1485
    %v1487 = vrot.slane %v1261, %v1486
    %v1488 = vlaneseq
    %v1489 = vshrl.u32 %v1488, 7
    %v1490 = vsub.s32 2, %v1489
    %v1491 = vrot.slane %v1261, %v1490
    %v1492 = vlaneseq
    %v1493 = vshrl.u32 %v1492, 7
    %v1494 = vsub.s32 3, %v1493
    %v1495 = vrot.slane %v1261, %v1494
    %v1496 = vlaneseq
    %v1497 = vshrl.u32 %v1496, 7
    %v1498 = vsub.s32 4, %v1497
    %v1499 = vrot.slane %v1261, %v1498
    %v1500 = vlaneseq
    %v1501 = vshrl.u32 %v1500, 7
    %v1502 = vsub.s32 5, %v1501
    %v1503 = vrot.slane %v1261, %v1502
    %v1504 = vlaneseq
    %v1505 = vshrl.u32 %v1504, 7
    %v1506 = vsub.s32 6, %v1505
    %v1507 = vrot.slane %v1261, %v1506
    %v1508 = vlaneseq
    %v1509 = vshrl.u32 %v1508, 7
    %v1510 = vsub.s32 7, %v1509
    %v1511 = vrot.slane %v1261, %v1510
    %v1512 = vlaneseq
    %v1513 = vshrl.u32 %v1512, 7
    %v1514 = vsub.s32 0, %v1513
    %v1515 = vrot.slane %v1262, %v1514
    %v1516 = vlaneseq
    %v1517 = vshrl.u32 %v1516, 7
    %v1518 = vsub.s32 1, %v1517
    %v1519 = vrot.slane %v1262, %v1518
    %v1520 = vlaneseq
    %v1521 = vshrl.u32 %v1520, 7
    %v1522 = vsub.s32 2, %v1521
    %v1523 = vrot.slane %v1262, %v1522
    %v1524 = vlaneseq
    %v1525 = vshrl.u32 %v1524, 7
    %v1526 = vsub.s32 3, %v1525
    %v1527 = vrot.slane %v1262, %v1526
    %v1528 = vlaneseq
    %v1529 = vshrl.u32 %v1528, 7
    %v1530 = vsub.s32 4, %v1529
    %v1531 = vrot.slane %v1262, %v1530
    %v1532 = vlaneseq
    %v1533 = vshrl.u32 %v1532, 7
    %v1534 = vsub.s32 5, %v1533
    %v1535 = vrot.slane %v1262, %v1534
    %v1536 = vlaneseq
    %v1537 = vshrl.u32 %v1536, 7
    %v1538 = vsub.s32 6, %v1537
    %v1539 = vrot.slane %v1262, %v1538
    %v1540 = vlaneseq
    %v1541 = vshrl.u32 %v1540, 7
    %v1542 = vsub.s32 7, %v1541
    %v1543 = vrot.slane %v1262, %v1542
    %v1544 = vlaneseq
    %v1545 = vshrl.u32 %v1544, 7
    %v1546 = vsub.s32 0, %v1545
    %v1547 = vrot.slane %v1263, %v1546
    %v1548 = vlaneseq
    %v1549 = vshrl.u32 %v1548, 7
    %v1550 = vsub.s32 1, %v1549
    %v1551 = vrot.slane %v1263, %v1550
    %v1552 = vlaneseq
    %v1553 = vshrl.u32 %v1552, 7
    %v1554 = vsub.s32 2, %v1553
    %v1555 = vrot.slane %v1263, %v1554
    %v1556 = vlaneseq
    %v1557 = vshrl.u32 %v1556, 7
    %v1558 = vsub.s32 3, %v1557
    %v1559 = vrot.slane %v1263, %v1558
    %v1560 = vlaneseq
    %v1561 = vshrl.u32 %v1560, 7
    %v1562 = vsub.s32 4, %v1561
    %v1563 = vrot.slane %v1263, %v1562
    %v1564 = vlaneseq
    %v1565 = vshrl.u32 %v1564, 7
    %v1566 = vsub.s32 5, %v1565
    %v1567 = vrot.slane %v1263, %v1566
    %v1568 = vlaneseq
    %v1569 = vshrl.u32 %v1568, 7
    %v1570 = vsub.s32 6, %v1569
    %v1571 = vrot.slane %v1263, %v1570
    %v1572 = vlaneseq
    %v1573 = vshrl.u32 %v1572, 7
    %v1574 = vsub.s32 7, %v1573
    %v1575 = vrot.slane %v1263, %v1574
    %v1576 = vlaneseq
    %v1577 = vshrl.u32 %v1576, 7
    %v1578 = vsub.s32 0, %v1577
    %v1579 = vrot.slane %v1264, %v1578
    %v1580 = vlaneseq
    %v1581 = vshrl.u32 %v1580, 7
    %v1582 = vsub.s32 1, %v1581
    %v1583 = vrot.slane %v1264, %v1582
    %v1584 = vlaneseq
    %v1585 = vshrl.u32 %v1584, 7
    %v1586 = vsub.s32 2, %v1585
    %v1587 = vrot.slane %v1264, %v1586
    %v1588 = vlaneseq
    %v1589 = vshrl.u32 %v1588, 7
    %v1590 = vsub.s32 3, %v1589
    %v1591 = vrot.slane %v1264, %v1590
    %v1592 = vlaneseq
    %v1593 = vshrl.u32 %v1592, 7
    %v1594 = vsub.s32 4, %v1593
    %v1595 = vrot.slane %v1264, %v1594
    %v1596 = vlaneseq
    %v1597 = vshrl.u32 %v1596, 7
    %v1598 = vsub.s32 5, %v1597
    %v1599 = vrot.slane %v1264, %v1598
    %v1600 = vlaneseq
    %v1601 = vshrl.u32 %v1600, 7
    %v1602 = vsub.s32 6, %v1601
    %v1603 = vrot.slane %v1264, %v1602
    %v1604 = vlaneseq
    %v1605 = vshrl.u32 %v1604, 7
    %v1606 = vsub.s32 7, %v1605
    %v1607 = vrot.slane %v1264, %v1606
    %v1608 = vlaneseq
    %v1609 = vshrl.u32 %v1608, 7
    %v1610 = vsub.s32 0, %v1609
    %v1611 = vrot.slane %v1265, %v1610
    %v1612 = vlaneseq
    %v1613 = vshrl.u32 %v1612, 7
    %v1614 = vsub.s32 1, %v1613
    %v1615 = vrot.slane %v1265, %v1614
    %v1616 = vlaneseq
    %v1617 = vshrl.u32 %v1616, 7
    %v1618 = vsub.s32 2, %v1617
    %v1619 = vrot.slane %v1265, %v1618
    %v1620 = vlaneseq
    %v1621 = vshrl.u32 %v1620, 7
    %v1622 = vsub.s32 3, %v1621
    %v1623 = vrot.slane %v1265, %v1622
    %v1624 = vlaneseq
    %v1625 = vshrl.u32 %v1624, 7
    %v1626 = vsub.s32 4, %v1625
    %v1627 = vrot.slane %v1265, %v1626
    %v1628 = vlaneseq
    %v1629 = vshrl.u32 %v1628, 7
    %v1630 = vsub.s32 5, %v1629
    %v1631 = vrot.slane %v1265, %v1630
    %v1632 = vlaneseq
    %v1633 = vshrl.u32 %v1632, 7
    %v1634 = vsub.s32 6, %v1633
    %v1635 = vrot.slane %v1265, %v1634
    %v1636 = vlaneseq
    %v1637 = vshrl.u32 %v1636, 7
    %v1638 = vsub.s32 7, %v1637
    %v1639 = vrot.slane %v1265, %v1638
    %v1640 = vlaneseq
    %v1641 = vshrl.u32 %v1640, 7
    %v1642 = vsub.s32 0, %v1641
    %v1643 = vrot.slane %v1266, %v1642
    %v1644 = vlaneseq
    %v1645 = vshrl.u32 %v1644, 7
    %v1646 = vsub.s32 1, %v1645
    %v1647 = vrot.slane %v1266, %v1646
    %v1648 = vlaneseq
    %v1649 = vshrl.u32 %v1648, 7
    %v1650 = vsub.s32 2, %v1649
    %v1651 = vrot.slane %v1266, %v1650
    %v1652 = vlaneseq
    %v1653 = vshrl.u32 %v1652, 7
    %v1654 = vsub.s32 3, %v1653
    %v1655 = vrot.slane %v1266, %v1654
    %v1656 = vlaneseq
    %v1657 = vshrl.u32 %v1656, 7
    %v1658 = vsub.s32 4, %v1657
    %v1659 = vrot.slane %v1266, %v1658
    %v1660 = vlaneseq
    %v1661 = vshrl.u32 %v1660, 7
    %v1662 = vsub.s32 5, %v1661
    %v1663 = vrot.slane %v1266, %v1662
    %v1664 = vlaneseq
    %v1665 = vshrl.u32 %v1664, 7
    %v1666 = vsub.s32 6, %v1665
    %v1667 = vrot.slane %v1266, %v1666
    %v1668 = vlaneseq
    %v1669 = vshrl.u32 %v1668, 7
    %v1670 = vsub.s32 7, %v1669
    %v1671 = vrot.slane %v1266, %v1670
    %v1672 = vlaneseq
    %v1673 = vshrl.u32 %v1672, 7
    %v1674 = vsub.s32 0, %v1673
    %v1675 = vrot.slane %v1267, %v1674
    %v1676 = vlaneseq
    %v1677 = vshrl.u32 %v1676, 7
    %v1678 = vsub.s32 1, %v1677
    %v1679 = vrot.slane %v1267, %v1678
    %v1680 = vlaneseq
    %v1681 = vshrl.u32 %v1680, 7
    %v1682 = vsub.s32 2, %v1681
    %v1683 = vrot.slane %v1267, %v1682
    %v1684 = vlaneseq
    %v1685 = vshrl.u32 %v1684, 7
    %v1686 = vsub.s32 3, %v1685
    %v1687 = vrot.slane %v1267, %v1686
    %v1688 = vlaneseq
    %v1689 = vshrl.u32 %v1688, 7
    %v1690 = vsub.s32 4, %v1689
    %v1691 = vrot.slane %v1267, %v1690
    %v1692 = vlaneseq
    %v1693 = vshrl.u32 %v1692, 7
    %v1694 = vsub.s32 5, %v1693
    %v1695 = vrot.slane %v1267, %v1694
    %v1696 = vlaneseq
    %v1697 = vshrl.u32 %v1696, 7
    %v1698 = vsub.s32 6, %v1697
    %v1699 = vrot.slane %v1267, %v1698
    %v1700 = vlaneseq
    %v1701 = vshrl.u32 %v1700, 7
    %v1702 = vsub.s32 7, %v1701
    %v1703 = vrot.slane %v1267, %v1702
    %v1704 = vlaneseq
    %v1705 = vshrl.u32 %v1704, 7
    %v1706 = vsub.s32 0, %v1705
    %v1707 = vrot.slane %v1268, %v1706
    %v1708 = vlaneseq
    %v1709 = vshrl.u32 %v1708, 7
    %v1710 = vsub.s32 1, %v1709
    %v1711 = vrot.slane %v1268, %v1710
    %v1712 = vlaneseq
    %v1713 = vshrl.u32 %v1712, 7
    %v1714 = vsub.s32 2, %v1713
    %v1715 = vrot.slane %v1268, %v1714
    %v1716 = vlaneseq
    %v1717 = vshrl.u32 %v1716, 7
    %v1718 = vsub.s32 3, %v1717
    %v1719 = vrot.slane %v1268, %v1718
    %v1720 = vlaneseq
    %v1721 = vshrl.u32 %v1720, 7
    %v1722 = vsub.s32 4, %v1721
    %v1723 = vrot.slane %v1268, %v1722
    %v1724 = vlaneseq
    %v1725 = vshrl.u32 %v1724, 7
    %v1726 = vsub.s32 5, %v1725
    %v1727 = vrot.slane %v1268, %v1726
    %v1728 = vlaneseq
    %v1729 = vshrl.u32 %v1728, 7
    %v1730 = vsub.s32 6, %v1729
    %v1731 = vrot.slane %v1268, %v1730
    %v1732 = vlaneseq
    %v1733 = vshrl.u32 %v1732, 7
    %v1734 = vsub.s32 7, %v1733
    %v1735 = vrot.slane %v1268, %v1734
    %v1736 = vlaneseq
    %v1737 = vshrl.u32 %v1736, 7
    %v1738 = vsub.s32 0, %v1737
    %v1739 = vrot.slane %v1269, %v1738
    %v1740 = vlaneseq
    %v1741 = vshrl.u32 %v1740, 7
    %v1742 = vsub.s32 1, %v1741
    %v1743 = vrot.slane %v1269, %v1742
    %v1744 = vlaneseq
    %v1745 = vshrl.u32 %v1744, 7
    %v1746 = vsub.s32 2, %v1745
    %v1747 = vrot.slane %v1269, %v1746
    %v1748 = vlaneseq
    %v1749 = vshrl.u32 %v1748, 7
    %v1750 = vsub.s32 3, %v1749
    %v1751 = vrot.slane %v1269, %v1750
    %v1752 = vlaneseq
    %v1753 = vshrl.u32 %v1752, 7
    %v1754 = vsub.s32 4, %v1753
    %v1755 = vrot.slane %v1269, %v1754
    %v1756 = vlaneseq
    %v1757 = vshrl.u32 %v1756, 7
    %v1758 = vsub.s32 5, %v1757
    %v1759 = vrot.slane %v1269, %v1758
    %v1760 = vlaneseq
    %v1761 = vshrl.u32 %v1760, 7
    %v1762 = vsub.s32 6, %v1761
    %v1763 = vrot.slane %v1269, %v1762
    %v1764 = vlaneseq
    %v1765 = vshrl.u32 %v1764, 7
    %v1766 = vsub.s32 7, %v1765
    %v1767 = vrot.slane %v1269, %v1766
    %v1768 = vlaneseq
    %v1769 = vshrl.u32 %v1768, 7
    %v1770 = vsub.s32 0, %v1769
    %v1771 = vrot.slane %v1270, %v1770
    %v1772 = vlaneseq
    %v1773 = vshrl.u32 %v1772, 7
    %v1774 = vsub.s32 1, %v1773
    %v1775 = vrot.slane %v1270, %v1774
    %v1776 = vlaneseq
    %v1777 = vshrl.u32 %v1776, 7
    %v1778 = vsub.s32 2, %v1777
    %v1779 = vrot.slane %v1270, %v1778
    %v1780 = vlaneseq
    %v1781 = vshrl.u32 %v1780, 7
    %v1782 = vsub.s32 3, %v1781
    %v1783 = vrot.slane %v1270, %v1782
    %v1784 = vlaneseq
    %v1785 = vshrl.u32 %v1784, 7
    %v1786 = vsub.s32 4, %v1785
    %v1787 = vrot.slane %v1270, %v1786
    %v1788 = vlaneseq
    %v1789 = vshrl.u32 %v1788, 7
    %v1790 = vsub.s32 5, %v1789
    %v1791 = vrot.slane %v1270, %v1790
    %v1792 = vlaneseq
    %v1793 = vshrl.u32 %v1792, 7
    %v1794 = vsub.s32 6, %v1793
    %v1795 = vrot.slane %v1270, %v1794
    %v1796 = vlaneseq
    %v1797 = vshrl.u32 %v1796, 7
    %v1798 = vsub.s32 7, %v1797
    %v1799 = vrot.slane %v1270, %v1798
    %v1800 = vlaneseq
    %v1801 = vshrl.u32 %v1800, 7
    %v1802 = vsub.s32 0, %v1801
    %v1803 = vrot.slane %v1271, %v1802
    %v1804 = vlaneseq
    %v1805 = vshrl.u32 %v1804, 7
    %v1806 = vsub.s32 1, %v1805
    %v1807 = vrot.slane %v1271, %v1806
    %v1808 = vlaneseq
    %v1809 = vshrl.u32 %v1808, 7
    %v1810 = vsub.s32 2, %v1809
    %v1811 = vrot.slane %v1271, %v1810
    %v1812 = vlaneseq
    %v1813 = vshrl.u32 %v1812, 7
    %v1814 = vsub.s32 3, %v1813
    %v1815 = vrot.slane %v1271, %v1814
    %v1816 = vlaneseq
    %v1817 = vshrl.u32 %v1816, 7
    %v1818 = vsub.s32 4, %v1817
    %v1819 = vrot.slane %v1271, %v1818
    %v1820 = vlaneseq
    %v1821 = vshrl.u32 %v1820, 7
    %v1822 = vsub.s32 5, %v1821
    %v1823 = vrot.slane %v1271, %v1822
    %v1824 = vlaneseq
    %v1825 = vshrl.u32 %v1824, 7
    %v1826 = vsub.s32 6, %v1825
    %v1827 = vrot.slane %v1271, %v1826
    %v1828 = vlaneseq
    %v1829 = vshrl.u32 %v1828, 7
    %v1830 = vsub.s32 7, %v1829
    %v1831 = vrot.slane %v1271, %v1830
    %v1832 = vlaneseq
    %v1833 = vshrl.u32 %v1832, 7
    %v1834 = vsub.s32 0, %v1833
    %v1835 = vrot.slane %v1272, %v1834
    %v1836 = vlaneseq
    %v1837 = vshrl.u32 %v1836, 7
    %v1838 = vsub.s32 1, %v1837
    %v1839 = vrot.slane %v1272, %v1838
    %v1840 = vlaneseq
    %v1841 = vshrl.u32 %v1840, 7
    %v1842 = vsub.s32 2, %v1841
    %v1843 = vrot.slane %v1272, %v1842
    %v1844 = vlaneseq
    %v1845 = vshrl.u32 %v1844, 7
    %v1846 = vsub.s32 3, %v1845
    %v1847 = vrot.slane %v1272, %v1846
    %v1848 = vlaneseq
    %v1849 = vshrl.u32 %v1848, 7
    %v1850 = vsub.s32 4, %v1849
    %v1851 = vrot.slane %v1272, %v1850
    %v1852 = vlaneseq
    %v1853 = vshrl.u32 %v1852, 7
    %v1854 = vsub.s32 5, %v1853
    %v1855 = vrot.slane %v1272, %v1854
    %v1856 = vlaneseq
    %v1857 = vshrl.u32 %v1856, 7
    %v1858 = vsub.s32 6, %v1857
    %v1859 = vrot.slane %v1272, %v1858
    %v1860 = vlaneseq
    %v1861 = vshrl.u32 %v1860, 7
    %v1862 = vsub.s32 7, %v1861
    %v1863 = vrot.slane %v1272, %v1862
    %v1864 = vlaneseq
    %v1865 = vshrl.u32 %v1864, 7
    %v1866 = vsub.s32 0, %v1865
    %v1867 = vrot.slane %v1273, %v1866
    %v1868 = vlaneseq
    %v1869 = vshrl.u32 %v1868, 7
    %v1870 = vsub.s32 1, %v1869
    %v1871 = vrot.slane %v1273, %v1870
    %v1872 = vlaneseq
    %v1873 = vshrl.u32 %v1872, 7
    %v1874 = vsub.s32 2, %v1873
    %v1875 = vrot.slane %v1273, %v1874
    %v1876 = vlaneseq
    %v1877 = vshrl.u32 %v1876, 7
    %v1878 = vsub.s32 3, %v1877
    %v1879 = vrot.slane %v1273, %v1878
    %v1880 = vlaneseq
    %v1881 = vshrl.u32 %v1880, 7
    %v1882 = vsub.s32 4, %v1881
    %v1883 = vrot.slane %v1273, %v1882
    %v1884 = vlaneseq
    %v1885 = vshrl.u32 %v1884, 7
    %v1886 = vsub.s32 5, %v1885
    %v1887 = vrot.slane %v1273, %v1886
    %v1888 = vlaneseq
    %v1889 = vshrl.u32 %v1888, 7
    %v1890 = vsub.s32 6, %v1889
    %v1891 = vrot.slane %v1273, %v1890
    %v1892 = vlaneseq
    %v1893 = vshrl.u32 %v1892, 7
    %v1894 = vsub.s32 7, %v1893
    %v1895 = vrot.slane %v1273, %v1894
    %v1896 = vlaneseq
    %v1897 = vshrl.u32 %v1896, 7
    %v1898 = vsub.s32 0, %v1897
    %v1899 = vrot.slane %v1274, %v1898
    %v1900 = vlaneseq
    %v1901 = vshrl.u32 %v1900, 7
    %v1902 = vsub.s32 1, %v1901
    %v1903 = vrot.slane %v1274, %v1902
    %v1904 = vlaneseq
    %v1905 = vshrl.u32 %v1904, 7
    %v1906 = vsub.s32 2, %v1905
    %v1907 = vrot.slane %v1274, %v1906
    %v1908 = vlaneseq
    %v1909 = vshrl.u32 %v1908, 7
    %v1910 = vsub.s32 3, %v1909
    %v1911 = vrot.slane %v1274, %v1910
    %v1912 = vlaneseq
    %v1913 = vshrl.u32 %v1912, 7
    %v1914 = vsub.s32 4, %v1913
    %v1915 = vrot.slane %v1274, %v1914
    %v1916 = vlaneseq
    %v1917 = vshrl.u32 %v1916, 7
    %v1918 = vsub.s32 5, %v1917
    %v1919 = vrot.slane %v1274, %v1918
    %v1920 = vlaneseq
    %v1921 = vshrl.u32 %v1920, 7
    %v1922 = vsub.s32 6, %v1921
    %v1923 = vrot.slane %v1274, %v1922
    %v1924 = vlaneseq
    %v1925 = vshrl.u32 %v1924, 7
    %v1926 = vsub.s32 7, %v1925
    %v1927 = vrot.slane %v1274, %v1926
    %v1928 = vlaneseq
    %v1929 = vshrl.u32 %v1928, 7
    %v1930 = vsub.s32 0, %v1929
    %v1931 = vrot.slane %v1275, %v1930
    %v1932 = vlaneseq
    %v1933 = vshrl.u32 %v1932, 7
    %v1934 = vsub.s32 1, %v1933
    %v1935 = vrot.slane %v1275, %v1934
    %v1936 = vlaneseq
    %v1937 = vshrl.u32 %v1936, 7
    %v1938 = vsub.s32 2, %v1937
    %v1939 = vrot.slane %v1275, %v1938
    %v1940 = vlaneseq
    %v1941 = vshrl.u32 %v1940, 7
    %v1942 = vsub.s32 3, %v1941
    %v1943 = vrot.slane %v1275, %v1942
    %v1944 = vlaneseq
    %v1945 = vshrl.u32 %v1944, 7
    %v1946 = vsub.s32 4, %v1945
    %v1947 = vrot.slane %v1275, %v1946
    %v1948 = vlaneseq
    %v1949 = vshrl.u32 %v1948, 7
    %v1950 = vsub.s32 5, %v1949
    %v1951 = vrot.slane %v1275, %v1950
    %v1952 = vlaneseq
    %v1953 = vshrl.u32 %v1952, 7
    %v1954 = vsub.s32 6, %v1953
    %v1955 = vrot.slane %v1275, %v1954
    %v1956 = vlaneseq
    %v1957 = vshrl.u32 %v1956, 7
    %v1958 = vsub.s32 7, %v1957
    %v1959 = vrot.slane %v1275, %v1958
    %v1960 = vlaneseq
    %v1961 = vshrl.u32 %v1960, 7
    %v1962 = vsub.s32 0, %v1961
    %v1963 = vrot.slane %v1276, %v1962
    %v1964 = vlaneseq
    %v1965 = vshrl.u32 %v1964, 7
    %v1966 = vsub.s32 1, %v1965
    %v1967 = vrot.slane %v1276, %v1966
    %v1968 = vlaneseq
    %v1969 = vshrl.u32 %v1968, 7
    %v1970 = vsub.s32 2, %v1969
    %v1971 = vrot.slane %v1276, %v1970
    %v1972 = vlaneseq
    %v1973 = vshrl.u32 %v1972, 7
    %v1974 = vsub.s32 3, %v1973
    %v1975 = vrot.slane %v1276, %v1974
    %v1976 = vlaneseq
    %v1977 = vshrl.u32 %v1976, 7
    %v1978 = vsub.s32 4, %v1977
    %v1979 = vrot.slane %v1276, %v1978
    %v1980 = vlaneseq
    %v1981 = vshrl.u32 %v1980, 7
    %v1982 = vsub.s32 5, %v1981
    %v1983 = vrot.slane %v1276, %v1982
    %v1984 = vlaneseq
    %v1985 = vshrl.u32 %v1984, 7
    %v1986 = vsub.s32 6, %v1985
    %v1987 = vrot.slane %v1276, %v1986
    %v1988 = vlaneseq
    %v1989 = vshrl.u32 %v1988, 7
    %v1990 = vsub.s32 7, %v1989
    %v1991 = vrot.slane %v1276, %v1990
    %v1992 = vlaneseq
    %v1993 = vshrl.u32 %v1992, 7
    %v1994 = vsub.s32 0, %v1993
    %v1995 = vrot.slane %v1277, %v1994
    %v1996 = vlaneseq
    %v1997 = vshrl.u32 %v1996, 7
    %v1998 = vsub.s32 1, %v1997
    %v1999 = vrot.slane %v1277, %v1998
    %v2000 = vlaneseq
    %v2001 = vshrl.u32 %v2000, 7
    %v2002 = vsub.s32 2, %v2001
    %v2003 = vrot.slane %v1277, %v2002
    %v2004 = vlaneseq
    %v2005 = vshrl.u32 %v2004, 7
    %v2006 = vsub.s32 3, %v2005
    %v2007 = vrot.slane %v1277, %v2006
    %v2008 = vlaneseq
    %v2009 = vshrl.u32 %v2008, 7
    %v2010 = vsub.s32 4, %v2009
    %v2011 = vrot.slane %v1277, %v2010
    %v2012 = vlaneseq
    %v2013 = vshrl.u32 %v2012, 7
    %v2014 = vsub.s32 5, %v2013
    %v2015 = vrot.slane %v1277, %v2014
    %v2016 = vlaneseq
    %v2017 = vshrl.u32 %v2016, 7
    %v2018 = vsub.s32 6, %v2017
    %v2019 = vrot.slane %v1277, %v2018
    %v2020 = vlaneseq
    %v2021 = vshrl.u32 %v2020, 7
    %v2022 = vsub.s32 7, %v2021
    %v2023 = vrot.slane %v1277, %v2022
    %v2024 = vlaneseq
    %v2025 = vshrl.u32 %v2024, 7
    %v2026 = vsub.s32 0, %v2025
    %v2027 = vrot.slane %v1278, %v2026
    %v2028 = vlaneseq
    %v2029 = vshrl.u32 %v2028, 7
    %v2030 = vsub.s32 1, %v2029
    %v2031 = vrot.slane %v1278, %v2030
    %v2032 = vlaneseq
    %v2033 = vshrl.u32 %v2032, 7
    %v2034 = vsub.s32 2, %v2033
    %v2035 = vrot.slane %v1278, %v2034
    %v2036 = vlaneseq
    %v2037 = vshrl.u32 %v2036, 7
    %v2038 = vsub.s32 3, %v2037
    %v2039 = vrot.slane %v1278, %v2038
    %v2040 = vlaneseq
    %v2041 = vshrl.u32 %v2040, 7
    %v2042 = vsub.s32 4, %v2041
    %v2043 = vrot.slane %v1278, %v2042
    %v2044 = vlaneseq
    %v2045 = vshrl.u32 %v2044, 7
    %v2046 = vsub.s32 5, %v2045
    %v2047 = vrot.slane %v1278, %v2046
    %v2048 = vlaneseq
    %v2049 = vshrl.u32 %v2048, 7
    %v2050 = vsub.s32 6, %v2049
    %v2051 = vrot.slane %v1278, %v2050
    %v2052 = vlaneseq
    %v2053 = vshrl.u32 %v2052, 7
    %v2054 = vsub.s32 7, %v2053
    %v2055 = vrot.slane %v1278, %v2054
    %v2056 = vlaneseq
    %v2057 = vshrl.u32 %v2056, 7
    %v2058 = vsub.s32 0, %v2057
    %v2059 = vrot.slane %v1279, %v2058
    %v2060 = vlaneseq
    %v2061 = vshrl.u32 %v2060, 7
    %v2062 = vsub.s32 1, %v2061
    %v2063 = vrot.slane %v1279, %v2062
    %v2064 = vlaneseq
    %v2065 = vshrl.u32 %v2064, 7
    %v2066 = vsub.s32 2, %v2065
    %v2067 = vrot.slane %v1279, %v2066
    %v2068 = vlaneseq
    %v2069 = vshrl.u32 %v2068, 7
    %v2070 = vsub.s32 3, %v2069
    %v2071 = vrot.slane %v1279, %v2070
    %v2072 = vlaneseq
    %v2073 = vshrl.u32 %v2072, 7
    %v2074 = vsub.s32 4, %v2073
    %v2075 = vrot.slane %v1279, %v2074
    %v2076 = vlaneseq
    %v2077 = vshrl.u32 %v2076, 7
    %v2078 = vsub.s32 5, %v2077
    %v2079 = vrot.slane %v1279, %v2078
    %v2080 = vlaneseq
    %v2081 = vshrl.u32 %v2080, 7
    %v2082 = vsub.s32 6, %v2081
    %v2083 = vrot.slane %v1279, %v2082
    %v2084 = vlaneseq
    %v2085 = vshrl.u32 %v2084, 7
    %v2086 = vsub.s32 7, %v2085
    %v2087 = vrot.slane %v1279, %v2086
    %v2088 = vlaneseq
    %v2089 = vshrl.u32 %v2088, 7
    %v2090 = vsub.s32 0, %v2089
    %v2091 = vrot.slane %v1280, %v2090
    %v2092 = vlaneseq
    %v2093 = vshrl.u32 %v2092, 7
    %v2094 = vsub.s32 1, %v2093
    %v2095 = vrot.slane %v1280, %v2094
    %v2096 = vlaneseq
    %v2097 = vshrl.u32 %v2096, 7
    %v2098 = vsub.s32 2, %v2097
    %v2099 = vrot.slane %v1280, %v2098
    %v2100 = vlaneseq
    %v2101 = vshrl.u32 %v2100, 7
    %v2102 = vsub.s32 3, %v2101
    %v2103 = vrot.slane %v1280, %v2102
    %v2104 = vlaneseq
    %v2105 = vshrl.u32 %v2104, 7
    %v2106 = vsub.s32 4, %v2105
    %v2107 = vrot.slane %v1280, %v2106
    %v2108 = vlaneseq
    %v2109 = vshrl.u32 %v2108, 7
    %v2110 = vsub.s32 5, %v2109
    %v2111 = vrot.slane %v1280, %v2110
    %v2112 = vlaneseq
    %v2113 = vshrl.u32 %v2112, 7
    %v2114 = vsub.s32 6, %v2113
    %v2115 = vrot.slane %v1280, %v2114
    %v2116 = vlaneseq
    %v2117 = vshrl.u32 %v2116, 7
    %v2118 = vsub.s32 7, %v2117
    %v2119 = vrot.slane %v1280, %v2118
    %v2120 = vlaneseq
    %v2121 = vshrl.u32 %v2120, 7
    %v2122 = vsub.s32 0, %v2121
    %v2123 = vrot.slane %v1281, %v2122
    %v2124 = vlaneseq
    %v2125 = vshrl.u32 %v2124, 7
    %v2126 = vsub.s32 1, %v2125
    %v2127 = vrot.slane %v1281, %v2126
    %v2128 = vlaneseq
    %v2129 = vshrl.u32 %v2128, 7
    %v2130 = vsub.s32 2, %v2129
    %v2131 = vrot.slane %v1281, %v2130
    %v2132 = vlaneseq
    %v2133 = vshrl.u32 %v2132, 7
    %v2134 = vsub.s32 3, %v2133
    %v2135 = vrot.slane %v1281, %v2134
    %v2136 = vlaneseq
    %v2137 = vshrl.u32 %v2136, 7
    %v2138 = vsub.s32 4, %v2137
    %v2139 = vrot.slane %v1281, %v2138
    %v2140 = vlaneseq
    %v2141 = vshrl.u32 %v2140, 7
    %v2142 = vsub.s32 5, %v2141
    %v2143 = vrot.slane %v1281, %v2142
    %v2144 = vlaneseq
    %v2145 = vshrl.u32 %v2144, 7
    %v2146 = vsub.s32 6, %v2145
    %v2147 = vrot.slane %v1281, %v2146
    %v2148 = vlaneseq
    %v2149 = vshrl.u32 %v2148, 7
    %v2150 = vsub.s32 7, %v2149
    %v2151 = vrot.slane %v1281, %v2150
    %v2152 = vlaneseq
    %v2153 = vshrl.u32 %v2152, 7
    %v2154 = vsub.s32 0, %v2153
    %v2155 = vrot.slane %v1282, %v2154
    %v2156 = vlaneseq
    %v2157 = vshrl.u32 %v2156, 7
    %v2158 = vsub.s32 1, %v2157
    %v2159 = vrot.slane %v1282, %v2158
    %v2160 = vlaneseq
    %v2161 = vshrl.u32 %v2160, 7
    %v2162 = vsub.s32 2, %v2161
    %v2163 = vrot.slane %v1282, %v2162
    %v2164 = vlaneseq
    %v2165 = vshrl.u32 %v2164, 7
    %v2166 = vsub.s32 3, %v2165
    %v2167 = vrot.slane %v1282, %v2166
    %v2168 = vlaneseq
    %v2169 = vshrl.u32 %v2168, 7
    %v2170 = vsub.s32 4, %v2169
    %v2171 = vrot.slane %v1282, %v2170
    %v2172 = vlaneseq
    %v2173 = vshrl.u32 %v2172, 7
    %v2174 = vsub.s32 5, %v2173
    %v2175 = vrot.slane %v1282, %v2174
    %v2176 = vlaneseq
    %v2177 = vshrl.u32 %v2176, 7
    %v2178 = vsub.s32 6, %v2177
    %v2179 = vrot.slane %v1282, %v2178
    %v2180 = vlaneseq
    %v2181 = vshrl.u32 %v2180, 7
    %v2182 = vsub.s32 7, %v2181
    %v2183 = vrot.slane %v1282, %v2182
    %v2184 = vlaneseq
    %v2185 = vshrl.u32 %v2184, 7
    %v2186 = vsub.s32 0, %v2185
    %v2187 = vrot.slane %v1283, %v2186
    %v2188 = vlaneseq
    %v2189 = vshrl.u32 %v2188, 7
    %v2190 = vsub.s32 1, %v2189
    %v2191 = vrot.slane %v1283, %v2190
    %v2192 = vlaneseq
    %v2193 = vshrl.u32 %v2192, 7
    %v2194 = vsub.s32 2, %v2193
    %v2195 = vrot.slane %v1283, %v2194
    %v2196 = vlaneseq
    %v2197 = vshrl.u32 %v2196, 7
    %v2198 = vsub.s32 3, %v2197
    %v2199 = vrot.slane %v1283, %v2198
    %v2200 = vlaneseq
    %v2201 = vshrl.u32 %v2200, 7
    %v2202 = vsub.s32 4, %v2201
    %v2203 = vrot.slane %v1283, %v2202
    %v2204 = vlaneseq
    %v2205 = vshrl.u32 %v2204, 7
    %v2206 = vsub.s32 5, %v2205
    %v2207 = vrot.slane %v1283, %v2206
    %v2208 = vlaneseq
    %v2209 = vshrl.u32 %v2208, 7
    %v2210 = vsub.s32 6, %v2209
    %v2211 = vrot.slane %v1283, %v2210
    %v2212 = vlaneseq
    %v2213 = vshrl.u32 %v2212, 7
    %v2214 = vsub.s32 7, %v2213
    %v2215 = vrot.slane %v1283, %v2214
    %v2216 = vlaneseq
    %v2217 = vshrl.u32 %v2216, 7
    %v2218 = vsub.s32 0, %v2217
    %v2219 = vrot.slane %v1284, %v2218
    %v2220 = vlaneseq
    %v2221 = vshrl.u32 %v2220, 7
    %v2222 = vsub.s32 1, %v2221
    %v2223 = vrot.slane %v1284, %v2222
    %v2224 = vlaneseq
    %v2225 = vshrl.u32 %v2224, 7
    %v2226 = vsub.s32 2, %v2225
    %v2227 = vrot.slane %v1284, %v2226
    %v2228 = vlaneseq
    %v2229 = vshrl.u32 %v2228, 7
    %v2230 = vsub.s32 3, %v2229
    %v2231 = vrot.slane %v1284, %v2230
    %v2232 = vlaneseq
    %v2233 = vshrl.u32 %v2232, 7
    %v2234 = vsub.s32 4, %v2233
    %v2235 = vrot.slane %v1284, %v2234
    %v2236 = vlaneseq
    %v2237 = vshrl.u32 %v2236, 7
    %v2238 = vsub.s32 5, %v2237
    %v2239 = vrot.slane %v1284, %v2238
    %v2240 = vlaneseq
    %v2241 = vshrl.u32 %v2240, 7
    %v2242 = vsub.s32 6, %v2241
    %v2243 = vrot.slane %v1284, %v2242
    %v2244 = vlaneseq
    %v2245 = vshrl.u32 %v2244, 7
    %v2246 = vsub.s32 7, %v2245
    %v2247 = vrot.slane %v1284, %v2246
    %v2248 = vlaneseq
    %v2249 = vshrl.u32 %v2248, 7
    %v2250 = vsub.s32 0, %v2249
    %v2251 = vrot.slane %v1285, %v2250
    %v2252 = vlaneseq
    %v2253 = vshrl.u32 %v2252, 7
    %v2254 = vsub.s32 1, %v2253
    %v2255 = vrot.slane %v1285, %v2254
    %v2256 = vlaneseq
    %v2257 = vshrl.u32 %v2256, 7
    %v2258 = vsub.s32 2, %v2257
    %v2259 = vrot.slane %v1285, %v2258
    %v2260 = vlaneseq
    %v2261 = vshrl.u32 %v2260, 7
    %v2262 = vsub.s32 3, %v2261
    %v2263 = vrot.slane %v1285, %v2262
    %v2264 = vlaneseq
    %v2265 = vshrl.u32 %v2264, 7
    %v2266 = vsub.s32 4, %v2265
    %v2267 = vrot.slane %v1285, %v2266
    %v2268 = vlaneseq
    %v2269 = vshrl.u32 %v2268, 7
    %v2270 = vsub.s32 5, %v2269
    %v2271 = vrot.slane %v1285, %v2270
    %v2272 = vlaneseq
    %v2273 = vshrl.u32 %v2272, 7
    %v2274 = vsub.s32 6, %v2273
    %v2275 = vrot.slane %v1285, %v2274
    %v2276 = vlaneseq
    %v2277 = vshrl.u32 %v2276, 7
    %v2278 = vsub.s32 7, %v2277
    %v2279 = vrot.slane %v1285, %v2278
    %v2280 = vlaneseq
    %v2281 = vshrl.u32 %v2280, 7
    %v2282 = vsub.s32 0, %v2281
    %v2283 = vrot.slane %v1286, %v2282
    %v2284 = vlaneseq
    %v2285 = vshrl.u32 %v2284, 7
    %v2286 = vsub.s32 1, %v2285
    %v2287 = vrot.slane %v1286, %v2286
    %v2288 = vlaneseq
    %v2289 = vshrl.u32 %v2288, 7
    %v2290 = vsub.s32 2, %v2289
    %v2291 = vrot.slane %v1286, %v2290
    %v2292 = vlaneseq
    %v2293 = vshrl.u32 %v2292, 7
    %v2294 = vsub.s32 3, %v2293
    %v2295 = vrot.slane %v1286, %v2294
    %v2296 = vlaneseq
    %v2297 = vshrl.u32 %v2296, 7
    %v2298 = vsub.s32 4, %v2297
    %v2299 = vrot.slane %v1286, %v2298
    %v2300 = vlaneseq
    %v2301 = vshrl.u32 %v2300, 7
    %v2302 = vsub.s32 5, %v2301
    %v2303 = vrot.slane %v1286, %v2302
    %v2304 = vlaneseq
    %v2305 = vshrl.u32 %v2304, 7
    %v2306 = vsub.s32 6, %v2305
    %v2307 = vrot.slane %v1286, %v2306
    %v2308 = vlaneseq
    %v2309 = vshrl.u32 %v2308, 7
    %v2310 = vsub.s32 7, %v2309
    %v2311 = vrot.slane %v1286, %v2310
    %v2312 = vlaneseq
    %v2313 = vshrl.u32 %v2312, 7
    %v2314 = vsub.s32 0, %v2313
    %v2315 = vrot.slane %v1287, %v2314
    %v2316 = vlaneseq
    %v2317 = vshrl.u32 %v2316, 7
    %v2318 = vsub.s32 1, %v2317
    %v2319 = vrot.slane %v1287, %v2318
    %v2320 = vlaneseq
    %v2321 = vshrl.u32 %v2320, 7
    %v2322 = vsub.s32 2, %v2321
    %v2323 = vrot.slane %v1287, %v2322
    %v2324 = vlaneseq
    %v2325 = vshrl.u32 %v2324, 7
    %v2326 = vsub.s32 3, %v2325
    %v2327 = vrot.slane %v1287, %v2326
    %v2328 = vlaneseq
    %v2329 = vshrl.u32 %v2328, 7
    %v2330 = vsub.s32 4, %v2329
    %v2331 = vrot.slane %v1287, %v2330
    %v2332 = vlaneseq
    %v2333 = vshrl.u32 %v2332, 7
    %v2334 = vsub.s32 5, %v2333
    %v2335 = vrot.slane %v1287, %v2334
    %v2336 = vlaneseq
    %v2337 = vshrl.u32 %v2336, 7
    %v2338 = vsub.s32 6, %v2337
    %v2339 = vrot.slane %v1287, %v2338
    %v2340 = vlaneseq
    %v2341 = vshrl.u32 %v2340, 7
    %v2342 = vsub.s32 7, %v2341
    %v2343 = vrot.slane %v1287, %v2342
    %v2344 = vcombine.low %v1323, %v1327
    %v2345 = vcombine.low %v1331, %v1335
    %v2346 = vcombine.low %v1339, %v1343
    %v2347 = vcombine.low %v1347, %v1351
    %v2349 = vunpack.c.l.s4 1966171168
    %v2350 = vunpack.c.0.s8 %v2349
    %v2351 = vlaneseq
    %v2352 = vshrl.u32 %v2351, 7
    %v2353 = vsub.s32 %v2350, %v2352
    %v2354 = vrot.slane %v2344, %v2353
    %v2356 = vunpack.c.l.s4 1966171168
    %v2357 = vunpack.c.0.s8 %v2356
    %v2358 = vlaneseq
    %v2359 = vshrl.u32 %v2358, 7
    %v2360 = vsub.s32 %v2357, %v2359
    %v2361 = vrot.slane %v2345, %v2360
    %v2363 = vunpack.c.l.s4 1966171168
    %v2364 = vunpack.c.0.s8 %v2363
    %v2365 = vlaneseq
    %v2366 = vshrl.u32 %v2365, 7
    %v2367 = vsub.s32 %v2364, %v2366
    %v2368 = vrot.slane %v2346, %v2367
    %v2370 = vunpack.c.l.s4 1966171168
    %v2371 = vunpack.c.0.s8 %v2370
    %v2372 = vlaneseq
    %v2373 = vshrl.u32 %v2372, 7
    %v2374 = vsub.s32 %v2371, %v2373
    %v2375 = vrot.slane %v2347, %v2374
    %v2376 = vcombine.low %v2354, %v2361
    %v2377 = vcombine.low %v2368, %v2375
    %v2379 = vunpack.c.l.s4 1966171168
    %v2380 = vunpack.c.0.s8 %v2379
    %v2381 = vlaneseq
    %v2382 = vshrl.u32 %v2381, 7
    %v2383 = vsub.s32 %v2380, %v2382
    %v2384 = vrot.slane %v2376, %v2383
    %v2386 = vunpack.c.l.s4 1966171168
    %v2387 = vunpack.c.0.s8 %v2386
    %v2388 = vlaneseq
    %v2389 = vshrl.u32 %v2388, 7
    %v2390 = vsub.s32 %v2387, %v2389
    %v2391 = vrot.slane %v2377, %v2390
    %v2392 = vcombine.low %v2384, %v2391
    %v2393 = vcombine.low %v1355, %v1359
    %v2394 = vcombine.low %v1363, %v1367
    %v2395 = vcombine.low %v1371, %v1375
    %v2396 = vcombine.low %v1379, %v1383
    %v2398 = vunpack.c.l.s4 1966171168
    %v2399 = vunpack.c.0.s8 %v2398
    %v2400 = vlaneseq
    %v2401 = vshrl.u32 %v2400, 7
    %v2402 = vsub.s32 %v2399, %v2401
    %v2403 = vrot.slane %v2393, %v2402
    %v2405 = vunpack.c.l.s4 1966171168
    %v2406 = vunpack.c.0.s8 %v2405
    %v2407 = vlaneseq
    %v2408 = vshrl.u32 %v2407, 7
    %v2409 = vsub.s32 %v2406, %v2408
    %v2410 = vrot.slane %v2394, %v2409
    %v2412 = vunpack.c.l.s4 1966171168
    %v2413 = vunpack.c.0.s8 %v2412
    %v2414 = vlaneseq
    %v2415 = vshrl.u32 %v2414, 7
    %v2416 = vsub.s32 %v2413, %v2415
    %v2417 = vrot.slane %v2395, %v2416
    %v2419 = vunpack.c.l.s4 1966171168
    %v2420 = vunpack.c.0.s8 %v2419
    %v2421 = vlaneseq
    %v2422 = vshrl.u32 %v2421, 7
    %v2423 = vsub.s32 %v2420, %v2422
    %v2424 = vrot.slane %v2396, %v2423
    %v2425 = vcombine.low %v2403, %v2410
    %v2426 = vcombine.low %v2417, %v2424
    %v2428 = vunpack.c.l.s4 1966171168
    %v2429 = vunpack.c.0.s8 %v2428
    %v2430 = vlaneseq
    %v2431 = vshrl.u32 %v2430, 7
    %v2432 = vsub.s32 %v2429, %v2431
    %v2433 = vrot.slane %v2425, %v2432
    %v2435 = vunpack.c.l.s4 1966171168
    %v2436 = vunpack.c.0.s8 %v2435
    %v2437 = vlaneseq
    %v2438 = vshrl.u32 %v2437, 7
    %v2439 = vsub.s32 %v2436, %v2438
    %v2440 = vrot.slane %v2426, %v2439
    %v2441 = vcombine.low %v2433, %v2440
    %v2442 = vcombine.low %v1387, %v1391
    %v2443 = vcombine.low %v1395, %v1399
    %v2444 = vcombine.low %v1403, %v1407
    %v2445 = vcombine.low %v1411, %v1415
    %v2447 = vunpack.c.l.s4 1966171168
    %v2448 = vunpack.c.0.s8 %v2447
    %v2449 = vlaneseq
    %v2450 = vshrl.u32 %v2449, 7
    %v2451 = vsub.s32 %v2448, %v2450
    %v2452 = vrot.slane %v2442, %v2451
    %v2454 = vunpack.c.l.s4 1966171168
    %v2455 = vunpack.c.0.s8 %v2454
    %v2456 = vlaneseq
    %v2457 = vshrl.u32 %v2456, 7
    %v2458 = vsub.s32 %v2455, %v2457
    %v2459 = vrot.slane %v2443, %v2458
    %v2461 = vunpack.c.l.s4 1966171168
    %v2462 = vunpack.c.0.s8 %v2461
    %v2463 = vlaneseq
    %v2464 = vshrl.u32 %v2463, 7
    %v2465 = vsub.s32 %v2462, %v2464
    %v2466 = vrot.slane %v2444, %v2465
    %v2468 = vunpack.c.l.s4 1966171168
    %v2469 = vunpack.c.0.s8 %v2468
    %v2470 = vlaneseq
    %v2471 = vshrl.u32 %v2470, 7
    %v2472 = vsub.s32 %v2469, %v2471
    %v2473 = vrot.slane %v2445, %v2472
    %v2474 = vcombine.low %v2452, %v2459
    %v2475 = vcombine.low %v2466, %v2473
    %v2477 = vunpack.c.l.s4 1966171168
    %v2478 = vunpack.c.0.s8 %v2477
    %v2479 = vlaneseq
    %v2480 = vshrl.u32 %v2479, 7
    %v2481 = vsub.s32 %v2478, %v2480
    %v2482 = vrot.slane %v2474, %v2481
    %v2484 = vunpack.c.l.s4 1966171168
    %v2485 = vunpack.c.0.s8 %v2484
    %v2486 = vlaneseq
    %v2487 = vshrl.u32 %v2486, 7
    %v2488 = vsub.s32 %v2485, %v2487
    %v2489 = vrot.slane %v2475, %v2488
    %v2490 = vcombine.low %v2482, %v2489
    %v2491 = vcombine.low %v1419, %v1423
    %v2492 = vcombine.low %v1427, %v1431
    %v2493 = vcombine.low %v1435, %v1439
    %v2494 = vcombine.low %v1443, %v1447
    %v2496 = vunpack.c.l.s4 1966171168
    %v2497 = vunpack.c.0.s8 %v2496
    %v2498 = vlaneseq
    %v2499 = vshrl.u32 %v2498, 7
    %v2500 = vsub.s32 %v2497, %v2499
    %v2501 = vrot.slane %v2491, %v2500
    %v2503 = vunpack.c.l.s4 1966171168
    %v2504 = vunpack.c.0.s8 %v2503
    %v2505 = vlaneseq
    %v2506 = vshrl.u32 %v2505, 7
    %v2507 = vsub.s32 %v2504, %v2506
    %v2508 = vrot.slane %v2492, %v2507
    %v2510 = vunpack.c.l.s4 1966171168
    %v2511 = vunpack.c.0.s8 %v2510
    %v2512 = vlaneseq
    %v2513 = vshrl.u32 %v2512, 7
    %v2514 = vsub.s32 %v2511, %v2513
    %v2515 = vrot.slane %v2493, %v2514
    %v2517 = vunpack.c.l.s4 1966171168
    %v2518 = vunpack.c.0.s8 %v2517
    %v2519 = vlaneseq
    %v2520 = vshrl.u32 %v2519, 7
    %v2521 = vsub.s32 %v2518, %v2520
    %v2522 = vrot.slane %v2494, %v2521
    %v2523 = vcombine.low %v2501, %v2508
    %v2524 = vcombine.low %v2515, %v2522
    %v2526 = vunpack.c.l.s4 1966171168
    %v2527 = vunpack.c.0.s8 %v2526
    %v2528 = vlaneseq
    %v2529 = vshrl.u32 %v2528, 7
    %v2530 = vsub.s32 %v2527, %v2529
    %v2531 = vrot.slane %v2523, %v2530
    %v2533 = vunpack.c.l.s4 1966171168
    %v2534 = vunpack.c.0.s8 %v2533
    %v2535 = vlaneseq
    %v2536 = vshrl.u32 %v2535, 7
    %v2537 = vsub.s32 %v2534, %v2536
    %v2538 = vrot.slane %v2524, %v2537
    %v2539 = vcombine.low %v2531, %v2538
    %v2540 = vcombine.low %v1451, %v1455
    %v2541 = vcombine.low %v1459, %v1463
    %v2542 = vcombine.low %v1467, %v1471
    %v2543 = vcombine.low %v1475, %v1479
    %v2545 = vunpack.c.l.s4 1966171168
    %v2546 = vunpack.c.0.s8 %v2545
    %v2547 = vlaneseq
    %v2548 = vshrl.u32 %v2547, 7
    %v2549 = vsub.s32 %v2546, %v2548
    %v2550 = vrot.slane %v2540, %v2549
    %v2552 = vunpack.c.l.s4 1966171168
    %v2553 = vunpack.c.0.s8 %v2552
    %v2554 = vlaneseq
    %v2555 = vshrl.u32 %v2554, 7
    %v2556 = vsub.s32 %v2553, %v2555
    %v2557 = vrot.slane %v2541, %v2556
    %v2559 = vunpack.c.l.s4 1966171168
    %v2560 = vunpack.c.0.s8 %v2559
    %v2561 = vlaneseq
    %v2562 = vshrl.u32 %v2561, 7
    %v2563 = vsub.s32 %v2560, %v2562
    %v2564 = vrot.slane %v2542, %v2563
    %v2566 = vunpack.c.l.s4 1966171168
    %v2567 = vunpack.c.0.s8 %v2566
    %v2568 = vlaneseq
    %v2569 = vshrl.u32 %v2568, 7
    %v2570 = vsub.s32 %v2567, %v2569
    %v2571 = vrot.slane %v2543, %v2570
    %v2572 = vcombine.low %v2550, %v2557
    %v2573 = vcombine.low %v2564, %v2571
    %v2575 = vunpack.c.l.s4 1966171168
    %v2576 = vunpack.c.0.s8 %v2575
    %v2577 = vlaneseq
    %v2578 = vshrl.u32 %v2577, 7
    %v2579 = vsub.s32 %v2576, %v2578
    %v2580 = vrot.slane %v2572, %v2579
    %v2582 = vunpack.c.l.s4 1966171168
    %v2583 = vunpack.c.0.s8 %v2582
    %v2584 = vlaneseq
    %v2585 = vshrl.u32 %v2584, 7
    %v2586 = vsub.s32 %v2583, %v2585
    %v2587 = vrot.slane %v2573, %v2586
    %v2588 = vcombine.low %v2580, %v2587
    %v2589 = vcombine.low %v1483, %v1487
    %v2590 = vcombine.low %v1491, %v1495
    %v2591 = vcombine.low %v1499, %v1503
    %v2592 = vcombine.low %v1507, %v1511
    %v2594 = vunpack.c.l.s4 1966171168
    %v2595 = vunpack.c.0.s8 %v2594
    %v2596 = vlaneseq
    %v2597 = vshrl.u32 %v2596, 7
    %v2598 = vsub.s32 %v2595, %v2597
    %v2599 = vrot.slane %v2589, %v2598
    %v2601 = vunpack.c.l.s4 1966171168
    %v2602 = vunpack.c.0.s8 %v2601
    %v2603 = vlaneseq
    %v2604 = vshrl.u32 %v2603, 7
    %v2605 = vsub.s32 %v2602, %v2604
    %v2606 = vrot.slane %v2590, %v2605
    %v2608 = vunpack.c.l.s4 1966171168
    %v2609 = vunpack.c.0.s8 %v2608
    %v2610 = vlaneseq
    %v2611 = vshrl.u32 %v2610, 7
    %v2612 = vsub.s32 %v2609, %v2611
    %v2613 = vrot.slane %v2591, %v2612
    %v2615 = vunpack.c.l.s4 1966171168
    %v2616 = vunpack.c.0.s8 %v2615
    %v2617 = vlaneseq
    %v2618 = vshrl.u32 %v2617, 7
    %v2619 = vsub.s32 %v2616, %v2618
    %v2620 = vrot.slane %v2592, %v2619
    %v2621 = vcombine.low %v2599, %v2606
    %v2622 = vcombine.low %v2613, %v2620
    %v2624 = vunpack.c.l.s4 1966171168
    %v2625 = vunpack.c.0.s8 %v2624
    %v2626 = vlaneseq
    %v2627 = vshrl.u32 %v2626, 7
    %v2628 = vsub.s32 %v2625, %v2627
    %v2629 = vrot.slane %v2621, %v2628
    %v2631 = vunpack.c.l.s4 1966171168
    %v2632 = vunpack.c.0.s8 %v2631
    %v2633 = vlaneseq
    %v2634 = vshrl.u32 %v2633, 7
    %v2635 = vsub.s32 %v2632, %v2634
    %v2636 = vrot.slane %v2622, %v2635
    %v2637 = vcombine.low %v2629, %v2636
    %v2638 = vcombine.low %v1515, %v1519
    %v2639 = vcombine.low %v1523, %v1527
    %v2640 = vcombine.low %v1531, %v1535
    %v2641 = vcombine.low %v1539, %v1543
    %v2643 = vunpack.c.l.s4 1966171168
    %v2644 = vunpack.c.0.s8 %v2643
    %v2645 = vlaneseq
    %v2646 = vshrl.u32 %v2645, 7
    %v2647 = vsub.s32 %v2644, %v2646
    %v2648 = vrot.slane %v2638, %v2647
    %v2650 = vunpack.c.l.s4 1966171168
    %v2651 = vunpack.c.0.s8 %v2650
    %v2652 = vlaneseq
    %v2653 = vshrl.u32 %v2652, 7
    %v2654 = vsub.s32 %v2651, %v2653
    %v2655 = vrot.slane %v2639, %v2654
    %v2657 = vunpack.c.l.s4 1966171168
    %v2658 = vunpack.c.0.s8 %v2657
    %v2659 = vlaneseq
    %v2660 = vshrl.u32 %v2659, 7
    %v2661 = vsub.s32 %v2658, %v2660
    %v2662 = vrot.slane %v2640, %v2661
    %v2664 = vunpack.c.l.s4 1966171168
    %v2665 = vunpack.c.0.s8 %v2664
    %v2666 = vlaneseq
    %v2667 = vshrl.u32 %v2666, 7
    %v2668 = vsub.s32 %v2665, %v2667
    %v2669 = vrot.slane %v2641, %v2668
    %v2670 = vcombine.low %v2648, %v2655
    %v2671 = vcombine.low %v2662, %v2669
    %v2673 = vunpack.c.l.s4 1966171168
    %v2674 = vunpack.c.0.s8 %v2673
    %v2675 = vlaneseq
    %v2676 = vshrl.u32 %v2675, 7
    %v2677 = vsub.s32 %v2674, %v2676
    %v2678 = vrot.slane %v2670, %v2677
    %v2680 = vunpack.c.l.s4 1966171168
    %v2681 = vunpack.c.0.s8 %v2680
    %v2682 = vlaneseq
    %v2683 = vshrl.u32 %v2682, 7
    %v2684 = vsub.s32 %v2681, %v2683
    %v2685 = vrot.slane %v2671, %v2684
    %v2686 = vcombine.low %v2678, %v2685
    %v2687 = vcombine.low %v1547, %v1551
    %v2688 = vcombine.low %v1555, %v1559
    %v2689 = vcombine.low %v1563, %v1567
    %v2690 = vcombine.low %v1571, %v1575
    %v2692 = vunpack.c.l.s4 1966171168
    %v2693 = vunpack.c.0.s8 %v2692
    %v2694 = vlaneseq
    %v2695 = vshrl.u32 %v2694, 7
    %v2696 = vsub.s32 %v2693, %v2695
    %v2697 = vrot.slane %v2687, %v2696
    %v2699 = vunpack.c.l.s4 1966171168
    %v2700 = vunpack.c.0.s8 %v2699
    %v2701 = vlaneseq
    %v2702 = vshrl.u32 %v2701, 7
    %v2703 = vsub.s32 %v2700, %v2702
    %v2704 = vrot.slane %v2688, %v2703
    %v2706 = vunpack.c.l.s4 1966171168
    %v2707 = vunpack.c.0.s8 %v2706
    %v2708 = vlaneseq
    %v2709 = vshrl.u32 %v2708, 7
    %v2710 = vsub.s32 %v2707, %v2709
    %v2711 = vrot.slane %v2689, %v2710
    %v2713 = vunpack.c.l.s4 1966171168
    %v2714 = vunpack.c.0.s8 %v2713
    %v2715 = vlaneseq
    %v2716 = vshrl.u32 %v2715, 7
    %v2717 = vsub.s32 %v2714, %v2716
    %v2718 = vrot.slane %v2690, %v2717
    %v2719 = vcombine.low %v2697, %v2704
    %v2720 = vcombine.low %v2711, %v2718
    %v2722 = vunpack.c.l.s4 1966171168
    %v2723 = vunpack.c.0.s8 %v2722
    %v2724 = vlaneseq
    %v2725 = vshrl.u32 %v2724, 7
    %v2726 = vsub.s32 %v2723, %v2725
    %v2727 = vrot.slane %v2719, %v2726
    %v2729 = vunpack.c.l.s4 1966171168
    %v2730 = vunpack.c.0.s8 %v2729
    %v2731 = vlaneseq
    %v2732 = vshrl.u32 %v2731, 7
    %v2733 = vsub.s32 %v2730, %v2732
    %v2734 = vrot.slane %v2720, %v2733
    %v2735 = vcombine.low %v2727, %v2734
    %v2736 = vcombine.low %v1579, %v1583
    %v2737 = vcombine.low %v1587, %v1591
    %v2738 = vcombine.low %v1595, %v1599
    %v2739 = vcombine.low %v1603, %v1607
    %v2741 = vunpack.c.l.s4 1966171168
    %v2742 = vunpack.c.0.s8 %v2741
    %v2743 = vlaneseq
    %v2744 = vshrl.u32 %v2743, 7
    %v2745 = vsub.s32 %v2742, %v2744
    %v2746 = vrot.slane %v2736, %v2745
    %v2748 = vunpack.c.l.s4 1966171168
    %v2749 = vunpack.c.0.s8 %v2748
    %v2750 = vlaneseq
    %v2751 = vshrl.u32 %v2750, 7
    %v2752 = vsub.s32 %v2749, %v2751
    %v2753 = vrot.slane %v2737, %v2752
    %v2755 = vunpack.c.l.s4 1966171168
    %v2756 = vunpack.c.0.s8 %v2755
    %v2757 = vlaneseq
    %v2758 = vshrl.u32 %v2757, 7
    %v2759 = vsub.s32 %v2756, %v2758
    %v2760 = vrot.slane %v2738, %v2759
    %v2762 = vunpack.c.l.s4 1966171168
    %v2763 = vunpack.c.0.s8 %v2762
    %v2764 = vlaneseq
    %v2765 = vshrl.u32 %v2764, 7
    %v2766 = vsub.s32 %v2763, %v2765
    %v2767 = vrot.slane %v2739, %v2766
    %v2768 = vcombine.low %v2746, %v2753
    %v2769 = vcombine.low %v2760, %v2767
    %v2771 = vunpack.c.l.s4 1966171168
    %v2772 = vunpack.c.0.s8 %v2771
    %v2773 = vlaneseq
    %v2774 = vshrl.u32 %v2773, 7
    %v2775 = vsub.s32 %v2772, %v2774
    %v2776 = vrot.slane %v2768, %v2775
    %v2778 = vunpack.c.l.s4 1966171168
    %v2779 = vunpack.c.0.s8 %v2778
    %v2780 = vlaneseq
    %v2781 = vshrl.u32 %v2780, 7
    %v2782 = vsub.s32 %v2779, %v2781
    %v2783 = vrot.slane %v2769, %v2782
    %v2784 = vcombine.low %v2776, %v2783
    %v2785 = vcombine.low %v1611, %v1615
    %v2786 = vcombine.low %v1619, %v1623
    %v2787 = vcombine.low %v1627, %v1631
    %v2788 = vcombine.low %v1635, %v1639
    %v2790 = vunpack.c.l.s4 1966171168
    %v2791 = vunpack.c.0.s8 %v2790
    %v2792 = vlaneseq
    %v2793 = vshrl.u32 %v2792, 7
    %v2794 = vsub.s32 %v2791, %v2793
    %v2795 = vrot.slane %v2785, %v2794
    %v2797 = vunpack.c.l.s4 1966171168
    %v2798 = vunpack.c.0.s8 %v2797
    %v2799 = vlaneseq
    %v2800 = vshrl.u32 %v2799, 7
    %v2801 = vsub.s32 %v2798, %v2800
    %v2802 = vrot.slane %v2786, %v2801
    %v2804 = vunpack.c.l.s4 1966171168
    %v2805 = vunpack.c.0.s8 %v2804
    %v2806 = vlaneseq
    %v2807 = vshrl.u32 %v2806, 7
    %v2808 = vsub.s32 %v2805, %v2807
    %v2809 = vrot.slane %v2787, %v2808
    %v2811 = vunpack.c.l.s4 1966171168
    %v2812 = vunpack.c.0.s8 %v2811
    %v2813 = vlaneseq
    %v2814 = vshrl.u32 %v2813, 7
    %v2815 = vsub.s32 %v2812, %v2814
    %v2816 = vrot.slane %v2788, %v2815
    %v2817 = vcombine.low %v2795, %v2802
    %v2818 = vcombine.low %v2809, %v2816
    %v2820 = vunpack.c.l.s4 1966171168
    %v2821 = vunpack.c.0.s8 %v2820
    %v2822 = vlaneseq
    %v2823 = vshrl.u32 %v2822, 7
    %v2824 = vsub.s32 %v2821, %v2823
    %v2825 = vrot.slane %v2817, %v2824
    %v2827 = vunpack.c.l.s4 1966171168
    %v2828 = vunpack.c.0.s8 %v2827
    %v2829 = vlaneseq
    %v2830 = vshrl.u32 %v2829, 7
    %v2831 = vsub.s32 %v2828, %v2830
    %v2832 = vrot.slane %v2818, %v2831
    %v2833 = vcombine.low %v2825, %v2832
    %v2834 = vcombine.low %v1643, %v1647
    %v2835 = vcombine.low %v1651, %v1655
    %v2836 = vcombine.low %v1659, %v1663
    %v2837 = vcombine.low %v1667, %v1671
    %v2839 = vunpack.c.l.s4 1966171168
    %v2840 = vunpack.c.0.s8 %v2839
    %v2841 = vlaneseq
    %v2842 = vshrl.u32 %v2841, 7
    %v2843 = vsub.s32 %v2840, %v2842
    %v2844 = vrot.slane %v2834, %v2843
    %v2846 = vunpack.c.l.s4 1966171168
    %v2847 = vunpack.c.0.s8 %v2846
    %v2848 = vlaneseq
    %v2849 = vshrl.u32 %v2848, 7
    %v2850 = vsub.s32 %v2847, %v2849
    %v2851 = vrot.slane %v2835, %v2850
    %v2853 = vunpack.c.l.s4 1966171168
    %v2854 = vunpack.c.0.s8 %v2853
    %v2855 = vlaneseq
    %v2856 = vshrl.u32 %v2855, 7
    %v2857 = vsub.s32 %v2854, %v2856
    %v2858 = vrot.slane %v2836, %v2857
    %v2860 = vunpack.c.l.s4 1966171168
    %v2861 = vunpack.c.0.s8 %v2860
    %v2862 = vlaneseq
    %v2863 = vshrl.u32 %v2862, 7
    %v2864 = vsub.s32 %v2861, %v2863
    %v2865 = vrot.slane %v2837, %v2864
    %v2866 = vcombine.low %v2844, %v2851
    %v2867 = vcombine.low %v2858, %v2865
    %v2869 = vunpack.c.l.s4 1966171168
    %v2870 = vunpack.c.0.s8 %v2869
    %v2871 = vlaneseq
    %v2872 = vshrl.u32 %v2871, 7
    %v2873 = vsub.s32 %v2870, %v2872
    %v2874 = vrot.slane %v2866, %v2873
    %v2876 = vunpack.c.l.s4 1966171168
    %v2877 = vunpack.c.0.s8 %v2876
    %v2878 = vlaneseq
    %v2879 = vshrl.u32 %v2878, 7
    %v2880 = vsub.s32 %v2877, %v2879
    %v2881 = vrot.slane %v2867, %v2880
    %v2882 = vcombine.low %v2874, %v2881
    %v2883 = vcombine.low %v1675, %v1679
    %v2884 = vcombine.low %v1683, %v1687
    %v2885 = vcombine.low %v1691, %v1695
    %v2886 = vcombine.low %v1699, %v1703
    %v2888 = vunpack.c.l.s4 1966171168
    %v2889 = vunpack.c.0.s8 %v2888
    %v2890 = vlaneseq
    %v2891 = vshrl.u32 %v2890, 7
    %v2892 = vsub.s32 %v2889, %v2891
    %v2893 = vrot.slane %v2883, %v2892
    %v2895 = vunpack.c.l.s4 1966171168
    %v2896 = vunpack.c.0.s8 %v2895
    %v2897 = vlaneseq
    %v2898 = vshrl.u32 %v2897, 7
    %v2899 = vsub.s32 %v2896, %v2898
    %v2900 = vrot.slane %v2884, %v2899
    %v2902 = vunpack.c.l.s4 1966171168
    %v2903 = vunpack.c.0.s8 %v2902
    %v2904 = vlaneseq
    %v2905 = vshrl.u32 %v2904, 7
    %v2906 = vsub.s32 %v2903, %v2905
    %v2907 = vrot.slane %v2885, %v2906
    %v2909 = vunpack.c.l.s4 1966171168
    %v2910 = vunpack.c.0.s8 %v2909
    %v2911 = vlaneseq
    %v2912 = vshrl.u32 %v2911, 7
    %v2913 = vsub.s32 %v2910, %v2912
    %v2914 = vrot.slane %v2886, %v2913
    %v2915 = vcombine.low %v2893, %v2900
    %v2916 = vcombine.low %v2907, %v2914
    %v2918 = vunpack.c.l.s4 1966171168
    %v2919 = vunpack.c.0.s8 %v2918
    %v2920 = vlaneseq
    %v2921 = vshrl.u32 %v2920, 7
    %v2922 = vsub.s32 %v2919, %v2921
    %v2923 = vrot.slane %v2915, %v2922
    %v2925 = vunpack.c.l.s4 1966171168
    %v2926 = vunpack.c.0.s8 %v2925
    %v2927 = vlaneseq
    %v2928 = vshrl.u32 %v2927, 7
    %v2929 = vsub.s32 %v2926, %v2928
    %v2930 = vrot.slane %v2916, %v2929
    %v2931 = vcombine.low %v2923, %v2930
    %v2932 = vcombine.low %v1707, %v1711
    %v2933 = vcombine.low %v1715, %v1719
    %v2934 = vcombine.low %v1723, %v1727
    %v2935 = vcombine.low %v1731, %v1735
    %v2937 = vunpack.c.l.s4 1966171168
    %v2938 = vunpack.c.0.s8 %v2937
    %v2939 = vlaneseq
    %v2940 = vshrl.u32 %v2939, 7
    %v2941 = vsub.s32 %v2938, %v2940
    %v2942 = vrot.slane %v2932, %v2941
    %v2944 = vunpack.c.l.s4 1966171168
    %v2945 = vunpack.c.0.s8 %v2944
    %v2946 = vlaneseq
    %v2947 = vshrl.u32 %v2946, 7
    %v2948 = vsub.s32 %v2945, %v2947
    %v2949 = vrot.slane %v2933, %v2948
    %v2951 = vunpack.c.l.s4 1966171168
    %v2952 = vunpack.c.0.s8 %v2951
    %v2953 = vlaneseq
    %v2954 = vshrl.u32 %v2953, 7
    %v2955 = vsub.s32 %v2952, %v2954
    %v2956 = vrot.slane %v2934, %v2955
    %v2958 = vunpack.c.l.s4 1966171168
    %v2959 = vunpack.c.0.s8 %v2958
    %v2960 = vlaneseq
    %v2961 = vshrl.u32 %v2960, 7
    %v2962 = vsub.s32 %v2959, %v2961
    %v2963 = vrot.slane %v2935, %v2962
    %v2964 = vcombine.low %v2942, %v2949
    %v2965 = vcombine.low %v2956, %v2963
    %v2967 = vunpack.c.l.s4 1966171168
    %v2968 = vunpack.c.0.s8 %v2967
    %v2969 = vlaneseq
    %v2970 = vshrl.u32 %v2969, 7
    %v2971 = vsub.s32 %v2968, %v2970
    %v2972 = vrot.slane %v2964, %v2971
    %v2974 = vunpack.c.l.s4 1966171168
    %v2975 = vunpack.c.0.s8 %v2974
    %v2976 = vlaneseq
    %v2977 = vshrl.u32 %v2976, 7
    %v2978 = vsub.s32 %v2975, %v2977
    %v2979 = vrot.slane %v2965, %v2978
    %v2980 = vcombine.low %v2972, %v2979
    %v2981 = vcombine.low %v1739, %v1743
    %v2982 = vcombine.low %v1747, %v1751
    %v2983 = vcombine.low %v1755, %v1759
    %v2984 = vcombine.low %v1763, %v1767
    %v2986 = vunpack.c.l.s4 1966171168
    %v2987 = vunpack.c.0.s8 %v2986
    %v2988 = vlaneseq
    %v2989 = vshrl.u32 %v2988, 7
    %v2990 = vsub.s32 %v2987, %v2989
    %v2991 = vrot.slane %v2981, %v2990
    %v2993 = vunpack.c.l.s4 1966171168
    %v2994 = vunpack.c.0.s8 %v2993
    %v2995 = vlaneseq
    %v2996 = vshrl.u32 %v2995, 7
    %v2997 = vsub.s32 %v2994, %v2996
    %v2998 = vrot.slane %v2982, %v2997
    %v3000 = vunpack.c.l.s4 1966171168
    %v3001 = vunpack.c.0.s8 %v3000
    %v3002 = vlaneseq
    %v3003 = vshrl.u32 %v3002, 7
    %v3004 = vsub.s32 %v3001, %v3003
    %v3005 = vrot.slane %v2983, %v3004
    %v3007 = vunpack.c.l.s4 1966171168
    %v3008 = vunpack.c.0.s8 %v3007
    %v3009 = vlaneseq
    %v3010 = vshrl.u32 %v3009, 7
    %v3011 = vsub.s32 %v3008, %v3010
    %v3012 = vrot.slane %v2984, %v3011
    %v3013 = vcombine.low %v2991, %v2998
    %v3014 = vcombine.low %v3005, %v3012
    %v3016 = vunpack.c.l.s4 1966171168
    %v3017 = vunpack.c.0.s8 %v3016
    %v3018 = vlaneseq
    %v3019 = vshrl.u32 %v3018, 7
    %v3020 = vsub.s32 %v3017, %v3019
    %v3021 = vrot.slane %v3013, %v3020
    %v3023 = vunpack.c.l.s4 1966171168
    %v3024 = vunpack.c.0.s8 %v3023
    %v3025 = vlaneseq
    %v3026 = vshrl.u32 %v3025, 7
    %v3027 = vsub.s32 %v3024, %v3026
    %v3028 = vrot.slane %v3014, %v3027
    %v3029 = vcombine.low %v3021, %v3028
    %v3030 = vcombine.low %v1771, %v1775
    %v3031 = vcombine.low %v1779, %v1783
    %v3032 = vcombine.low %v1787, %v1791
    %v3033 = vcombine.low %v1795, %v1799
    %v3035 = vunpack.c.l.s4 1966171168
    %v3036 = vunpack.c.0.s8 %v3035
    %v3037 = vlaneseq
    %v3038 = vshrl.u32 %v3037, 7
    %v3039 = vsub.s32 %v3036, %v3038
    %v3040 = vrot.slane %v3030, %v3039
    %v3042 = vunpack.c.l.s4 1966171168
    %v3043 = vunpack.c.0.s8 %v3042
    %v3044 = vlaneseq
    %v3045 = vshrl.u32 %v3044, 7
    %v3046 = vsub.s32 %v3043, %v3045
    %v3047 = vrot.slane %v3031, %v3046
    %v3049 = vunpack.c.l.s4 1966171168
    %v3050 = vunpack.c.0.s8 %v3049
    %v3051 = vlaneseq
    %v3052 = vshrl.u32 %v3051, 7
    %v3053 = vsub.s32 %v3050, %v3052
    %v3054 = vrot.slane %v3032, %v3053
    %v3056 = vunpack.c.l.s4 1966171168
    %v3057 = vunpack.c.0.s8 %v3056
    %v3058 = vlaneseq
    %v3059 = vshrl.u32 %v3058, 7
    %v3060 = vsub.s32 %v3057, %v3059
    %v3061 = vrot.slane %v3033, %v3060
    %v3062 = vcombine.low %v3040, %v3047
    %v3063 = vcombine.low %v3054, %v3061
    %v3065 = vunpack.c.l.s4 1966171168
    %v3066 = vunpack.c.0.s8 %v3065
    %v3067 = vlaneseq
    %v3068 = vshrl.u32 %v3067, 7
    %v3069 = vsub.s32 %v3066, %v3068
    %v3070 = vrot.slane %v3062, %v3069
    %v3072 = vunpack.c.l.s4 1966171168
    %v3073 = vunpack.c.0.s8 %v3072
    %v3074 = vlaneseq
    %v3075 = vshrl.u32 %v3074, 7
    %v3076 = vsub.s32 %v3073, %v3075
    %v3077 = vrot.slane %v3063, %v3076
    %v3078 = vcombine.low %v3070, %v3077
    %v3079 = vcombine.low %v1803, %v1807
    %v3080 = vcombine.low %v1811, %v1815
    %v3081 = vcombine.low %v1819, %v1823
    %v3082 = vcombine.low %v1827, %v1831
    %v3084 = vunpack.c.l.s4 1966171168
    %v3085 = vunpack.c.0.s8 %v3084
    %v3086 = vlaneseq
    %v3087 = vshrl.u32 %v3086, 7
    %v3088 = vsub.s32 %v3085, %v3087
    %v3089 = vrot.slane %v3079, %v3088
    %v3091 = vunpack.c.l.s4 1966171168
    %v3092 = vunpack.c.0.s8 %v3091
    %v3093 = vlaneseq
    %v3094 = vshrl.u32 %v3093, 7
    %v3095 = vsub.s32 %v3092, %v3094
    %v3096 = vrot.slane %v3080, %v3095
    %v3098 = vunpack.c.l.s4 1966171168
    %v3099 = vunpack.c.0.s8 %v3098
    %v3100 = vlaneseq
    %v3101 = vshrl.u32 %v3100, 7
    %v3102 = vsub.s32 %v3099, %v3101
    %v3103 = vrot.slane %v3081, %v3102
    %v3105 = vunpack.c.l.s4 1966171168
    %v3106 = vunpack.c.0.s8 %v3105
    %v3107 = vlaneseq
    %v3108 = vshrl.u32 %v3107, 7
    %v3109 = vsub.s32 %v3106, %v3108
    %v3110 = vrot.slane %v3082, %v3109
    %v3111 = vcombine.low %v3089, %v3096
    %v3112 = vcombine.low %v3103, %v3110
    %v3114 = vunpack.c.l.s4 1966171168
    %v3115 = vunpack.c.0.s8 %v3114
    %v3116 = vlaneseq
    %v3117 = vshrl.u32 %v3116, 7
    %v3118 = vsub.s32 %v3115, %v3117
    %v3119 = vrot.slane %v3111, %v3118
    %v3121 = vunpack.c.l.s4 1966171168
    %v3122 = vunpack.c.0.s8 %v3121
    %v3123 = vlaneseq
    %v3124 = vshrl.u32 %v3123, 7
    %v3125 = vsub.s32 %v3122, %v3124
    %v3126 = vrot.slane %v3112, %v3125
    %v3127 = vcombine.low %v3119, %v3126
    %v3128 = vcombine.low %v1835, %v1839
    %v3129 = vcombine.low %v1843, %v1847
    %v3130 = vcombine.low %v1851, %v1855
    %v3131 = vcombine.low %v1859, %v1863
    %v3133 = vunpack.c.l.s4 1966171168
    %v3134 = vunpack.c.0.s8 %v3133
    %v3135 = vlaneseq
    %v3136 = vshrl.u32 %v3135, 7
    %v3137 = vsub.s32 %v3134, %v3136
    %v3138 = vrot.slane %v3128, %v3137
    %v3140 = vunpack.c.l.s4 1966171168
    %v3141 = vunpack.c.0.s8 %v3140
    %v3142 = vlaneseq
    %v3143 = vshrl.u32 %v3142, 7
    %v3144 = vsub.s32 %v3141, %v3143
    %v3145 = vrot.slane %v3129, %v3144
    %v3147 = vunpack.c.l.s4 1966171168
    %v3148 = vunpack.c.0.s8 %v3147
    %v3149 = vlaneseq
    %v3150 = vshrl.u32 %v3149, 7
    %v3151 = vsub.s32 %v3148, %v3150
    %v3152 = vrot.slane %v3130, %v3151
    %v3154 = vunpack.c.l.s4 1966171168
    %v3155 = vunpack.c.0.s8 %v3154
    %v3156 = vlaneseq
    %v3157 = vshrl.u32 %v3156, 7
    %v3158 = vsub.s32 %v3155, %v3157
    %v3159 = vrot.slane %v3131, %v3158
    %v3160 = vcombine.low %v3138, %v3145
    %v3161 = vcombine.low %v3152, %v3159
    %v3163 = vunpack.c.l.s4 1966171168
    %v3164 = vunpack.c.0.s8 %v3163
    %v3165 = vlaneseq
    %v3166 = vshrl.u32 %v3165, 7
    %v3167 = vsub.s32 %v3164, %v3166
    %v3168 = vrot.slane %v3160, %v3167
    %v3170 = vunpack.c.l.s4 1966171168
    %v3171 = vunpack.c.0.s8 %v3170
    %v3172 = vlaneseq
    %v3173 = vshrl.u32 %v3172, 7
    %v3174 = vsub.s32 %v3171, %v3173
    %v3175 = vrot.slane %v3161, %v3174
    %v3176 = vcombine.low %v3168, %v3175
    %v3177 = vcombine.low %v1867, %v1871
    %v3178 = vcombine.low %v1875, %v1879
    %v3179 = vcombine.low %v1883, %v1887
    %v3180 = vcombine.low %v1891, %v1895
    %v3182 = vunpack.c.l.s4 1966171168
    %v3183 = vunpack.c.0.s8 %v3182
    %v3184 = vlaneseq
    %v3185 = vshrl.u32 %v3184, 7
    %v3186 = vsub.s32 %v3183, %v3185
    %v3187 = vrot.slane %v3177, %v3186
    %v3189 = vunpack.c.l.s4 1966171168
    %v3190 = vunpack.c.0.s8 %v3189
    %v3191 = vlaneseq
    %v3192 = vshrl.u32 %v3191, 7
    %v3193 = vsub.s32 %v3190, %v3192
    %v3194 = vrot.slane %v3178, %v3193
    %v3196 = vunpack.c.l.s4 1966171168
    %v3197 = vunpack.c.0.s8 %v3196
    %v3198 = vlaneseq
    %v3199 = vshrl.u32 %v3198, 7
    %v3200 = vsub.s32 %v3197, %v3199
    %v3201 = vrot.slane %v3179, %v3200
    %v3203 = vunpack.c.l.s4 1966171168
    %v3204 = vunpack.c.0.s8 %v3203
    %v3205 = vlaneseq
    %v3206 = vshrl.u32 %v3205, 7
    %v3207 = vsub.s32 %v3204, %v3206
    %v3208 = vrot.slane %v3180, %v3207
    %v3209 = vcombine.low %v3187, %v3194
    %v3210 = vcombine.low %v3201, %v3208
    %v3212 = vunpack.c.l.s4 1966171168
    %v3213 = vunpack.c.0.s8 %v3212
    %v3214 = vlaneseq
    %v3215 = vshrl.u32 %v3214, 7
    %v3216 = vsub.s32 %v3213, %v3215
    %v3217 = vrot.slane %v3209, %v3216
    %v3219 = vunpack.c.l.s4 1966171168
    %v3220 = vunpack.c.0.s8 %v3219
    %v3221 = vlaneseq
    %v3222 = vshrl.u32 %v3221, 7
    %v3223 = vsub.s32 %v3220, %v3222
    %v3224 = vrot.slane %v3210, %v3223
    %v3225 = vcombine.low %v3217, %v3224
    %v3226 = vcombine.low %v1899, %v1903
    %v3227 = vcombine.low %v1907, %v1911
    %v3228 = vcombine.low %v1915, %v1919
    %v3229 = vcombine.low %v1923, %v1927
    %v3231 = vunpack.c.l.s4 1966171168
    %v3232 = vunpack.c.0.s8 %v3231
    %v3233 = vlaneseq
    %v3234 = vshrl.u32 %v3233, 7
    %v3235 = vsub.s32 %v3232, %v3234
    %v3236 = vrot.slane %v3226, %v3235
    %v3238 = vunpack.c.l.s4 1966171168
    %v3239 = vunpack.c.0.s8 %v3238
    %v3240 = vlaneseq
    %v3241 = vshrl.u32 %v3240, 7
    %v3242 = vsub.s32 %v3239, %v3241
    %v3243 = vrot.slane %v3227, %v3242
    %v3245 = vunpack.c.l.s4 1966171168
    %v3246 = vunpack.c.0.s8 %v3245
    %v3247 = vlaneseq
    %v3248 = vshrl.u32 %v3247, 7
    %v3249 = vsub.s32 %v3246, %v3248
    %v3250 = vrot.slane %v3228, %v3249
    %v3252 = vunpack.c.l.s4 1966171168
    %v3253 = vunpack.c.0.s8 %v3252
    %v3254 = vlaneseq
    %v3255 = vshrl.u32 %v3254, 7
    %v3256 = vsub.s32 %v3253, %v3255
    %v3257 = vrot.slane %v3229, %v3256
    %v3258 = vcombine.low %v3236, %v3243
    %v3259 = vcombine.low %v3250, %v3257
    %v3261 = vunpack.c.l.s4 1966171168
    %v3262 = vunpack.c.0.s8 %v3261
    %v3263 = vlaneseq
    %v3264 = vshrl.u32 %v3263, 7
    %v3265 = vsub.s32 %v3262, %v3264
    %v3266 = vrot.slane %v3258, %v3265
    %v3268 = vunpack.c.l.s4 1966171168
    %v3269 = vunpack.c.0.s8 %v3268
    %v3270 = vlaneseq
    %v3271 = vshrl.u32 %v3270, 7
    %v3272 = vsub.s32 %v3269, %v3271
    %v3273 = vrot.slane %v3259, %v3272
    %v3274 = vcombine.low %v3266, %v3273
    %v3275 = vcombine.low %v1931, %v1935
    %v3276 = vcombine.low %v1939, %v1943
    %v3277 = vcombine.low %v1947, %v1951
    %v3278 = vcombine.low %v1955, %v1959
    %v3280 = vunpack.c.l.s4 1966171168
    %v3281 = vunpack.c.0.s8 %v3280
    %v3282 = vlaneseq
    %v3283 = vshrl.u32 %v3282, 7
    %v3284 = vsub.s32 %v3281, %v3283
    %v3285 = vrot.slane %v3275, %v3284
    %v3287 = vunpack.c.l.s4 1966171168
    %v3288 = vunpack.c.0.s8 %v3287
    %v3289 = vlaneseq
    %v3290 = vshrl.u32 %v3289, 7
    %v3291 = vsub.s32 %v3288, %v3290
    %v3292 = vrot.slane %v3276, %v3291
    %v3294 = vunpack.c.l.s4 1966171168
    %v3295 = vunpack.c.0.s8 %v3294
    %v3296 = vlaneseq
    %v3297 = vshrl.u32 %v3296, 7
    %v3298 = vsub.s32 %v3295, %v3297
    %v3299 = vrot.slane %v3277, %v3298
    %v3301 = vunpack.c.l.s4 1966171168
    %v3302 = vunpack.c.0.s8 %v3301
    %v3303 = vlaneseq
    %v3304 = vshrl.u32 %v3303, 7
    %v3305 = vsub.s32 %v3302, %v3304
    %v3306 = vrot.slane %v3278, %v3305
    %v3307 = vcombine.low %v3285, %v3292
    %v3308 = vcombine.low %v3299, %v3306
    %v3310 = vunpack.c.l.s4 1966171168
    %v3311 = vunpack.c.0.s8 %v3310
    %v3312 = vlaneseq
    %v3313 = vshrl.u32 %v3312, 7
    %v3314 = vsub.s32 %v3311, %v3313
    %v3315 = vrot.slane %v3307, %v3314
    %v3317 = vunpack.c.l.s4 1966171168
    %v3318 = vunpack.c.0.s8 %v3317
    %v3319 = vlaneseq
    %v3320 = vshrl.u32 %v3319, 7
    %v3321 = vsub.s32 %v3318, %v3320
    %v3322 = vrot.slane %v3308, %v3321
    %v3323 = vcombine.low %v3315, %v3322
    %v3324 = vcombine.low %v1963, %v1967
    %v3325 = vcombine.low %v1971, %v1975
    %v3326 = vcombine.low %v1979, %v1983
    %v3327 = vcombine.low %v1987, %v1991
    %v3329 = vunpack.c.l.s4 1966171168
    %v3330 = vunpack.c.0.s8 %v3329
    %v3331 = vlaneseq
    %v3332 = vshrl.u32 %v3331, 7
    %v3333 = vsub.s32 %v3330, %v3332
    %v3334 = vrot.slane %v3324, %v3333
    %v3336 = vunpack.c.l.s4 1966171168
    %v3337 = vunpack.c.0.s8 %v3336
    %v3338 = vlaneseq
    %v3339 = vshrl.u32 %v3338, 7
    %v3340 = vsub.s32 %v3337, %v3339
    %v3341 = vrot.slane %v3325, %v3340
    %v3343 = vunpack.c.l.s4 1966171168
    %v3344 = vunpack.c.0.s8 %v3343
    %v3345 = vlaneseq
    %v3346 = vshrl.u32 %v3345, 7
    %v3347 = vsub.s32 %v3344, %v3346
    %v3348 = vrot.slane %v3326, %v3347
    %v3350 = vunpack.c.l.s4 1966171168
    %v3351 = vunpack.c.0.s8 %v3350
    %v3352 = vlaneseq
    %v3353 = vshrl.u32 %v3352, 7
    %v3354 = vsub.s32 %v3351, %v3353
    %v3355 = vrot.slane %v3327, %v3354
    %v3356 = vcombine.low %v3334, %v3341
    %v3357 = vcombine.low %v3348, %v3355
    %v3359 = vunpack.c.l.s4 1966171168
    %v3360 = vunpack.c.0.s8 %v3359
    %v3361 = vlaneseq
    %v3362 = vshrl.u32 %v3361, 7
    %v3363 = vsub.s32 %v3360, %v3362
    %v3364 = vrot.slane %v3356, %v3363
    %v3366 = vunpack.c.l.s4 1966171168
    %v3367 = vunpack.c.0.s8 %v3366
    %v3368 = vlaneseq
    %v3369 = vshrl.u32 %v3368, 7
    %v3370 = vsub.s32 %v3367, %v3369
    %v3371 = vrot.slane %v3357, %v3370
    %v3372 = vcombine.low %v3364, %v3371
    %v3373 = vcombine.low %v1995, %v1999
    %v3374 = vcombine.low %v2003, %v2007
    %v3375 = vcombine.low %v2011, %v2015
    %v3376 = vcombine.low %v2019, %v2023
    %v3378 = vunpack.c.l.s4 1966171168
    %v3379 = vunpack.c.0.s8 %v3378
    %v3380 = vlaneseq
    %v3381 = vshrl.u32 %v3380, 7
    %v3382 = vsub.s32 %v3379, %v3381
    %v3383 = vrot.slane %v3373, %v3382
    %v3385 = vunpack.c.l.s4 1966171168
    %v3386 = vunpack.c.0.s8 %v3385
    %v3387 = vlaneseq
    %v3388 = vshrl.u32 %v3387, 7
    %v3389 = vsub.s32 %v3386, %v3388
    %v3390 = vrot.slane %v3374, %v3389
    %v3392 = vunpack.c.l.s4 1966171168
    %v3393 = vunpack.c.0.s8 %v3392
    %v3394 = vlaneseq
    %v3395 = vshrl.u32 %v3394, 7
    %v3396 = vsub.s32 %v3393, %v3395
    %v3397 = vrot.slane %v3375, %v3396
    %v3399 = vunpack.c.l.s4 1966171168
    %v3400 = vunpack.c.0.s8 %v3399
    %v3401 = vlaneseq
    %v3402 = vshrl.u32 %v3401, 7
    %v3403 = vsub.s32 %v3400, %v3402
    %v3404 = vrot.slane %v3376, %v3403
    %v3405 = vcombine.low %v3383, %v3390
    %v3406 = vcombine.low %v3397, %v3404
    %v3408 = vunpack.c.l.s4 1966171168
    %v3409 = vunpack.c.0.s8 %v3408
    %v3410 = vlaneseq
    %v3411 = vshrl.u32 %v3410, 7
    %v3412 = vsub.s32 %v3409, %v3411
    %v3413 = vrot.slane %v3405, %v3412
    %v3415 = vunpack.c.l.s4 1966171168
    %v3416 = vunpack.c.0.s8 %v3415
    %v3417 = vlaneseq
    %v3418 = vshrl.u32 %v3417, 7
    %v3419 = vsub.s32 %v3416, %v3418
    %v3420 = vrot.slane %v3406, %v3419
    %v3421 = vcombine.low %v3413, %v3420
    %v3422 = vcombine.low %v2027, %v2031
    %v3423 = vcombine.low %v2035, %v2039
    %v3424 = vcombine.low %v2043, %v2047
    %v3425 = vcombine.low %v2051, %v2055
    %v3427 = vunpack.c.l.s4 1966171168
    %v3428 = vunpack.c.0.s8 %v3427
    %v3429 = vlaneseq
    %v3430 = vshrl.u32 %v3429, 7
    %v3431 = vsub.s32 %v3428, %v3430
    %v3432 = vrot.slane %v3422, %v3431
    %v3434 = vunpack.c.l.s4 1966171168
    %v3435 = vunpack.c.0.s8 %v3434
    %v3436 = vlaneseq
    %v3437 = vshrl.u32 %v3436, 7
    %v3438 = vsub.s32 %v3435, %v3437
    %v3439 = vrot.slane %v3423, %v3438
    %v3441 = vunpack.c.l.s4 1966171168
    %v3442 = vunpack.c.0.s8 %v3441
    %v3443 = vlaneseq
    %v3444 = vshrl.u32 %v3443, 7
    %v3445 = vsub.s32 %v3442, %v3444
    %v3446 = vrot.slane %v3424, %v3445
    %v3448 = vunpack.c.l.s4 1966171168
    %v3449 = vunpack.c.0.s8 %v3448
    %v3450 = vlaneseq
    %v3451 = vshrl.u32 %v3450, 7
    %v3452 = vsub.s32 %v3449, %v3451
    %v3453 = vrot.slane %v3425, %v3452
    %v3454 = vcombine.low %v3432, %v3439
    %v3455 = vcombine.low %v3446, %v3453
    %v3457 = vunpack.c.l.s4 1966171168
    %v3458 = vunpack.c.0.s8 %v3457
    %v3459 = vlaneseq
    %v3460 = vshrl.u32 %v3459, 7
    %v3461 = vsub.s32 %v3458, %v3460
    %v3462 = vrot.slane %v3454, %v3461
    %v3464 = vunpack.c.l.s4 1966171168
    %v3465 = vunpack.c.0.s8 %v3464
    %v3466 = vlaneseq
    %v3467 = vshrl.u32 %v3466, 7
    %v3468 = vsub.s32 %v3465, %v3467
    %v3469 = vrot.slane %v3455, %v3468
    %v3470 = vcombine.low %v3462, %v3469
    %v3471 = vcombine.low %v2059, %v2063
    %v3472 = vcombine.low %v2067, %v2071
    %v3473 = vcombine.low %v2075, %v2079
    %v3474 = vcombine.low %v2083, %v2087
    %v3476 = vunpack.c.l.s4 1966171168
    %v3477 = vunpack.c.0.s8 %v3476
    %v3478 = vlaneseq
    %v3479 = vshrl.u32 %v3478, 7
    %v3480 = vsub.s32 %v3477, %v3479
    %v3481 = vrot.slane %v3471, %v3480
    %v3483 = vunpack.c.l.s4 1966171168
    %v3484 = vunpack.c.0.s8 %v3483
    %v3485 = vlaneseq
    %v3486 = vshrl.u32 %v3485, 7
    %v3487 = vsub.s32 %v3484, %v3486
    %v3488 = vrot.slane %v3472, %v3487
    %v3490 = vunpack.c.l.s4 1966171168
    %v3491 = vunpack.c.0.s8 %v3490
    %v3492 = vlaneseq
    %v3493 = vshrl.u32 %v3492, 7
    %v3494 = vsub.s32 %v3491, %v3493
    %v3495 = vrot.slane %v3473, %v3494
    %v3497 = vunpack.c.l.s4 1966171168
    %v3498 = vunpack.c.0.s8 %v3497
    %v3499 = vlaneseq
    %v3500 = vshrl.u32 %v3499, 7
    %v3501 = vsub.s32 %v3498, %v3500
    %v3502 = vrot.slane %v3474, %v3501
    %v3503 = vcombine.low %v3481, %v3488
    %v3504 = vcombine.low %v3495, %v3502
    %v3506 = vunpack.c.l.s4 1966171168
    %v3507 = vunpack.c.0.s8 %v3506
    %v3508 = vlaneseq
    %v3509 = vshrl.u32 %v3508, 7
    %v3510 = vsub.s32 %v3507, %v3509
    %v3511 = vrot.slane %v3503, %v3510
    %v3513 = vunpack.c.l.s4 1966171168
    %v3514 = vunpack.c.0.s8 %v3513
    %v3515 = vlaneseq
    %v3516 = vshrl.u32 %v3515, 7
    %v3517 = vsub.s32 %v3514, %v3516
    %v3518 = vrot.slane %v3504, %v3517
    %v3519 = vcombine.low %v3511, %v3518
    %v3520 = vcombine.low %v2091, %v2095
    %v3521 = vcombine.low %v2099, %v2103
    %v3522 = vcombine.low %v2107, %v2111
    %v3523 = vcombine.low %v2115, %v2119
    %v3525 = vunpack.c.l.s4 1966171168
    %v3526 = vunpack.c.0.s8 %v3525
    %v3527 = vlaneseq
    %v3528 = vshrl.u32 %v3527, 7
    %v3529 = vsub.s32 %v3526, %v3528
    %v3530 = vrot.slane %v3520, %v3529
    %v3532 = vunpack.c.l.s4 1966171168
    %v3533 = vunpack.c.0.s8 %v3532
    %v3534 = vlaneseq
    %v3535 = vshrl.u32 %v3534, 7
    %v3536 = vsub.s32 %v3533, %v3535
    %v3537 = vrot.slane %v3521, %v3536
    %v3539 = vunpack.c.l.s4 1966171168
    %v3540 = vunpack.c.0.s8 %v3539
    %v3541 = vlaneseq
    %v3542 = vshrl.u32 %v3541, 7
    %v3543 = vsub.s32 %v3540, %v3542
    %v3544 = vrot.slane %v3522, %v3543
    %v3546 = vunpack.c.l.s4 1966171168
    %v3547 = vunpack.c.0.s8 %v3546
    %v3548 = vlaneseq
    %v3549 = vshrl.u32 %v3548, 7
    %v3550 = vsub.s32 %v3547, %v3549
    %v3551 = vrot.slane %v3523, %v3550
    %v3552 = vcombine.low %v3530, %v3537
    %v3553 = vcombine.low %v3544, %v3551
    %v3555 = vunpack.c.l.s4 1966171168
    %v3556 = vunpack.c.0.s8 %v3555
    %v3557 = vlaneseq
    %v3558 = vshrl.u32 %v3557, 7
    %v3559 = vsub.s32 %v3556, %v3558
    %v3560 = vrot.slane %v3552, %v3559
    %v3562 = vunpack.c.l.s4 1966171168
    %v3563 = vunpack.c.0.s8 %v3562
    %v3564 = vlaneseq
    %v3565 = vshrl.u32 %v3564, 7
    %v3566 = vsub.s32 %v3563, %v3565
    %v3567 = vrot.slane %v3553, %v3566
    %v3568 = vcombine.low %v3560, %v3567
    %v3569 = vcombine.low %v2123, %v2127
    %v3570 = vcombine.low %v2131, %v2135
    %v3571 = vcombine.low %v2139, %v2143
    %v3572 = vcombine.low %v2147, %v2151
    %v3574 = vunpack.c.l.s4 1966171168
    %v3575 = vunpack.c.0.s8 %v3574
    %v3576 = vlaneseq
    %v3577 = vshrl.u32 %v3576, 7
    %v3578 = vsub.s32 %v3575, %v3577
    %v3579 = vrot.slane %v3569, %v3578
    %v3581 = vunpack.c.l.s4 1966171168
    %v3582 = vunpack.c.0.s8 %v3581
    %v3583 = vlaneseq
    %v3584 = vshrl.u32 %v3583, 7
    %v3585 = vsub.s32 %v3582, %v3584
    %v3586 = vrot.slane %v3570, %v3585
    %v3588 = vunpack.c.l.s4 1966171168
    %v3589 = vunpack.c.0.s8 %v3588
    %v3590 = vlaneseq
    %v3591 = vshrl.u32 %v3590, 7
    %v3592 = vsub.s32 %v3589, %v3591
    %v3593 = vrot.slane %v3571, %v3592
    %v3595 = vunpack.c.l.s4 1966171168
    %v3596 = vunpack.c.0.s8 %v3595
    %v3597 = vlaneseq
    %v3598 = vshrl.u32 %v3597, 7
    %v3599 = vsub.s32 %v3596, %v3598
    %v3600 = vrot.slane %v3572, %v3599
    %v3601 = vcombine.low %v3579, %v3586
    %v3602 = vcombine.low %v3593, %v3600
    %v3604 = vunpack.c.l.s4 1966171168
    %v3605 = vunpack.c.0.s8 %v3604
    %v3606 = vlaneseq
    %v3607 = vshrl.u32 %v3606, 7
    %v3608 = vsub.s32 %v3605, %v3607
    %v3609 = vrot.slane %v3601, %v3608
    %v3611 = vunpack.c.l.s4 1966171168
    %v3612 = vunpack.c.0.s8 %v3611
    %v3613 = vlaneseq
    %v3614 = vshrl.u32 %v3613, 7
    %v3615 = vsub.s32 %v3612, %v3614
    %v3616 = vrot.slane %v3602, %v3615
    %v3617 = vcombine.low %v3609, %v3616
    %v3618 = vcombine.low %v2155, %v2159
    %v3619 = vcombine.low %v2163, %v2167
    %v3620 = vcombine.low %v2171, %v2175
    %v3621 = vcombine.low %v2179, %v2183
    %v3623 = vunpack.c.l.s4 1966171168
    %v3624 = vunpack.c.0.s8 %v3623
    %v3625 = vlaneseq
    %v3626 = vshrl.u32 %v3625, 7
    %v3627 = vsub.s32 %v3624, %v3626
    %v3628 = vrot.slane %v3618, %v3627
    %v3630 = vunpack.c.l.s4 1966171168
    %v3631 = vunpack.c.0.s8 %v3630
    %v3632 = vlaneseq
    %v3633 = vshrl.u32 %v3632, 7
    %v3634 = vsub.s32 %v3631, %v3633
    %v3635 = vrot.slane %v3619, %v3634
    %v3637 = vunpack.c.l.s4 1966171168
    %v3638 = vunpack.c.0.s8 %v3637
    %v3639 = vlaneseq
    %v3640 = vshrl.u32 %v3639, 7
    %v3641 = vsub.s32 %v3638, %v3640
    %v3642 = vrot.slane %v3620, %v3641
    %v3644 = vunpack.c.l.s4 1966171168
    %v3645 = vunpack.c.0.s8 %v3644
    %v3646 = vlaneseq
    %v3647 = vshrl.u32 %v3646, 7
    %v3648 = vsub.s32 %v3645, %v3647
    %v3649 = vrot.slane %v3621, %v3648
    %v3650 = vcombine.low %v3628, %v3635
    %v3651 = vcombine.low %v3642, %v3649
    %v3653 = vunpack.c.l.s4 1966171168
    %v3654 = vunpack.c.0.s8 %v3653
    %v3655 = vlaneseq
    %v3656 = vshrl.u32 %v3655, 7
    %v3657 = vsub.s32 %v3654, %v3656
    %v3658 = vrot.slane %v3650, %v3657
    %v3660 = vunpack.c.l.s4 1966171168
    %v3661 = vunpack.c.0.s8 %v3660
    %v3662 = vlaneseq
    %v3663 = vshrl.u32 %v3662, 7
    %v3664 = vsub.s32 %v3661, %v3663
    %v3665 = vrot.slane %v3651, %v3664
    %v3666 = vcombine.low %v3658, %v3665
    %v3667 = vcombine.low %v2187, %v2191
    %v3668 = vcombine.low %v2195, %v2199
    %v3669 = vcombine.low %v2203, %v2207
    %v3670 = vcombine.low %v2211, %v2215
    %v3672 = vunpack.c.l.s4 1966171168
    %v3673 = vunpack.c.0.s8 %v3672
    %v3674 = vlaneseq
    %v3675 = vshrl.u32 %v3674, 7
    %v3676 = vsub.s32 %v3673, %v3675
    %v3677 = vrot.slane %v3667, %v3676
    %v3679 = vunpack.c.l.s4 1966171168
    %v3680 = vunpack.c.0.s8 %v3679
    %v3681 = vlaneseq
    %v3682 = vshrl.u32 %v3681, 7
    %v3683 = vsub.s32 %v3680, %v3682
    %v3684 = vrot.slane %v3668, %v3683
    %v3686 = vunpack.c.l.s4 1966171168
    %v3687 = vunpack.c.0.s8 %v3686
    %v3688 = vlaneseq
    %v3689 = vshrl.u32 %v3688, 7
    %v3690 = vsub.s32 %v3687, %v3689
    %v3691 = vrot.slane %v3669, %v3690
    %v3693 = vunpack.c.l.s4 1966171168
    %v3694 = vunpack.c.0.s8 %v3693
    %v3695 = vlaneseq
    %v3696 = vshrl.u32 %v3695, 7
    %v3697 = vsub.s32 %v3694, %v3696
    %v3698 = vrot.slane %v3670, %v3697
    %v3699 = vcombine.low %v3677, %v3684
    %v3700 = vcombine.low %v3691, %v3698
    %v3702 = vunpack.c.l.s4 1966171168
    %v3703 = vunpack.c.0.s8 %v3702
    %v3704 = vlaneseq
    %v3705 = vshrl.u32 %v3704, 7
    %v3706 = vsub.s32 %v3703, %v3705
    %v3707 = vrot.slane %v3699, %v3706
    %v3709 = vunpack.c.l.s4 1966171168
    %v3710 = vunpack.c.0.s8 %v3709
    %v3711 = vlaneseq
    %v3712 = vshrl.u32 %v3711, 7
    %v3713 = vsub.s32 %v3710, %v3712
    %v3714 = vrot.slane %v3700, %v3713
    %v3715 = vcombine.low %v3707, %v3714
    %v3716 = vcombine.low %v2219, %v2223
    %v3717 = vcombine.low %v2227, %v2231
    %v3718 = vcombine.low %v2235, %v2239
    %v3719 = vcombine.low %v2243, %v2247
    %v3721 = vunpack.c.l.s4 1966171168
    %v3722 = vunpack.c.0.s8 %v3721
    %v3723 = vlaneseq
    %v3724 = vshrl.u32 %v3723, 7
    %v3725 = vsub.s32 %v3722, %v3724
    %v3726 = vrot.slane %v3716, %v3725
    %v3728 = vunpack.c.l.s4 1966171168
    %v3729 = vunpack.c.0.s8 %v3728
    %v3730 = vlaneseq
    %v3731 = vshrl.u32 %v3730, 7
    %v3732 = vsub.s32 %v3729, %v3731
    %v3733 = vrot.slane %v3717, %v3732
    %v3735 = vunpack.c.l.s4 1966171168
    %v3736 = vunpack.c.0.s8 %v3735
    %v3737 = vlaneseq
    %v3738 = vshrl.u32 %v3737, 7
    %v3739 = vsub.s32 %v3736, %v3738
    %v3740 = vrot.slane %v3718, %v3739
    %v3742 = vunpack.c.l.s4 1966171168
    %v3743 = vunpack.c.0.s8 %v3742
    %v3744 = vlaneseq
    %v3745 = vshrl.u32 %v3744, 7
    %v3746 = vsub.s32 %v3743, %v3745
    %v3747 = vrot.slane %v3719, %v3746
    %v3748 = vcombine.low %v3726, %v3733
    %v3749 = vcombine.low %v3740, %v3747
    %v3751 = vunpack.c.l.s4 1966171168
    %v3752 = vunpack.c.0.s8 %v3751
    %v3753 = vlaneseq
    %v3754 = vshrl.u32 %v3753, 7
    %v3755 = vsub.s32 %v3752, %v3754
    %v3756 = vrot.slane %v3748, %v3755
    %v3758 = vunpack.c.l.s4 1966171168
    %v3759 = vunpack.c.0.s8 %v3758
    %v3760 = vlaneseq
    %v3761 = vshrl.u32 %v3760, 7
    %v3762 = vsub.s32 %v3759, %v3761
    %v3763 = vrot.slane %v3749, %v3762
    %v3764 = vcombine.low %v3756, %v3763
    %v3765 = vcombine.low %v2251, %v2255
    %v3766 = vcombine.low %v2259, %v2263
    %v3767 = vcombine.low %v2267, %v2271
    %v3768 = vcombine.low %v2275, %v2279
    %v3770 = vunpack.c.l.s4 1966171168
    %v3771 = vunpack.c.0.s8 %v3770
    %v3772 = vlaneseq
    %v3773 = vshrl.u32 %v3772, 7
    %v3774 = vsub.s32 %v3771, %v3773
    %v3775 = vrot.slane %v3765, %v3774
    %v3777 = vunpack.c.l.s4 1966171168
    %v3778 = vunpack.c.0.s8 %v3777
    %v3779 = vlaneseq
    %v3780 = vshrl.u32 %v3779, 7
    %v3781 = vsub.s32 %v3778, %v3780
    %v3782 = vrot.slane %v3766, %v3781
    %v3784 = vunpack.c.l.s4 1966171168
    %v3785 = vunpack.c.0.s8 %v3784
    %v3786 = vlaneseq
    %v3787 = vshrl.u32 %v3786, 7
    %v3788 = vsub.s32 %v3785, %v3787
    %v3789 = vrot.slane %v3767, %v3788
    %v3791 = vunpack.c.l.s4 1966171168
    %v3792 = vunpack.c.0.s8 %v3791
    %v3793 = vlaneseq
    %v3794 = vshrl.u32 %v3793, 7
    %v3795 = vsub.s32 %v3792, %v3794
    %v3796 = vrot.slane %v3768, %v3795
    %v3797 = vcombine.low %v3775, %v3782
    %v3798 = vcombine.low %v3789, %v3796
    %v3800 = vunpack.c.l.s4 1966171168
    %v3801 = vunpack.c.0.s8 %v3800
    %v3802 = vlaneseq
    %v3803 = vshrl.u32 %v3802, 7
    %v3804 = vsub.s32 %v3801, %v3803
    %v3805 = vrot.slane %v3797, %v3804
    %v3807 = vunpack.c.l.s4 1966171168
    %v3808 = vunpack.c.0.s8 %v3807
    %v3809 = vlaneseq
    %v3810 = vshrl.u32 %v3809, 7
    %v3811 = vsub.s32 %v3808, %v3810
    %v3812 = vrot.slane %v3798, %v3811
    %v3813 = vcombine.low %v3805, %v3812
    %v3814 = vcombine.low %v2283, %v2287
    %v3815 = vcombine.low %v2291, %v2295
    %v3816 = vcombine.low %v2299, %v2303
    %v3817 = vcombine.low %v2307, %v2311
    %v3819 = vunpack.c.l.s4 1966171168
    %v3820 = vunpack.c.0.s8 %v3819
    %v3821 = vlaneseq
    %v3822 = vshrl.u32 %v3821, 7
    %v3823 = vsub.s32 %v3820, %v3822
    %v3824 = vrot.slane %v3814, %v3823
    %v3826 = vunpack.c.l.s4 1966171168
    %v3827 = vunpack.c.0.s8 %v3826
    %v3828 = vlaneseq
    %v3829 = vshrl.u32 %v3828, 7
    %v3830 = vsub.s32 %v3827, %v3829
    %v3831 = vrot.slane %v3815, %v3830
    %v3833 = vunpack.c.l.s4 1966171168
    %v3834 = vunpack.c.0.s8 %v3833
    %v3835 = vlaneseq
    %v3836 = vshrl.u32 %v3835, 7
    %v3837 = vsub.s32 %v3834, %v3836
    %v3838 = vrot.slane %v3816, %v3837
    %v3840 = vunpack.c.l.s4 1966171168
    %v3841 = vunpack.c.0.s8 %v3840
    %v3842 = vlaneseq
    %v3843 = vshrl.u32 %v3842, 7
    %v3844 = vsub.s32 %v3841, %v3843
    %v3845 = vrot.slane %v3817, %v3844
    %v3846 = vcombine.low %v3824, %v3831
    %v3847 = vcombine.low %v3838, %v3845
    %v3849 = vunpack.c.l.s4 1966171168
    %v3850 = vunpack.c.0.s8 %v3849
    %v3851 = vlaneseq
    %v3852 = vshrl.u32 %v3851, 7
    %v3853 = vsub.s32 %v3850, %v3852
    %v3854 = vrot.slane %v3846, %v3853
    %v3856 = vunpack.c.l.s4 1966171168
    %v3857 = vunpack.c.0.s8 %v3856
    %v3858 = vlaneseq
    %v3859 = vshrl.u32 %v3858, 7
    %v3860 = vsub.s32 %v3857, %v3859
    %v3861 = vrot.slane %v3847, %v3860
    %v3862 = vcombine.low %v3854, %v3861
    %v3863 = vcombine.low %v2315, %v2319
    %v3864 = vcombine.low %v2323, %v2327
    %v3865 = vcombine.low %v2331, %v2335
    %v3866 = vcombine.low %v2339, %v2343
    %v3868 = vunpack.c.l.s4 1966171168
    %v3869 = vunpack.c.0.s8 %v3868
    %v3870 = vlaneseq
    %v3871 = vshrl.u32 %v3870, 7
    %v3872 = vsub.s32 %v3869, %v3871
    %v3873 = vrot.slane %v3863, %v3872
    %v3875 = vunpack.c.l.s4 1966171168
    %v3876 = vunpack.c.0.s8 %v3875
    %v3877 = vlaneseq
    %v3878 = vshrl.u32 %v3877, 7
    %v3879 = vsub.s32 %v3876, %v3878
    %v3880 = vrot.slane %v3864, %v3879
    %v3882 = vunpack.c.l.s4 1966171168
    %v3883 = vunpack.c.0.s8 %v3882
    %v3884 = vlaneseq
    %v3885 = vshrl.u32 %v3884, 7
    %v3886 = vsub.s32 %v3883, %v3885
    %v3887 = vrot.slane %v3865, %v3886
    %v3889 = vunpack.c.l.s4 1966171168
    %v3890 = vunpack.c.0.s8 %v3889
    %v3891 = vlaneseq
    %v3892 = vshrl.u32 %v3891, 7
    %v3893 = vsub.s32 %v3890, %v3892
    %v3894 = vrot.slane %v3866, %v3893
    %v3895 = vcombine.low %v3873, %v3880
    %v3896 = vcombine.low %v3887, %v3894
    %v3898 = vunpack.c.l.s4 1966171168
    %v3899 = vunpack.c.0.s8 %v3898
    %v3900 = vlaneseq
    %v3901 = vshrl.u32 %v3900, 7
    %v3902 = vsub.s32 %v3899, %v3901
    %v3903 = vrot.slane %v3895, %v3902
    %v3905 = vunpack.c.l.s4 1966171168
    %v3906 = vunpack.c.0.s8 %v3905
    %v3907 = vlaneseq
    %v3908 = vshrl.u32 %v3907, 7
    %v3909 = vsub.s32 %v3906, %v3908
    %v3910 = vrot.slane %v3896, %v3909
    %v3911 = vcombine.low %v3903, %v3910
    %3912 = vset.pattern.permute.xlu0 0
    %3913 = vperm.xlu0 %3912, %v2392
    %v3914 = vpop.permute.xlu0 %3913
    %3915 = vset.pattern.permute.xlu0 0
    %3916 = vperm.xlu0 %3915, %v2441
    %v3917 = vpop.permute.xlu0 %3916
    %3918 = vset.pattern.permute.xlu0 0
    %3919 = vperm.xlu0 %3918, %v2490
    %v3920 = vpop.permute.xlu0 %3919
    %3921 = vset.pattern.permute.xlu0 0
    %3922 = vperm.xlu0 %3921, %v2539
    %v3923 = vpop.permute.xlu0 %3922
    %3924 = vset.pattern.permute.xlu0 0
    %3925 = vperm.xlu0 %3924, %v2588
    %v3926 = vpop.permute.xlu0 %3925
    %3927 = vset.pattern.permute.xlu0 0
    %3928 = vperm.xlu0 %3927, %v2637
    %v3929 = vpop.permute.xlu0 %3928
    %3930 = vset.pattern.permute.xlu0 0
    %3931 = vperm.xlu0 %3930, %v2686
    %v3932 = vpop.permute.xlu0 %3931
    %3933 = vset.pattern.permute.xlu0 0
    %3934 = vperm.xlu0 %3933, %v2735
    %v3935 = vpop.permute.xlu0 %3934
    %3936 = vset.pattern.permute.xlu0 0
    %3937 = vperm.xlu0 %3936, %v2784
    %v3938 = vpop.permute.xlu0 %3937
    %3939 = vset.pattern.permute.xlu0 0
    %3940 = vperm.xlu0 %3939, %v2833
    %v3941 = vpop.permute.xlu0 %3940
    %3942 = vset.pattern.permute.xlu0 0
    %3943 = vperm.xlu0 %3942, %v2882
    %v3944 = vpop.permute.xlu0 %3943
    %3945 = vset.pattern.permute.xlu0 0
    %3946 = vperm.xlu0 %3945, %v2931
    %v3947 = vpop.permute.xlu0 %3946
    %3948 = vset.pattern.permute.xlu0 0
    %3949 = vperm.xlu0 %3948, %v2980
    %v3950 = vpop.permute.xlu0 %3949
    %3951 = vset.pattern.permute.xlu0 0
    %3952 = vperm.xlu0 %3951, %v3029
    %v3953 = vpop.permute.xlu0 %3952
    %3954 = vset.pattern.permute.xlu0 0
    %3955 = vperm.xlu0 %3954, %v3078
    %v3956 = vpop.permute.xlu0 %3955
    %3957 = vset.pattern.permute.xlu0 0
    %3958 = vperm.xlu0 %3957, %v3127
    %v3959 = vpop.permute.xlu0 %3958
    %3960 = vset.pattern.permute.xlu0 0
    %3961 = vperm.xlu0 %3960, %v3176
    %v3962 = vpop.permute.xlu0 %3961
    %3963 = vset.pattern.permute.xlu0 0
    %3964 = vperm.xlu0 %3963, %v3225
    %v3965 = vpop.permute.xlu0 %3964
    %3966 = vset.pattern.permute.xlu0 0
    %3967 = vperm.xlu0 %3966, %v3274
    %v3968 = vpop.permute.xlu0 %3967
    %3969 = vset.pattern.permute.xlu0 0
    %3970 = vperm.xlu0 %3969, %v3323
    %v3971 = vpop.permute.xlu0 %3970
    %3972 = vset.pattern.permute.xlu0 0
    %3973 = vperm.xlu0 %3972, %v3372
    %v3974 = vpop.permute.xlu0 %3973
    %3975 = vset.pattern.permute.xlu0 0
    %3976 = vperm.xlu0 %3975, %v3421
    %v3977 = vpop.permute.xlu0 %3976
    %3978 = vset.pattern.permute.xlu0 0
    %3979 = vperm.xlu0 %3978, %v3470
    %v3980 = vpop.permute.xlu0 %3979
    %3981 = vset.pattern.permute.xlu0 0
    %3982 = vperm.xlu0 %3981, %v3519
    %v3983 = vpop.permute.xlu0 %3982
    %3984 = vset.pattern.permute.xlu0 0
    %3985 = vperm.xlu0 %3984, %v3568
    %v3986 = vpop.permute.xlu0 %3985
    %3987 = vset.pattern.permute.xlu0 0
    %3988 = vperm.xlu0 %3987, %v3617
    %v3989 = vpop.permute.xlu0 %3988
    %3990 = vset.pattern.permute.xlu0 0
    %3991 = vperm.xlu0 %3990, %v3666
    %v3992 = vpop.permute.xlu0 %3991
    %3993 = vset.pattern.permute.xlu0 0
    %3994 = vperm.xlu0 %3993, %v3715
    %v3995 = vpop.permute.xlu0 %3994
    %3996 = vset.pattern.permute.xlu0 0
    %3997 = vperm.xlu0 %3996, %v3764
    %v3998 = vpop.permute.xlu0 %3997
    %3999 = vset.pattern.permute.xlu0 0
    %4000 = vperm.xlu0 %3999, %v3813
    %v4001 = vpop.permute.xlu0 %4000
    %4002 = vset.pattern.permute.xlu0 0
    %4003 = vperm.xlu0 %4002, %v3862
    %v4004 = vpop.permute.xlu0 %4003
    %4005 = vset.pattern.permute.xlu0 0
    %4006 = vperm.xlu0 %4005, %v3911
    %v4007 = vpop.permute.xlu0 %4006
    %v4008 = vlaneseq
    %v4009 = vand.u32 %v4008, 127
    %v4010 = vlaneseq
    %v4011 = vshrl.u32 %v4010, 7
    %v4012 = vsub.s32 %v4009, %v4011
    %v4013 = vrot.slane %v3914, %v4012
    %v4014 = vadd.s32 %v4009, 4294967288
    %v4015 = vlaneseq
    %v4016 = vshrl.u32 %v4015, 7
    %v4017 = vsub.s32 %v4014, %v4016
    %v4018 = vrot.slane %v3917, %v4017
    %vm4019 = vcmask 130112
    %v4020 = vsel %vm4019, %v4018, %v4013
    %v4021 = vadd.s32 %v4009, 4294967280
    %v4022 = vlaneseq
    %v4023 = vshrl.u32 %v4022, 7
    %v4024 = vsub.s32 %v4021, %v4023
    %v4025 = vrot.slane %v3920, %v4024
    %vm4026 = vcmask 195712
    %v4027 = vsel %vm4026, %v4025, %v4020
    %v4028 = vadd.s32 %v4009, 4294967272
    %v4029 = vlaneseq
    %v4030 = vshrl.u32 %v4029, 7
    %v4031 = vsub.s32 %v4028, %v4030
    %v4032 = vrot.slane %v3923, %v4031
    %vm4033 = vcmask 261312
    %v4034 = vsel %vm4033, %v4032, %v4027
    %v4035 = vadd.s32 %v4009, 4294967264
    %v4036 = vlaneseq
    %v4037 = vshrl.u32 %v4036, 7
    %v4038 = vsub.s32 %v4035, %v4037
    %v4039 = vrot.slane %v3926, %v4038
    %vm4040 = vcmask 326912
    %v4041 = vsel %vm4040, %v4039, %v4034
    %v4042 = vadd.s32 %v4009, 4294967256
    %v4043 = vlaneseq
    %v4044 = vshrl.u32 %v4043, 7
    %v4045 = vsub.s32 %v4042, %v4044
    %v4046 = vrot.slane %v3929, %v4045
    %vm4047 = vcmask 392512
    %v4048 = vsel %vm4047, %v4046, %v4041
    %v4049 = vadd.s32 %v4009, 4294967248
    %v4050 = vlaneseq
    %v4051 = vshrl.u32 %v4050, 7
    %v4052 = vsub.s32 %v4049, %v4051
    %v4053 = vrot.slane %v3932, %v4052
    %vm4054 = vcmask 458112
    %v4055 = vsel %vm4054, %v4053, %v4048
    %v4056 = vadd.s32 %v4009, 4294967240
    %v4057 = vlaneseq
    %v4058 = vshrl.u32 %v4057, 7
    %v4059 = vsub.s32 %v4056, %v4058
    %v4060 = vrot.slane %v3935, %v4059
    %vm4061 = vcmask 523712
    %v4062 = vsel %vm4061, %v4060, %v4055
    %v4063 = vadd.s32 %v4009, 4294967232
    %v4064 = vlaneseq
    %v4065 = vshrl.u32 %v4064, 7
    %v4066 = vsub.s32 %v4063, %v4065
    %v4067 = vrot.slane %v3938, %v4066
    %vm4068 = vcmask 589312
    %v4069 = vsel %vm4068, %v4067, %v4062
    %v4070 = vadd.s32 %v4009, 4294967224
    %v4071 = vlaneseq
    %v4072 = vshrl.u32 %v4071, 7
    %v4073 = vsub.s32 %v4070, %v4072
    %v4074 = vrot.slane %v3941, %v4073
    %vm4075 = vcmask 654912
    %v4076 = vsel %vm4075, %v4074, %v4069
    %v4077 = vadd.s32 %v4009, 4294967216
    %v4078 = vlaneseq
    %v4079 = vshrl.u32 %v4078, 7
    %v4080 = vsub.s32 %v4077, %v4079
    %v4081 = vrot.slane %v3944, %v4080
    %vm4082 = vcmask 720512
    %v4083 = vsel %vm4082, %v4081, %v4076
    %v4084 = vadd.s32 %v4009, 4294967208
    %v4085 = vlaneseq
    %v4086 = vshrl.u32 %v4085, 7
    %v4087 = vsub.s32 %v4084, %v4086
    %v4088 = vrot.slane %v3947, %v4087
    %vm4089 = vcmask 786112
    %v4090 = vsel %vm4089, %v4088, %v4083
    %v4091 = vadd.s32 %v4009, 4294967200
    %v4092 = vlaneseq
    %v4093 = vshrl.u32 %v4092, 7
    %v4094 = vsub.s32 %v4091, %v4093
    %v4095 = vrot.slane %v3950, %v4094
    %vm4096 = vcmask 851712
    %v4097 = vsel %vm4096, %v4095, %v4090
    %v4098 = vadd.s32 %v4009, 4294967192
    %v4099 = vlaneseq
    %v4100 = vshrl.u32 %v4099, 7
    %v4101 = vsub.s32 %v4098, %v4100
    %v4102 = vrot.slane %v3953, %v4101
    %vm4103 = vcmask 917312
    %v4104 = vsel %vm4103, %v4102, %v4097
    %v4105 = vadd.s32 %v4009, 4294967184
    %v4106 = vlaneseq
    %v4107 = vshrl.u32 %v4106, 7
    %v4108 = vsub.s32 %v4105, %v4107
    %v4109 = vrot.slane %v3956, %v4108
    %vm4110 = vcmask 982912
    %v4111 = vsel %vm4110, %v4109, %v4104
    %v4112 = vadd.s32 %v4009, 4294967176
    %v4113 = vlaneseq
    %v4114 = vshrl.u32 %v4113, 7
    %v4115 = vsub.s32 %v4112, %v4114
    %v4116 = vrot.slane %v3959, %v4115
    %vm4117 = vcmask 1048512
    %v4118 = vsel %vm4117, %v4116, %v4111
    %v4119 = vlaneseq
    %v4120 = vshrl.u32 %v4119, 7
    %v4121 = vsub.s32 %v4009, %v4120
    %v4122 = vrot.slane %v3962, %v4121
    %v4123 = vlaneseq
    %v4124 = vshrl.u32 %v4123, 7
    %v4125 = vsub.s32 %v4014, %v4124
    %v4126 = vrot.slane %v3965, %v4125
    %v4127 = vsel %vm4019, %v4126, %v4122
    %v4128 = vlaneseq
    %v4129 = vshrl.u32 %v4128, 7
    %v4130 = vsub.s32 %v4021, %v4129
    %v4131 = vrot.slane %v3968, %v4130
    %v4132 = vsel %vm4026, %v4131, %v4127
    %v4133 = vlaneseq
    %v4134 = vshrl.u32 %v4133, 7
    %v4135 = vsub.s32 %v4028, %v4134
    %v4136 = vrot.slane %v3971, %v4135
    %v4137 = vsel %vm4033, %v4136, %v4132
    %v4138 = vlaneseq
    %v4139 = vshrl.u32 %v4138, 7
    %v4140 = vsub.s32 %v4035, %v4139
    %v4141 = vrot.slane %v3974, %v4140
    %v4142 = vsel %vm4040, %v4141, %v4137
    %v4143 = vlaneseq
    %v4144 = vshrl.u32 %v4143, 7
    %v4145 = vsub.s32 %v4042, %v4144
    %v4146 = vrot.slane %v3977, %v4145
    %v4147 = vsel %vm4047, %v4146, %v4142
    %v4148 = vlaneseq
    %v4149 = vshrl.u32 %v4148, 7
    %v4150 = vsub.s32 %v4049, %v4149
    %v4151 = vrot.slane %v3980, %v4150
    %v4152 = vsel %vm4054, %v4151, %v4147
    %v4153 = vlaneseq
    %v4154 = vshrl.u32 %v4153, 7
    %v4155 = vsub.s32 %v4056, %v4154
    %v4156 = vrot.slane %v3983, %v4155
    %v4157 = vsel %vm4061, %v4156, %v4152
    %v4158 = vlaneseq
    %v4159 = vshrl.u32 %v4158, 7
    %v4160 = vsub.s32 %v4063, %v4159
    %v4161 = vrot.slane %v3986, %v4160
    %v4162 = vsel %vm4068, %v4161, %v4157
    %v4163 = vlaneseq
    %v4164 = vshrl.u32 %v4163, 7
    %v4165 = vsub.s32 %v4070, %v4164
    %v4166 = vrot.slane %v3989, %v4165
    %v4167 = vsel %vm4075, %v4166, %v4162
    %v4168 = vlaneseq
    %v4169 = vshrl.u32 %v4168, 7
    %v4170 = vsub.s32 %v4077, %v4169
    %v4171 = vrot.slane %v3992, %v4170
    %v4172 = vsel %vm4082, %v4171, %v4167
    %v4173 = vlaneseq
    %v4174 = vshrl.u32 %v4173, 7
    %v4175 = vsub.s32 %v4084, %v4174
    %v4176 = vrot.slane %v3995, %v4175
    %v4177 = vsel %vm4089, %v4176, %v4172
    %v4178 = vlaneseq
    %v4179 = vshrl.u32 %v4178, 7
    %v4180 = vsub.s32 %v4091, %v4179
    %v4181 = vrot.slane %v3998, %v4180
    %v4182 = vsel %vm4096, %v4181, %v4177
    %v4183 = vlaneseq
    %v4184 = vshrl.u32 %v4183, 7
    %v4185 = vsub.s32 %v4098, %v4184
    %v4186 = vrot.slane %v4001, %v4185
    %v4187 = vsel %vm4103, %v4186, %v4182
    %v4188 = vlaneseq
    %v4189 = vshrl.u32 %v4188, 7
    %v4190 = vsub.s32 %v4105, %v4189
    %v4191 = vrot.slane %v4004, %v4190
    %v4192 = vsel %vm4110, %v4191, %v4187
    %v4193 = vlaneseq
    %v4194 = vshrl.u32 %v4193, 7
    %v4195 = vsub.s32 %v4112, %v4194
    %v4196 = vrot.slane %v4007, %v4195
    %v4197 = vsel %vm4117, %v4196, %v4192
    %v4198 = vcombine.low %v4118, %v4197
    %v4200 = vunpack.c.l.s4 1966171168
    %v4201 = vunpack.c.0.s8 %v4200
    %v4202 = vlaneseq
    %v4203 = vshrl.u32 %v4202, 7
    %v4204 = vsub.s32 %v4201, %v4203
    %v4205 = vrot.slane %v4198, %v4204
    %v4207 = vunpack.c.l.s4 1966171168
    %v4208 = vunpack.c.0.s8 %v4207
    %v4209 = vlaneseq
    %v4210 = vshrl.u32 %v4209, 7
    %v4211 = vsub.s32 %v4208, %v4210
    %v4212 = vrot.slane %v4205, %v4211
    %v4214 = vlaneseq
    %vm4215 = vcmp.ge.s32.totalorder %v4214, 0
    %vm4216 = vcmp.lt.s32.totalorder %v4214, 256
    %vm4217 = vmand %vm4215, %vm4216
    %4218 = vst.msk [vmem:[#allocation7] sm:$0x3] %vm4217, %v4212
    // Predicated region
    $region18: #{tpu_custom_call.1} parent=1 // pred_check
      _
    $region19: #{tpu_custom_call.1} parent=1 // pred_check_branch
      %4220 = sbr.rel (0) target = $region21
    $region20: #{tpu_custom_call.1} parent=1 // pred_region
      %s4222 = ssub.s32 32, 32
      %4223 = vsyncadd [#allocation4], %s4222
      %s4225 = sshll.u32 [#allocation7], 4
      %s4226 = int_to_ptr.vmem [resolvable:$true] %s4225
      %4228 = dma.vmem_to_hbm [thread:$0]  %s4226, 32, %s2, [#allocation4]
    $region21: #{tpu_custom_call.1} parent=1 // pred_fallthru
      _
    // Predicated region
    $region22: #{tpu_custom_call.1} parent=1 // pred_check
      _
    $region23: #{tpu_custom_call.1} parent=1 // pred_check_branch
      %4230 = sbr.rel (0) target = $region25
    $region24: #{tpu_custom_call.1} parent=1 // pred_region
      %4231 = dma.done [#allocation4], 32
    $region25: #{tpu_custom_call.1} parent=1 // pred_fallthru
      _
    %4232 = vsyncpa [#allocation3], 1
    %4233 = vsyncpa [#allocation6], 1
    %4234 = vsyncpa [#allocation4], 1

</llo_original>
